<compile_context>
chip_gen: v5e
topology: v5e:2x2
jax: 0.10.0
libtpu: 0.0.40
codegen_flags: <defaults>
</compile_context>

<pallas_src>
from functools import partial

import jax
import jax.numpy as jnp
import numpy as np
from jax.experimental import pallas as pl
from jax.experimental.pallas import tpu as pltpu

EPS = 1e-5  # nn.BatchNorm2d default eps

# Conv stack config: (C_in, C_out, kh, kw, stride_h, stride_w); input spatial 50x6.
_CONV_CFG = (
    (1, 16, 7, 2, 1, 1),
    (16, 32, 6, 2, 2, 1),
    (32, 64, 6, 2, 2, 1),
    (64, 64, 6, 2, 2, 1),
)
_H0, _W0 = 50, 6


def _layer_dims():
    """Per conv layer: (H_in, W_in, H_out, W_out)."""
    dims, h, w = [], _H0, _W0
    for _, _, kh, kw, sh, sw in _CONV_CFG:
        ho, wo = (h - kh) // sh + 1, (w - kw) // sw + 1
        dims.append((h, w, ho, wo))
        h, w = ho, wo
    return tuple(dims)


# -----------------------------------------------------------------------------
# In-kernel building blocks (traced Python helpers)
# -----------------------------------------------------------------------------
def _conv_bn(in_ref, out_ref, b_ref, gb_ref, cf_ref, *, N, Hi, Ho, Wo, Co, kh, sh):
    """One Conv2d (bias-free) + BatchNorm2d (training-mode batch stats).

    in_ref : (N*Hi, Wi*Ci)   rows=(n,h), lanes=(w,c)
    out_ref: (N*Ho, Wo*Co)   same layout (VMEM scratch)
    b_ref  : (kh, Wi*Ci, Wo*Co)  banded per-tap weights (kw + channels folded)
    gb_ref : (2, Wo*Co)          gamma/beta pre-tiled along w
    cf_ref : (Wo*Co, Wo*Co)      channel-fold 0/1 matrix (sum over w per channel,
                                 result replicated over w -> doubles as broadcast)
    """
    wco = Wo * Co
    span = sh * (Ho - 1) + 1  # contiguous input rows needed per tap

    if sh > 1:
        # Row-decimation (keep every sh-th row) expressed as a tiny 0/1 matmul
        # so no strided memory access is needed.
        sel = (jax.lax.broadcasted_iota(jnp.int32, (Ho, span), 1)
               == sh * jax.lax.broadcasted_iota(jnp.int32, (Ho, span), 0)
               ).astype(jnp.float32)

    sum_y = jnp.zeros((1, wco), jnp.float32)
    sum_y2 = jnp.zeros((1, wco), jnp.float32)

    for n in range(N):  # N is small; static unroll
        acc = jnp.zeros((span, wco), jnp.float32)
        for i in range(kh):  # static loop over kernel rows (taps)
            tap = in_ref[pl.ds(n * Hi + i, span), :]          # (span, Wi*Ci)
            acc = acc + jnp.dot(tap, b_ref[i],
                                preferred_element_type=jnp.float32)
        if sh > 1:
            acc = jnp.dot(sel, acc, preferred_element_type=jnp.float32)  # (Ho, wco)
        out_ref[pl.ds(n * Ho, Ho), :] = acc
        # single-pass BN statistics
        sum_y = sum_y + jnp.sum(acc, axis=0, keepdims=True)
        sum_y2 = sum_y2 + jnp.sum(acc * acc, axis=0, keepdims=True)

    # Per-channel mean / var (fold the w groups; result already broadcast over w).
    inv_m = 1.0 / float(N * Ho * Wo)
    cf = cf_ref[...]
    tot = jnp.dot(sum_y, cf, preferred_element_type=jnp.float32)    # (1, wco)
    tot2 = jnp.dot(sum_y2, cf, preferred_element_type=jnp.float32)  # (1, wco)
    mean = tot * inv_m
    var = tot2 * inv_m - mean * mean                                # biased var

    gb = gb_ref[...]
    scale = gb[0:1, :] * jax.lax.rsqrt(var + EPS)                   # gamma / sqrt(var+eps)
    shift = gb[1:2, :] - mean * scale                               # beta - mean*scale
    out_ref[...] = out_ref[...] * scale + shift


def _fc_sigmoid(a_ref, w_ref, b_ref, out_ref, *, N, Ho):
    """Linear(256 -> 1) + Sigmoid, done on the VPU (no MXU, no flatten reshape)."""
    w = w_ref[...]          # (Ho, Wo*Co) laid out to match the activation slab
    b = b_ref[...]          # (1, 1)
    for n in range(N):
        slab = a_ref[pl.ds(n * Ho, Ho), :]                  # (Ho, Wo*Co)
        s = jnp.sum(slab * w, axis=1, keepdims=True)        # lane reduce  -> (Ho, 1)
        logit = jnp.sum(s, axis=0, keepdims=True) + b       # sublane reduce -> (1, 1)
        out_ref[pl.ds(n, 1), :] = 1.0 / (1.0 + jnp.exp(-logit))


# -----------------------------------------------------------------------------
# The single fused kernel
# -----------------------------------------------------------------------------
def _disc_kernel(x_ref,
                 b1_ref, gb1_ref, cf1_ref,
                 b2_ref, gb2_ref, cf2_ref,
                 b3_ref, gb3_ref, cf3_ref,
                 b4_ref, gb4_ref, cf4_ref,
                 wfc_ref, bfc_ref,
                 out_ref,
                 a1_ref, a2_ref, a3_ref, a4_ref,
                 *, N):
    dims = _layer_dims()
    layer_in = (x_ref, a1_ref, a2_ref, a3_ref)
    layer_out = (a1_ref, a2_ref, a3_ref, a4_ref)
    weights = ((b1_ref, gb1_ref, cf1_ref), (b2_ref, gb2_ref, cf2_ref),
               (b3_ref, gb3_ref, cf3_ref), (b4_ref, gb4_ref, cf4_ref))

    for l, ((_, co, kh, _, sh, _), (hi, _, ho, wo)) in enumerate(zip(_CONV_CFG, dims)):
        b_ref, gb_ref, cf_ref = weights[l]
        _conv_bn(layer_in[l], layer_out[l], b_ref, gb_ref, cf_ref,
                 N=N, Hi=hi, Ho=ho, Wo=wo, Co=co, kh=kh, sh=sh)

    _fc_sigmoid(a4_ref, wfc_ref, bfc_ref, out_ref, N=N, Ho=dims[-1][2])


# -----------------------------------------------------------------------------
# Wrapper + one-time parameter preparation (layout permutation at init)
# -----------------------------------------------------------------------------
def discriminator_forward(x, ops):
    """x: (N, 1, 50, 6) NCHW float32 -> (N, 1) sigmoid probabilities."""
    n = x.shape[0]
    dims = _layer_dims()
    # C_in = 1, so NCHW -> rows=(n,h), lanes=w is a free reshape.
    x2d = x.astype(jnp.float32).reshape(n * _H0, _W0)

    vmem = pl.BlockSpec(memory_space=pltpu.MemorySpace.VMEM)
    operands = [x2d]
    for l in range(1, len(_CONV_CFG) + 1):
        operands += [ops[f"B{l}"], ops[f"gb{l}"], ops[f"cf{l}"]]
    operands += [ops["wfc"], ops["bfc"]]

    scratch = [pltpu.VMEM((n * ho, wo * cfg[1]), jnp.float32)
               for cfg, (_, _, ho, wo) in zip(_CONV_CFG, dims)]

    return pl.pallas_call(
        partial(_disc_kernel, N=n),
        out_shape=jax.ShapeDtypeStruct((n, 1), jnp.float32),
        in_specs=[vmem] * len(operands),
        out_specs=vmem,
        scratch_shapes=scratch,
    )(*operands)


def prepare_params(params):
    """One-time conversion of PyTorch-layout params to kernel operands."""
    dims = _layer_dims()
    ops = {}
    for l, ((ci, co, kh, kw, _, sw), (_, wi, _, wo)) in enumerate(zip(_CONV_CFG, dims), 1):
        w = np.asarray(params[f"w{l}"], np.float32)            # (Co, Ci, kh, kw)
        # Banded per-tap weights: B[i][(wi*Ci + ci), (wo*Co + co)] = W[co,ci,i,wi-wo]
        B = np.zeros((kh, wi * ci, wo * co), np.float32)
        for i in range(kh):
            for j in range(kw):
                blk = w[:, :, i, j].T                          # (Ci, Co)
                for o in range(wo):
                    wi_idx = o * sw + j
                    B[i, wi_idx * ci:(wi_idx + 1) * ci, o * co:(o + 1) * co] = blk
        gamma = np.asarray(params[f"g{l}"], np.float32)
        beta = np.asarray(params[f"be{l}"], np.float32)
        ops[f"B{l}"] = jnp.asarray(B)
        ops[f"gb{l}"] = jnp.asarray(np.stack([np.tile(gamma, wo), np.tile(beta, wo)]))
        ops[f"cf{l}"] = jnp.asarray(np.tile(np.eye(co, dtype=np.float32), (wo, wo)))
        # NOTE: conv bias params[f"b{l}"] is dropped on purpose — training-mode
        # BatchNorm mean subtraction cancels any per-channel constant exactly.

    ho4, wo4 = dims[-1][2], dims[-1][3]
    co4 = _CONV_CFG[-1][1]
    fcw = np.asarray(params["fc_w"], np.float32).reshape(co4, ho4, wo4)  # torch (c,h,w) flatten
    ops["wfc"] = jnp.asarray(fcw.transpose(1, 2, 0).reshape(ho4, wo4 * co4))
    ops["bfc"] = jnp.asarray(np.asarray(params["fc_b"], np.float32).reshape(1, 1))
    return ops


# -----------------------------------------------------------------------------
# Deterministic synthetic parameters (PyTorch layouts) + pure-JAX reference
# -----------------------------------------------------------------------------
def init_params(key):
    def u(k, shape, scale=0.1):
        return jax.random.uniform(k, shape, jnp.float32, -scale, scale)

    keys = jax.random.split(key, 4 * len(_CONV_CFG) + 2)
    params, ki = {}, 0
    for l, (ci, co, kh, kw, _, _) in enumerate(_CONV_CFG, 1):
        params[f"w{l}"] = u(keys[ki], (co, ci, kh, kw)); ki += 1
        params[f"b{l}"] = u(keys[ki], (co,)); ki += 1            # cancelled by BN
        params[f"g{l}"] = 1.0 + u(keys[ki], (co,), 0.05); ki += 1
        params[f"be{l}"] = u(keys[ki], (co,), 0.05); ki += 1
    params["fc_w"] = u(keys[ki], (1, 64 * 2 * 2)); ki += 1       # torch Linear layout
    params["fc_b"] = u(keys[ki], (1,)); ki += 1
    return params


def _reference_forward(x, params):
    """Plain-JAX/XLA reference with the exact PyTorch semantics (incl. conv bias)."""
    def conv(h, w, b, stride):
        y = jax.lax.conv_general_dilated(
            h, w, window_strides=stride, padding="VALID",
            dimension_numbers=("NCHW", "OIHW", "NCHW"))
        return y + b.reshape(1, -1, 1, 1)

    def bn(h, gamma, beta):
        mean = jnp.mean(h, axis=(0, 2, 3), keepdims=True)
        var = jnp.mean((h - mean) ** 2, axis=(0, 2, 3), keepdims=True)
        hn = (h - mean) * jax.lax.rsqrt(var + EPS)
        return hn * gamma.reshape(1, -1, 1, 1) + beta.reshape(1, -1, 1, 1)

    h = x
    for l, (_, _, _, _, sh, sw) in enumerate(_CONV_CFG, 1):
        h = conv(h, params[f"w{l}"], params[f"b{l}"], (sh, sw))
        h = bn(h, params[f"g{l}"], params[f"be{l}"])
    flat = h.reshape(h.shape[0], -1)
    return jax.nn.sigmoid(flat @ params["fc_w"].T + params["fc_b"])


if __name__ == "__main__":
    key = jax.random.PRNGKey(0)
    k_param, k_x = jax.random.split(key)
    params = init_params(k_param)
    ops = prepare_params(params)

    # Input shape dictated by the module's fc_1 = Linear(64*2*2, 1): (N, 1, 50, 6)
    x = jax.random.normal(k_x, (2, 1, 50, 6), jnp.float32)

    out = jax.block_until_ready(discriminator_forward(x, ops))
    assert out.shape == (2, 1), out.shape
    assert bool(jnp.all((out >= 0.0) & (out <= 1.0))), "sigmoid output out of range"

    ref = jax.block_until_ready(_reference_forward(x, params))
    assert bool(jnp.allclose(out, ref, atol=1e-3, rtol=1e-3)), (out, ref)

    print("KERNEL_OK")
</pallas_src>

<mosaic_0001>
module attributes {stable_mosaic.version = 11 : i64} {
  func.func @_disc_kernel(%arg0: memref<100x6xf32, #tpu.memory_space<vmem>>, %arg1: memref<7x6x80xf32, #tpu.memory_space<vmem>>, %arg2: memref<2x80xf32, #tpu.memory_space<vmem>>, %arg3: memref<80x80xf32, #tpu.memory_space<vmem>>, %arg4: memref<6x80x128xf32, #tpu.memory_space<vmem>>, %arg5: memref<2x128xf32, #tpu.memory_space<vmem>>, %arg6: memref<128x128xf32, #tpu.memory_space<vmem>>, %arg7: memref<6x128x192xf32, #tpu.memory_space<vmem>>, %arg8: memref<2x192xf32, #tpu.memory_space<vmem>>, %arg9: memref<192x192xf32, #tpu.memory_space<vmem>>, %arg10: memref<6x192x128xf32, #tpu.memory_space<vmem>>, %arg11: memref<2x128xf32, #tpu.memory_space<vmem>>, %arg12: memref<128x128xf32, #tpu.memory_space<vmem>>, %arg13: memref<2x128xf32, #tpu.memory_space<vmem>>, %arg14: memref<1x1xf32, #tpu.memory_space<vmem>>, %arg15: memref<2x1xf32, #tpu.memory_space<vmem>>, %arg16: memref<88x80xf32, #tpu.memory_space<vmem>>, %arg17: memref<40x128xf32, #tpu.memory_space<vmem>>, %arg18: memref<16x192xf32, #tpu.memory_space<vmem>>, %arg19: memref<4x128xf32, #tpu.memory_space<vmem>>) attributes {dimension_semantics = [], scalar_prefetch = 0 : i64, scratch_operands = 4 : i64, tpu.core_type = #tpu.core_type<tc>} {
    %cst = arith.constant 0.000000e+00 : f32
    %0 = vector.broadcast %cst : f32 to vector<1x80xf32>
    %cst_0 = arith.constant 0.000000e+00 : f32
    %1 = vector.broadcast %cst_0 : f32 to vector<1x80xf32>
    %cst_1 = arith.constant 0.000000e+00 : f32
    %2 = vector.broadcast %cst_1 : f32 to vector<44x80xf32>
    %c0 = arith.constant 0 : index
    %c0_2 = arith.constant 0 : index
    %3 = vector.load %arg0[%c0, %c0_2] : memref<100x6xf32, #tpu.memory_space<vmem>>, vector<44x6xf32>
    %c0_3 = arith.constant 0 : index
    %c0_4 = arith.constant 0 : index
    %c0_5 = arith.constant 0 : index
    %4 = vector.load %arg1[%c0_3, %c0_4, %c0_5] : memref<7x6x80xf32, #tpu.memory_space<vmem>>, vector<1x6x80xf32>
    %5 = vector.shape_cast %4 : vector<1x6x80xf32> to vector<6x80xf32>
    %cst_6 = arith.constant dense<0.000000e+00> : vector<44x80xf32>
    %6 = tpu.matmul %3, %5, %cst_6 {dimension_numbers = #tpu.dot_dimension_numbers<[1], [0], [0], [1], [0, 0, 1, 1], [], []>} : vector<44x6xf32>, vector<6x80xf32>, vector<44x80xf32> -> vector<44x80xf32>
    %7 = arith.addf %2, %6 : vector<44x80xf32>
    %c1 = arith.constant 1 : index
    %c0_7 = arith.constant 0 : index
    %8 = vector.load %arg0[%c1, %c0_7] : memref<100x6xf32, #tpu.memory_space<vmem>>, vector<44x6xf32>
    %c1_8 = arith.constant 1 : index
    %c0_9 = arith.constant 0 : index
    %c0_10 = arith.constant 0 : index
    %9 = vector.load %arg1[%c1_8, %c0_9, %c0_10] : memref<7x6x80xf32, #tpu.memory_space<vmem>>, vector<1x6x80xf32>
    %10 = vector.shape_cast %9 : vector<1x6x80xf32> to vector<6x80xf32>
    %cst_11 = arith.constant dense<0.000000e+00> : vector<44x80xf32>
    %11 = tpu.matmul %8, %10, %cst_11 {dimension_numbers = #tpu.dot_dimension_numbers<[1], [0], [0], [1], [0, 0, 1, 1], [], []>} : vector<44x6xf32>, vector<6x80xf32>, vector<44x80xf32> -> vector<44x80xf32>
    %12 = arith.addf %7, %11 : vector<44x80xf32>
    %c2 = arith.constant 2 : index
    %c0_12 = arith.constant 0 : index
    %13 = vector.load %arg0[%c2, %c0_12] : memref<100x6xf32, #tpu.memory_space<vmem>>, vector<44x6xf32>
    %c2_13 = arith.constant 2 : index
    %c0_14 = arith.constant 0 : index
    %c0_15 = arith.constant 0 : index
    %14 = vector.load %arg1[%c2_13, %c0_14, %c0_15] : memref<7x6x80xf32, #tpu.memory_space<vmem>>, vector<1x6x80xf32>
    %15 = vector.shape_cast %14 : vector<1x6x80xf32> to vector<6x80xf32>
    %cst_16 = arith.constant dense<0.000000e+00> : vector<44x80xf32>
    %16 = tpu.matmul %13, %15, %cst_16 {dimension_numbers = #tpu.dot_dimension_numbers<[1], [0], [0], [1], [0, 0, 1, 1], [], []>} : vector<44x6xf32>, vector<6x80xf32>, vector<44x80xf32> -> vector<44x80xf32>
    %17 = arith.addf %12, %16 : vector<44x80xf32>
    %c3 = arith.constant 3 : index
    %c0_17 = arith.constant 0 : index
    %18 = vector.load %arg0[%c3, %c0_17] : memref<100x6xf32, #tpu.memory_space<vmem>>, vector<44x6xf32>
    %c3_18 = arith.constant 3 : index
    %c0_19 = arith.constant 0 : index
    %c0_20 = arith.constant 0 : index
    %19 = vector.load %arg1[%c3_18, %c0_19, %c0_20] : memref<7x6x80xf32, #tpu.memory_space<vmem>>, vector<1x6x80xf32>
    %20 = vector.shape_cast %19 : vector<1x6x80xf32> to vector<6x80xf32>
    %cst_21 = arith.constant dense<0.000000e+00> : vector<44x80xf32>
    %21 = tpu.matmul %18, %20, %cst_21 {dimension_numbers = #tpu.dot_dimension_numbers<[1], [0], [0], [1], [0, 0, 1, 1], [], []>} : vector<44x6xf32>, vector<6x80xf32>, vector<44x80xf32> -> vector<44x80xf32>
    %22 = arith.addf %17, %21 : vector<44x80xf32>
    %c4 = arith.constant 4 : index
    %c0_22 = arith.constant 0 : index
    %23 = vector.load %arg0[%c4, %c0_22] : memref<100x6xf32, #tpu.memory_space<vmem>>, vector<44x6xf32>
    %c4_23 = arith.constant 4 : index
    %c0_24 = arith.constant 0 : index
    %c0_25 = arith.constant 0 : index
    %24 = vector.load %arg1[%c4_23, %c0_24, %c0_25] : memref<7x6x80xf32, #tpu.memory_space<vmem>>, vector<1x6x80xf32>
    %25 = vector.shape_cast %24 : vector<1x6x80xf32> to vector<6x80xf32>
    %cst_26 = arith.constant dense<0.000000e+00> : vector<44x80xf32>
    %26 = tpu.matmul %23, %25, %cst_26 {dimension_numbers = #tpu.dot_dimension_numbers<[1], [0], [0], [1], [0, 0, 1, 1], [], []>} : vector<44x6xf32>, vector<6x80xf32>, vector<44x80xf32> -> vector<44x80xf32>
    %27 = arith.addf %22, %26 : vector<44x80xf32>
    %c5 = arith.constant 5 : index
    %c0_27 = arith.constant 0 : index
    %28 = vector.load %arg0[%c5, %c0_27] : memref<100x6xf32, #tpu.memory_space<vmem>>, vector<44x6xf32>
    %c5_28 = arith.constant 5 : index
    %c0_29 = arith.constant 0 : index
    %c0_30 = arith.constant 0 : index
    %29 = vector.load %arg1[%c5_28, %c0_29, %c0_30] : memref<7x6x80xf32, #tpu.memory_space<vmem>>, vector<1x6x80xf32>
    %30 = vector.shape_cast %29 : vector<1x6x80xf32> to vector<6x80xf32>
    %cst_31 = arith.constant dense<0.000000e+00> : vector<44x80xf32>
    %31 = tpu.matmul %28, %30, %cst_31 {dimension_numbers = #tpu.dot_dimension_numbers<[1], [0], [0], [1], [0, 0, 1, 1], [], []>} : vector<44x6xf32>, vector<6x80xf32>, vector<44x80xf32> -> vector<44x80xf32>
    %32 = arith.addf %27, %31 : vector<44x80xf32>
    %c6 = arith.constant 6 : index
    %c0_32 = arith.constant 0 : index
    %33 = vector.load %arg0[%c6, %c0_32] : memref<100x6xf32, #tpu.memory_space<vmem>>, vector<44x6xf32>
    %c6_33 = arith.constant 6 : index
    %c0_34 = arith.constant 0 : index
    %c0_35 = arith.constant 0 : index
    %34 = vector.load %arg1[%c6_33, %c0_34, %c0_35] : memref<7x6x80xf32, #tpu.memory_space<vmem>>, vector<1x6x80xf32>
    %35 = vector.shape_cast %34 : vector<1x6x80xf32> to vector<6x80xf32>
    %cst_36 = arith.constant dense<0.000000e+00> : vector<44x80xf32>
    %36 = tpu.matmul %33, %35, %cst_36 {dimension_numbers = #tpu.dot_dimension_numbers<[1], [0], [0], [1], [0, 0, 1, 1], [], []>} : vector<44x6xf32>, vector<6x80xf32>, vector<44x80xf32> -> vector<44x80xf32>
    %37 = arith.addf %32, %36 : vector<44x80xf32>
    %c0_37 = arith.constant 0 : index
    %c0_38 = arith.constant 0 : index
    %38 = vector.load %arg16[%c0_37, %c0_38] : memref<88x80xf32, #tpu.memory_space<vmem>>, vector<44x80xf32>
    tpu.vector_store %arg16[%c0_37, %c0_38], %37 {strides = array<i32>} : memref<88x80xf32, #tpu.memory_space<vmem>>, vector<44x80xf32>,
    %cst_39 = arith.constant dense<0.000000e+00> : vector<80xf32>
    %39 = vector.multi_reduction <add>, %37, %cst_39 [0] : vector<44x80xf32> to vector<80xf32>
    %40 = vector.shape_cast %39 : vector<80xf32> to vector<1x80xf32>
    %41 = arith.addf %0, %40 : vector<1x80xf32>
    %42 = arith.mulf %37, %37 : vector<44x80xf32>
    %cst_40 = arith.constant dense<0.000000e+00> : vector<80xf32>
    %43 = vector.multi_reduction <add>, %42, %cst_40 [0] : vector<44x80xf32> to vector<80xf32>
    %44 = vector.shape_cast %43 : vector<80xf32> to vector<1x80xf32>
    %45 = arith.addf %1, %44 : vector<1x80xf32>
    %cst_41 = arith.constant 0.000000e+00 : f32
    %46 = vector.broadcast %cst_41 : f32 to vector<44x80xf32>
    %c50 = arith.constant 50 : index
    %c0_42 = arith.constant 0 : index
    %47 = vector.load %arg0[%c50, %c0_42] : memref<100x6xf32, #tpu.memory_space<vmem>>, vector<44x6xf32>
    %c0_43 = arith.constant 0 : index
    %c0_44 = arith.constant 0 : index
    %c0_45 = arith.constant 0 : index
    %48 = vector.load %arg1[%c0_43, %c0_44, %c0_45] : memref<7x6x80xf32, #tpu.memory_space<vmem>>, vector<1x6x80xf32>
    %49 = vector.shape_cast %48 : vector<1x6x80xf32> to vector<6x80xf32>
    %cst_46 = arith.constant dense<0.000000e+00> : vector<44x80xf32>
    %50 = tpu.matmul %47, %49, %cst_46 {dimension_numbers = #tpu.dot_dimension_numbers<[1], [0], [0], [1], [0, 0, 1, 1], [], []>} : vector<44x6xf32>, vector<6x80xf32>, vector<44x80xf32> -> vector<44x80xf32>
    %51 = arith.addf %46, %50 : vector<44x80xf32>
    %c51 = arith.constant 51 : index
    %c0_47 = arith.constant 0 : index
    %52 = vector.load %arg0[%c51, %c0_47] : memref<100x6xf32, #tpu.memory_space<vmem>>, vector<44x6xf32>
    %c1_48 = arith.constant 1 : index
    %c0_49 = arith.constant 0 : index
    %c0_50 = arith.constant 0 : index
    %53 = vector.load %arg1[%c1_48, %c0_49, %c0_50] : memref<7x6x80xf32, #tpu.memory_space<vmem>>, vector<1x6x80xf32>
    %54 = vector.shape_cast %53 : vector<1x6x80xf32> to vector<6x80xf32>
    %cst_51 = arith.constant dense<0.000000e+00> : vector<44x80xf32>
    %55 = tpu.matmul %52, %54, %cst_51 {dimension_numbers = #tpu.dot_dimension_numbers<[1], [0], [0], [1], [0, 0, 1, 1], [], []>} : vector<44x6xf32>, vector<6x80xf32>, vector<44x80xf32> -> vector<44x80xf32>
    %56 = arith.addf %51, %55 : vector<44x80xf32>
    %c52 = arith.constant 52 : index
    %c0_52 = arith.constant 0 : index
    %57 = vector.load %arg0[%c52, %c0_52] : memref<100x6xf32, #tpu.memory_space<vmem>>, vector<44x6xf32>
    %c2_53 = arith.constant 2 : index
    %c0_54 = arith.constant 0 : index
    %c0_55 = arith.constant 0 : index
    %58 = vector.load %arg1[%c2_53, %c0_54, %c0_55] : memref<7x6x80xf32, #tpu.memory_space<vmem>>, vector<1x6x80xf32>
    %59 = vector.shape_cast %58 : vector<1x6x80xf32> to vector<6x80xf32>
    %cst_56 = arith.constant dense<0.000000e+00> : vector<44x80xf32>
    %60 = tpu.matmul %57, %59, %cst_56 {dimension_numbers = #tpu.dot_dimension_numbers<[1], [0], [0], [1], [0, 0, 1, 1], [], []>} : vector<44x6xf32>, vector<6x80xf32>, vector<44x80xf32> -> vector<44x80xf32>
    %61 = arith.addf %56, %60 : vector<44x80xf32>
    %c53 = arith.constant 53 : index
    %c0_57 = arith.constant 0 : index
    %62 = vector.load %arg0[%c53, %c0_57] : memref<100x6xf32, #tpu.memory_space<vmem>>, vector<44x6xf32>
    %c3_58 = arith.constant 3 : index
    %c0_59 = arith.constant 0 : index
    %c0_60 = arith.constant 0 : index
    %63 = vector.load %arg1[%c3_58, %c0_59, %c0_60] : memref<7x6x80xf32, #tpu.memory_space<vmem>>, vector<1x6x80xf32>
    %64 = vector.shape_cast %63 : vector<1x6x80xf32> to vector<6x80xf32>
    %cst_61 = arith.constant dense<0.000000e+00> : vector<44x80xf32>
    %65 = tpu.matmul %62, %64, %cst_61 {dimension_numbers = #tpu.dot_dimension_numbers<[1], [0], [0], [1], [0, 0, 1, 1], [], []>} : vector<44x6xf32>, vector<6x80xf32>, vector<44x80xf32> -> vector<44x80xf32>
    %66 = arith.addf %61, %65 : vector<44x80xf32>
    %c54 = arith.constant 54 : index
    %c0_62 = arith.constant 0 : index
    %67 = vector.load %arg0[%c54, %c0_62] : memref<100x6xf32, #tpu.memory_space<vmem>>, vector<44x6xf32>
    %c4_63 = arith.constant 4 : index
    %c0_64 = arith.constant 0 : index
    %c0_65 = arith.constant 0 : index
    %68 = vector.load %arg1[%c4_63, %c0_64, %c0_65] : memref<7x6x80xf32, #tpu.memory_space<vmem>>, vector<1x6x80xf32>
    %69 = vector.shape_cast %68 : vector<1x6x80xf32> to vector<6x80xf32>
    %cst_66 = arith.constant dense<0.000000e+00> : vector<44x80xf32>
    %70 = tpu.matmul %67, %69, %cst_66 {dimension_numbers = #tpu.dot_dimension_numbers<[1], [0], [0], [1], [0, 0, 1, 1], [], []>} : vector<44x6xf32>, vector<6x80xf32>, vector<44x80xf32> -> vector<44x80xf32>
    %71 = arith.addf %66, %70 : vector<44x80xf32>
    %c55 = arith.constant 55 : index
    %c0_67 = arith.constant 0 : index
    %72 = vector.load %arg0[%c55, %c0_67] : memref<100x6xf32, #tpu.memory_space<vmem>>, vector<44x6xf32>
    %c5_68 = arith.constant 5 : index
    %c0_69 = arith.constant 0 : index
    %c0_70 = arith.constant 0 : index
    %73 = vector.load %arg1[%c5_68, %c0_69, %c0_70] : memref<7x6x80xf32, #tpu.memory_space<vmem>>, vector<1x6x80xf32>
    %74 = vector.shape_cast %73 : vector<1x6x80xf32> to vector<6x80xf32>
    %cst_71 = arith.constant dense<0.000000e+00> : vector<44x80xf32>
    %75 = tpu.matmul %72, %74, %cst_71 {dimension_numbers = #tpu.dot_dimension_numbers<[1], [0], [0], [1], [0, 0, 1, 1], [], []>} : vector<44x6xf32>, vector<6x80xf32>, vector<44x80xf32> -> vector<44x80xf32>
    %76 = arith.addf %71, %75 : vector<44x80xf32>
    %c56 = arith.constant 56 : index
    %c0_72 = arith.constant 0 : index
    %77 = vector.load %arg0[%c56, %c0_72] : memref<100x6xf32, #tpu.memory_space<vmem>>, vector<44x6xf32>
    %c6_73 = arith.constant 6 : index
    %c0_74 = arith.constant 0 : index
    %c0_75 = arith.constant 0 : index
    %78 = vector.load %arg1[%c6_73, %c0_74, %c0_75] : memref<7x6x80xf32, #tpu.memory_space<vmem>>, vector<1x6x80xf32>
    %79 = vector.shape_cast %78 : vector<1x6x80xf32> to vector<6x80xf32>
    %cst_76 = arith.constant dense<0.000000e+00> : vector<44x80xf32>
    %80 = tpu.matmul %77, %79, %cst_76 {dimension_numbers = #tpu.dot_dimension_numbers<[1], [0], [0], [1], [0, 0, 1, 1], [], []>} : vector<44x6xf32>, vector<6x80xf32>, vector<44x80xf32> -> vector<44x80xf32>
    %81 = arith.addf %76, %80 : vector<44x80xf32>
    %c44 = arith.constant 44 : index
    %c0_77 = arith.constant 0 : index
    %82 = vector.load %arg16[%c44, %c0_77] : memref<88x80xf32, #tpu.memory_space<vmem>>, vector<44x80xf32>
    tpu.vector_store %arg16[%c44, %c0_77], %81 {strides = array<i32>} : memref<88x80xf32, #tpu.memory_space<vmem>>, vector<44x80xf32>,
    %cst_78 = arith.constant dense<0.000000e+00> : vector<80xf32>
    %83 = vector.multi_reduction <add>, %81, %cst_78 [0] : vector<44x80xf32> to vector<80xf32>
    %84 = vector.shape_cast %83 : vector<80xf32> to vector<1x80xf32>
    %85 = arith.addf %41, %84 : vector<1x80xf32>
    %86 = arith.mulf %81, %81 : vector<44x80xf32>
    %cst_79 = arith.constant dense<0.000000e+00> : vector<80xf32>
    %87 = vector.multi_reduction <add>, %86, %cst_79 [0] : vector<44x80xf32> to vector<80xf32>
    %88 = vector.shape_cast %87 : vector<80xf32> to vector<1x80xf32>
    %89 = arith.addf %45, %88 : vector<1x80xf32>
    %c0_80 = arith.constant 0 : index
    %c0_81 = arith.constant 0 : index
    %90 = vector.load %arg3[%c0_80, %c0_81] : memref<80x80xf32, #tpu.memory_space<vmem>>, vector<80x80xf32>
    %cst_82 = arith.constant dense<0.000000e+00> : vector<1x80xf32>
    %91 = tpu.matmul %85, %90, %cst_82 {dimension_numbers = #tpu.dot_dimension_numbers<[1], [0], [0], [1], [0, 0, 1, 1], [], []>} : vector<1x80xf32>, vector<80x80xf32>, vector<1x80xf32> -> vector<1x80xf32>
    %cst_83 = arith.constant dense<0.000000e+00> : vector<1x80xf32>
    %92 = tpu.matmul %89, %90, %cst_83 {dimension_numbers = #tpu.dot_dimension_numbers<[1], [0], [0], [1], [0, 0, 1, 1], [], []>} : vector<1x80xf32>, vector<80x80xf32>, vector<1x80xf32> -> vector<1x80xf32>
    %cst_84 = arith.constant 0.0022727272 : f32
    %93 = vector.broadcast %cst_84 : f32 to vector<1x80xf32>
    %94 = arith.mulf %91, %93 : vector<1x80xf32>
    %cst_85 = arith.constant 0.0022727272 : f32
    %95 = vector.broadcast %cst_85 : f32 to vector<1x80xf32>
    %96 = arith.mulf %92, %95 : vector<1x80xf32>
    %97 = arith.mulf %94, %94 : vector<1x80xf32>
    %98 = arith.subf %96, %97 : vector<1x80xf32>
    %c0_86 = arith.constant 0 : index
    %c0_87 = arith.constant 0 : index
    %99 = vector.load %arg2[%c0_86, %c0_87] : memref<2x80xf32, #tpu.memory_space<vmem>>, vector<2x80xf32>
    %100 = vector.extract_strided_slice %99 {offsets = [0, 0], sizes = [1, 80], strides = [1, 1]} : vector<2x80xf32> to vector<1x80xf32>
    %cst_88 = arith.constant 9.99999974E-6 : f32
    %101 = vector.broadcast %cst_88 : f32 to vector<1x80xf32>
    %102 = arith.addf %98, %101 : vector<1x80xf32>
    %103 = math.rsqrt %102 : vector<1x80xf32>
    %104 = arith.mulf %100, %103 : vector<1x80xf32>
    %105 = vector.extract_strided_slice %99 {offsets = [1, 0], sizes = [1, 80], strides = [1, 1]} : vector<2x80xf32> to vector<1x80xf32>
    %106 = arith.mulf %94, %104 : vector<1x80xf32>
    %107 = arith.subf %105, %106 : vector<1x80xf32>
    %c0_89 = arith.constant 0 : index
    %c0_90 = arith.constant 0 : index
    %108 = vector.load %arg16[%c0_89, %c0_90] : memref<88x80xf32, #tpu.memory_space<vmem>>, vector<88x80xf32>
    %109 = vector.broadcast %104 : vector<1x80xf32> to vector<88x80xf32>
    %110 = arith.mulf %108, %109 : vector<88x80xf32>
    %111 = vector.broadcast %107 : vector<1x80xf32> to vector<88x80xf32>
    %112 = arith.addf %110, %111 : vector<88x80xf32>
    %c0_91 = arith.constant 0 : index
    %c0_92 = arith.constant 0 : index
    %113 = vector.load %arg16[%c0_91, %c0_92] : memref<88x80xf32, #tpu.memory_space<vmem>>, vector<88x80xf32>
    tpu.vector_store %arg16[%c0_91, %c0_92], %112 {strides = array<i32>} : memref<88x80xf32, #tpu.memory_space<vmem>>, vector<88x80xf32>,
    %114 = tpu.iota {dimensions = array<i32: 1>} : vector<20x39xi32>
    %115 = tpu.iota {dimensions = array<i32: 0>} : vector<20x39xi32>
    %c2_i32 = arith.constant 2 : i32
    %116 = vector.broadcast %c2_i32 : i32 to vector<20x39xi32>
    %117 = arith.muli %116, %115 : vector<20x39xi32>
    %118 = arith.cmpi eq, %114, %117 : vector<20x39xi32>
    %119 = arith.extui %118 : vector<20x39xi1> to vector<20x39xi32>
    %120 = arith.sitofp %119 : vector<20x39xi32> to vector<20x39xf32>
    %cst_93 = arith.constant 0.000000e+00 : f32
    %121 = vector.broadcast %cst_93 : f32 to vector<1x128xf32>
    %cst_94 = arith.constant 0.000000e+00 : f32
    %122 = vector.broadcast %cst_94 : f32 to vector<1x128xf32>
    %cst_95 = arith.constant 0.000000e+00 : f32
    %123 = vector.broadcast %cst_95 : f32 to vector<39x128xf32>
    %c0_96 = arith.constant 0 : index
    %c0_97 = arith.constant 0 : index
    %124 = vector.load %arg16[%c0_96, %c0_97] : memref<88x80xf32, #tpu.memory_space<vmem>>, vector<39x80xf32>
    %c0_98 = arith.constant 0 : index
    %c0_99 = arith.constant 0 : index
    %c0_100 = arith.constant 0 : index
    %125 = vector.load %arg4[%c0_98, %c0_99, %c0_100] : memref<6x80x128xf32, #tpu.memory_space<vmem>>, vector<1x80x128xf32>
    %126 = vector.shape_cast %125 : vector<1x80x128xf32> to vector<80x128xf32>
    %cst_101 = arith.constant dense<0.000000e+00> : vector<39x128xf32>
    %127 = tpu.matmul %124, %126, %cst_101 {dimension_numbers = #tpu.dot_dimension_numbers<[1], [0], [0], [1], [0, 0, 1, 1], [], []>} : vector<39x80xf32>, vector<80x128xf32>, vector<39x128xf32> -> vector<39x128xf32>
    %128 = arith.addf %123, %127 : vector<39x128xf32>
    %c1_102 = arith.constant 1 : index
    %c0_103 = arith.constant 0 : index
    %129 = vector.load %arg16[%c1_102, %c0_103] : memref<88x80xf32, #tpu.memory_space<vmem>>, vector<39x80xf32>
    %c1_104 = arith.constant 1 : index
    %c0_105 = arith.constant 0 : index
    %c0_106 = arith.constant 0 : index
    %130 = vector.load %arg4[%c1_104, %c0_105, %c0_106] : memref<6x80x128xf32, #tpu.memory_space<vmem>>, vector<1x80x128xf32>
    %131 = vector.shape_cast %130 : vector<1x80x128xf32> to vector<80x128xf32>
    %cst_107 = arith.constant dense<0.000000e+00> : vector<39x128xf32>
    %132 = tpu.matmul %129, %131, %cst_107 {dimension_numbers = #tpu.dot_dimension_numbers<[1], [0], [0], [1], [0, 0, 1, 1], [], []>} : vector<39x80xf32>, vector<80x128xf32>, vector<39x128xf32> -> vector<39x128xf32>
    %133 = arith.addf %128, %132 : vector<39x128xf32>
    %c2_108 = arith.constant 2 : index
    %c0_109 = arith.constant 0 : index
    %134 = vector.load %arg16[%c2_108, %c0_109] : memref<88x80xf32, #tpu.memory_space<vmem>>, vector<39x80xf32>
    %c2_110 = arith.constant 2 : index
    %c0_111 = arith.constant 0 : index
    %c0_112 = arith.constant 0 : index
    %135 = vector.load %arg4[%c2_110, %c0_111, %c0_112] : memref<6x80x128xf32, #tpu.memory_space<vmem>>, vector<1x80x128xf32>
    %136 = vector.shape_cast %135 : vector<1x80x128xf32> to vector<80x128xf32>
    %cst_113 = arith.constant dense<0.000000e+00> : vector<39x128xf32>
    %137 = tpu.matmul %134, %136, %cst_113 {dimension_numbers = #tpu.dot_dimension_numbers<[1], [0], [0], [1], [0, 0, 1, 1], [], []>} : vector<39x80xf32>, vector<80x128xf32>, vector<39x128xf32> -> vector<39x128xf32>
    %138 = arith.addf %133, %137 : vector<39x128xf32>
    %c3_114 = arith.constant 3 : index
    %c0_115 = arith.constant 0 : index
    %139 = vector.load %arg16[%c3_114, %c0_115] : memref<88x80xf32, #tpu.memory_space<vmem>>, vector<39x80xf32>
    %c3_116 = arith.constant 3 : index
    %c0_117 = arith.constant 0 : index
    %c0_118 = arith.constant 0 : index
    %140 = vector.load %arg4[%c3_116, %c0_117, %c0_118] : memref<6x80x128xf32, #tpu.memory_space<vmem>>, vector<1x80x128xf32>
    %141 = vector.shape_cast %140 : vector<1x80x128xf32> to vector<80x128xf32>
    %cst_119 = arith.constant dense<0.000000e+00> : vector<39x128xf32>
    %142 = tpu.matmul %139, %141, %cst_119 {dimension_numbers = #tpu.dot_dimension_numbers<[1], [0], [0], [1], [0, 0, 1, 1], [], []>} : vector<39x80xf32>, vector<80x128xf32>, vector<39x128xf32> -> vector<39x128xf32>
    %143 = arith.addf %138, %142 : vector<39x128xf32>
    %c4_120 = arith.constant 4 : index
    %c0_121 = arith.constant 0 : index
    %144 = vector.load %arg16[%c4_120, %c0_121] : memref<88x80xf32, #tpu.memory_space<vmem>>, vector<39x80xf32>
    %c4_122 = arith.constant 4 : index
    %c0_123 = arith.constant 0 : index
    %c0_124 = arith.constant 0 : index
    %145 = vector.load %arg4[%c4_122, %c0_123, %c0_124] : memref<6x80x128xf32, #tpu.memory_space<vmem>>, vector<1x80x128xf32>
    %146 = vector.shape_cast %145 : vector<1x80x128xf32> to vector<80x128xf32>
    %cst_125 = arith.constant dense<0.000000e+00> : vector<39x128xf32>
    %147 = tpu.matmul %144, %146, %cst_125 {dimension_numbers = #tpu.dot_dimension_numbers<[1], [0], [0], [1], [0, 0, 1, 1], [], []>} : vector<39x80xf32>, vector<80x128xf32>, vector<39x128xf32> -> vector<39x128xf32>
    %148 = arith.addf %143, %147 : vector<39x128xf32>
    %c5_126 = arith.constant 5 : index
    %c0_127 = arith.constant 0 : index
    %149 = vector.load %arg16[%c5_126, %c0_127] : memref<88x80xf32, #tpu.memory_space<vmem>>, vector<39x80xf32>
    %c5_128 = arith.constant 5 : index
    %c0_129 = arith.constant 0 : index
    %c0_130 = arith.constant 0 : index
    %150 = vector.load %arg4[%c5_128, %c0_129, %c0_130] : memref<6x80x128xf32, #tpu.memory_space<vmem>>, vector<1x80x128xf32>
    %151 = vector.shape_cast %150 : vector<1x80x128xf32> to vector<80x128xf32>
    %cst_131 = arith.constant dense<0.000000e+00> : vector<39x128xf32>
    %152 = tpu.matmul %149, %151, %cst_131 {dimension_numbers = #tpu.dot_dimension_numbers<[1], [0], [0], [1], [0, 0, 1, 1], [], []>} : vector<39x80xf32>, vector<80x128xf32>, vector<39x128xf32> -> vector<39x128xf32>
    %153 = arith.addf %148, %152 : vector<39x128xf32>
    %cst_132 = arith.constant dense<0.000000e+00> : vector<20x128xf32>
    %154 = tpu.matmul %120, %153, %cst_132 {dimension_numbers = #tpu.dot_dimension_numbers<[1], [0], [0], [1], [0, 0, 1, 1], [], []>} : vector<20x39xf32>, vector<39x128xf32>, vector<20x128xf32> -> vector<20x128xf32>
    %c0_133 = arith.constant 0 : index
    %c0_134 = arith.constant 0 : index
    %155 = vector.load %arg17[%c0_133, %c0_134] : memref<40x128xf32, #tpu.memory_space<vmem>>, vector<20x128xf32>
    tpu.vector_store %arg17[%c0_133, %c0_134], %154 {strides = array<i32>} : memref<40x128xf32, #tpu.memory_space<vmem>>, vector<20x128xf32>,
    %cst_135 = arith.constant dense<0.000000e+00> : vector<128xf32>
    %156 = vector.multi_reduction <add>, %154, %cst_135 [0] : vector<20x128xf32> to vector<128xf32>
    %157 = vector.shape_cast %156 : vector<128xf32> to vector<1x128xf32>
    %158 = arith.addf %121, %157 : vector<1x128xf32>
    %159 = arith.mulf %154, %154 : vector<20x128xf32>
    %cst_136 = arith.constant dense<0.000000e+00> : vector<128xf32>
    %160 = vector.multi_reduction <add>, %159, %cst_136 [0] : vector<20x128xf32> to vector<128xf32>
    %161 = vector.shape_cast %160 : vector<128xf32> to vector<1x128xf32>
    %162 = arith.addf %122, %161 : vector<1x128xf32>
    %cst_137 = arith.constant 0.000000e+00 : f32
    %163 = vector.broadcast %cst_137 : f32 to vector<39x128xf32>
    %c44_138 = arith.constant 44 : index
    %c0_139 = arith.constant 0 : index
    %164 = vector.load %arg16[%c44_138, %c0_139] : memref<88x80xf32, #tpu.memory_space<vmem>>, vector<39x80xf32>
    %c0_140 = arith.constant 0 : index
    %c0_141 = arith.constant 0 : index
    %c0_142 = arith.constant 0 : index
    %165 = vector.load %arg4[%c0_140, %c0_141, %c0_142] : memref<6x80x128xf32, #tpu.memory_space<vmem>>, vector<1x80x128xf32>
    %166 = vector.shape_cast %165 : vector<1x80x128xf32> to vector<80x128xf32>
    %cst_143 = arith.constant dense<0.000000e+00> : vector<39x128xf32>
    %167 = tpu.matmul %164, %166, %cst_143 {dimension_numbers = #tpu.dot_dimension_numbers<[1], [0], [0], [1], [0, 0, 1, 1], [], []>} : vector<39x80xf32>, vector<80x128xf32>, vector<39x128xf32> -> vector<39x128xf32>
    %168 = arith.addf %163, %167 : vector<39x128xf32>
    %c45 = arith.constant 45 : index
    %c0_144 = arith.constant 0 : index
    %169 = vector.load %arg16[%c45, %c0_144] : memref<88x80xf32, #tpu.memory_space<vmem>>, vector<39x80xf32>
    %c1_145 = arith.constant 1 : index
    %c0_146 = arith.constant 0 : index
    %c0_147 = arith.constant 0 : index
    %170 = vector.load %arg4[%c1_145, %c0_146, %c0_147] : memref<6x80x128xf32, #tpu.memory_space<vmem>>, vector<1x80x128xf32>
    %171 = vector.shape_cast %170 : vector<1x80x128xf32> to vector<80x128xf32>
    %cst_148 = arith.constant dense<0.000000e+00> : vector<39x128xf32>
    %172 = tpu.matmul %169, %171, %cst_148 {dimension_numbers = #tpu.dot_dimension_numbers<[1], [0], [0], [1], [0, 0, 1, 1], [], []>} : vector<39x80xf32>, vector<80x128xf32>, vector<39x128xf32> -> vector<39x128xf32>
    %173 = arith.addf %168, %172 : vector<39x128xf32>
    %c46 = arith.constant 46 : index
    %c0_149 = arith.constant 0 : index
    %174 = vector.load %arg16[%c46, %c0_149] : memref<88x80xf32, #tpu.memory_space<vmem>>, vector<39x80xf32>
    %c2_150 = arith.constant 2 : index
    %c0_151 = arith.constant 0 : index
    %c0_152 = arith.constant 0 : index
    %175 = vector.load %arg4[%c2_150, %c0_151, %c0_152] : memref<6x80x128xf32, #tpu.memory_space<vmem>>, vector<1x80x128xf32>
    %176 = vector.shape_cast %175 : vector<1x80x128xf32> to vector<80x128xf32>
    %cst_153 = arith.constant dense<0.000000e+00> : vector<39x128xf32>
    %177 = tpu.matmul %174, %176, %cst_153 {dimension_numbers = #tpu.dot_dimension_numbers<[1], [0], [0], [1], [0, 0, 1, 1], [], []>} : vector<39x80xf32>, vector<80x128xf32>, vector<39x128xf32> -> vector<39x128xf32>
    %178 = arith.addf %173, %177 : vector<39x128xf32>
    %c47 = arith.constant 47 : index
    %c0_154 = arith.constant 0 : index
    %179 = vector.load %arg16[%c47, %c0_154] : memref<88x80xf32, #tpu.memory_space<vmem>>, vector<39x80xf32>
    %c3_155 = arith.constant 3 : index
    %c0_156 = arith.constant 0 : index
    %c0_157 = arith.constant 0 : index
    %180 = vector.load %arg4[%c3_155, %c0_156, %c0_157] : memref<6x80x128xf32, #tpu.memory_space<vmem>>, vector<1x80x128xf32>
    %181 = vector.shape_cast %180 : vector<1x80x128xf32> to vector<80x128xf32>
    %cst_158 = arith.constant dense<0.000000e+00> : vector<39x128xf32>
    %182 = tpu.matmul %179, %181, %cst_158 {dimension_numbers = #tpu.dot_dimension_numbers<[1], [0], [0], [1], [0, 0, 1, 1], [], []>} : vector<39x80xf32>, vector<80x128xf32>, vector<39x128xf32> -> vector<39x128xf32>
    %183 = arith.addf %178, %182 : vector<39x128xf32>
    %c48 = arith.constant 48 : index
    %c0_159 = arith.constant 0 : index
    %184 = vector.load %arg16[%c48, %c0_159] : memref<88x80xf32, #tpu.memory_space<vmem>>, vector<39x80xf32>
    %c4_160 = arith.constant 4 : index
    %c0_161 = arith.constant 0 : index
    %c0_162 = arith.constant 0 : index
    %185 = vector.load %arg4[%c4_160, %c0_161, %c0_162] : memref<6x80x128xf32, #tpu.memory_space<vmem>>, vector<1x80x128xf32>
    %186 = vector.shape_cast %185 : vector<1x80x128xf32> to vector<80x128xf32>
    %cst_163 = arith.constant dense<0.000000e+00> : vector<39x128xf32>
    %187 = tpu.matmul %184, %186, %cst_163 {dimension_numbers = #tpu.dot_dimension_numbers<[1], [0], [0], [1], [0, 0, 1, 1], [], []>} : vector<39x80xf32>, vector<80x128xf32>, vector<39x128xf32> -> vector<39x128xf32>
    %188 = arith.addf %183, %187 : vector<39x128xf32>
    %c49 = arith.constant 49 : index
    %c0_164 = arith.constant 0 : index
    %189 = vector.load %arg16[%c49, %c0_164] : memref<88x80xf32, #tpu.memory_space<vmem>>, vector<39x80xf32>
    %c5_165 = arith.constant 5 : index
    %c0_166 = arith.constant 0 : index
    %c0_167 = arith.constant 0 : index
    %190 = vector.load %arg4[%c5_165, %c0_166, %c0_167] : memref<6x80x128xf32, #tpu.memory_space<vmem>>, vector<1x80x128xf32>
    %191 = vector.shape_cast %190 : vector<1x80x128xf32> to vector<80x128xf32>
    %cst_168 = arith.constant dense<0.000000e+00> : vector<39x128xf32>
    %192 = tpu.matmul %189, %191, %cst_168 {dimension_numbers = #tpu.dot_dimension_numbers<[1], [0], [0], [1], [0, 0, 1, 1], [], []>} : vector<39x80xf32>, vector<80x128xf32>, vector<39x128xf32> -> vector<39x128xf32>
    %193 = arith.addf %188, %192 : vector<39x128xf32>
    %cst_169 = arith.constant dense<0.000000e+00> : vector<20x128xf32>
    %194 = tpu.matmul %120, %193, %cst_169 {dimension_numbers = #tpu.dot_dimension_numbers<[1], [0], [0], [1], [0, 0, 1, 1], [], []>} : vector<20x39xf32>, vector<39x128xf32>, vector<20x128xf32> -> vector<20x128xf32>
    %c20 = arith.constant 20 : index
    %c0_170 = arith.constant 0 : index
    %195 = vector.load %arg17[%c20, %c0_170] : memref<40x128xf32, #tpu.memory_space<vmem>>, vector<20x128xf32>
    tpu.vector_store %arg17[%c20, %c0_170], %194 {strides = array<i32>} : memref<40x128xf32, #tpu.memory_space<vmem>>, vector<20x128xf32>,
    %cst_171 = arith.constant dense<0.000000e+00> : vector<128xf32>
    %196 = vector.multi_reduction <add>, %194, %cst_171 [0] : vector<20x128xf32> to vector<128xf32>
    %197 = vector.shape_cast %196 : vector<128xf32> to vector<1x128xf32>
    %198 = arith.addf %158, %197 : vector<1x128xf32>
    %199 = arith.mulf %194, %194 : vector<20x128xf32>
    %cst_172 = arith.constant dense<0.000000e+00> : vector<128xf32>
    %200 = vector.multi_reduction <add>, %199, %cst_172 [0] : vector<20x128xf32> to vector<128xf32>
    %201 = vector.shape_cast %200 : vector<128xf32> to vector<1x128xf32>
    %202 = arith.addf %162, %201 : vector<1x128xf32>
    %c0_173 = arith.constant 0 : index
    %c0_174 = arith.constant 0 : index
    %203 = vector.load %arg6[%c0_173, %c0_174] : memref<128x128xf32, #tpu.memory_space<vmem>>, vector<128x128xf32>
    %cst_175 = arith.constant dense<0.000000e+00> : vector<1x128xf32>
    %204 = tpu.matmul %198, %203, %cst_175 {dimension_numbers = #tpu.dot_dimension_numbers<[1], [0], [0], [1], [0, 0, 1, 1], [], []>} : vector<1x128xf32>, vector<128x128xf32>, vector<1x128xf32> -> vector<1x128xf32>
    %cst_176 = arith.constant dense<0.000000e+00> : vector<1x128xf32>
    %205 = tpu.matmul %202, %203, %cst_176 {dimension_numbers = #tpu.dot_dimension_numbers<[1], [0], [0], [1], [0, 0, 1, 1], [], []>} : vector<1x128xf32>, vector<128x128xf32>, vector<1x128xf32> -> vector<1x128xf32>
    %cst_177 = arith.constant 6.250000e-03 : f32
    %206 = vector.broadcast %cst_177 : f32 to vector<1x128xf32>
    %207 = arith.mulf %204, %206 : vector<1x128xf32>
    %cst_178 = arith.constant 6.250000e-03 : f32
    %208 = vector.broadcast %cst_178 : f32 to vector<1x128xf32>
    %209 = arith.mulf %205, %208 : vector<1x128xf32>
    %210 = arith.mulf %207, %207 : vector<1x128xf32>
    %211 = arith.subf %209, %210 : vector<1x128xf32>
    %c0_179 = arith.constant 0 : index
    %c0_180 = arith.constant 0 : index
    %212 = vector.load %arg5[%c0_179, %c0_180] : memref<2x128xf32, #tpu.memory_space<vmem>>, vector<2x128xf32>
    %213 = vector.extract_strided_slice %212 {offsets = [0, 0], sizes = [1, 128], strides = [1, 1]} : vector<2x128xf32> to vector<1x128xf32>
    %cst_181 = arith.constant 9.99999974E-6 : f32
    %214 = vector.broadcast %cst_181 : f32 to vector<1x128xf32>
    %215 = arith.addf %211, %214 : vector<1x128xf32>
    %216 = math.rsqrt %215 : vector<1x128xf32>
    %217 = arith.mulf %213, %216 : vector<1x128xf32>
    %218 = vector.extract_strided_slice %212 {offsets = [1, 0], sizes = [1, 128], strides = [1, 1]} : vector<2x128xf32> to vector<1x128xf32>
    %219 = arith.mulf %207, %217 : vector<1x128xf32>
    %220 = arith.subf %218, %219 : vector<1x128xf32>
    %c0_182 = arith.constant 0 : index
    %c0_183 = arith.constant 0 : index
    %221 = vector.load %arg17[%c0_182, %c0_183] : memref<40x128xf32, #tpu.memory_space<vmem>>, vector<40x128xf32>
    %222 = vector.broadcast %217 : vector<1x128xf32> to vector<40x128xf32>
    %223 = arith.mulf %221, %222 : vector<40x128xf32>
    %224 = vector.broadcast %220 : vector<1x128xf32> to vector<40x128xf32>
    %225 = arith.addf %223, %224 : vector<40x128xf32>
    %c0_184 = arith.constant 0 : index
    %c0_185 = arith.constant 0 : index
    %226 = vector.load %arg17[%c0_184, %c0_185] : memref<40x128xf32, #tpu.memory_space<vmem>>, vector<40x128xf32>
    tpu.vector_store %arg17[%c0_184, %c0_185], %225 {strides = array<i32>} : memref<40x128xf32, #tpu.memory_space<vmem>>, vector<40x128xf32>,
    %227 = tpu.iota {dimensions = array<i32: 1>} : vector<8x15xi32>
    %228 = tpu.iota {dimensions = array<i32: 0>} : vector<8x15xi32>
    %c2_i32_186 = arith.constant 2 : i32
    %229 = vector.broadcast %c2_i32_186 : i32 to vector<8x15xi32>
    %230 = arith.muli %229, %228 : vector<8x15xi32>
    %231 = arith.cmpi eq, %227, %230 : vector<8x15xi32>
    %232 = arith.extui %231 : vector<8x15xi1> to vector<8x15xi32>
    %233 = arith.sitofp %232 : vector<8x15xi32> to vector<8x15xf32>
    %cst_187 = arith.constant 0.000000e+00 : f32
    %234 = vector.broadcast %cst_187 : f32 to vector<1x192xf32>
    %cst_188 = arith.constant 0.000000e+00 : f32
    %235 = vector.broadcast %cst_188 : f32 to vector<1x192xf32>
    %cst_189 = arith.constant 0.000000e+00 : f32
    %236 = vector.broadcast %cst_189 : f32 to vector<15x192xf32>
    %c0_190 = arith.constant 0 : index
    %c0_191 = arith.constant 0 : index
    %237 = vector.load %arg17[%c0_190, %c0_191] : memref<40x128xf32, #tpu.memory_space<vmem>>, vector<15x128xf32>
    %c0_192 = arith.constant 0 : index
    %c0_193 = arith.constant 0 : index
    %c0_194 = arith.constant 0 : index
    %238 = vector.load %arg7[%c0_192, %c0_193, %c0_194] : memref<6x128x192xf32, #tpu.memory_space<vmem>>, vector<1x128x192xf32>
    %239 = vector.shape_cast %238 : vector<1x128x192xf32> to vector<128x192xf32>
    %cst_195 = arith.constant dense<0.000000e+00> : vector<15x192xf32>
    %240 = tpu.matmul %237, %239, %cst_195 {dimension_numbers = #tpu.dot_dimension_numbers<[1], [0], [0], [1], [0, 0, 1, 1], [], []>} : vector<15x128xf32>, vector<128x192xf32>, vector<15x192xf32> -> vector<15x192xf32>
    %241 = arith.addf %236, %240 : vector<15x192xf32>
    %c1_196 = arith.constant 1 : index
    %c0_197 = arith.constant 0 : index
    %242 = vector.load %arg17[%c1_196, %c0_197] : memref<40x128xf32, #tpu.memory_space<vmem>>, vector<15x128xf32>
    %c1_198 = arith.constant 1 : index
    %c0_199 = arith.constant 0 : index
    %c0_200 = arith.constant 0 : index
    %243 = vector.load %arg7[%c1_198, %c0_199, %c0_200] : memref<6x128x192xf32, #tpu.memory_space<vmem>>, vector<1x128x192xf32>
    %244 = vector.shape_cast %243 : vector<1x128x192xf32> to vector<128x192xf32>
    %cst_201 = arith.constant dense<0.000000e+00> : vector<15x192xf32>
    %245 = tpu.matmul %242, %244, %cst_201 {dimension_numbers = #tpu.dot_dimension_numbers<[1], [0], [0], [1], [0, 0, 1, 1], [], []>} : vector<15x128xf32>, vector<128x192xf32>, vector<15x192xf32> -> vector<15x192xf32>
    %246 = arith.addf %241, %245 : vector<15x192xf32>
    %c2_202 = arith.constant 2 : index
    %c0_203 = arith.constant 0 : index
    %247 = vector.load %arg17[%c2_202, %c0_203] : memref<40x128xf32, #tpu.memory_space<vmem>>, vector<15x128xf32>
    %c2_204 = arith.constant 2 : index
    %c0_205 = arith.constant 0 : index
    %c0_206 = arith.constant 0 : index
    %248 = vector.load %arg7[%c2_204, %c0_205, %c0_206] : memref<6x128x192xf32, #tpu.memory_space<vmem>>, vector<1x128x192xf32>
    %249 = vector.shape_cast %248 : vector<1x128x192xf32> to vector<128x192xf32>
    %cst_207 = arith.constant dense<0.000000e+00> : vector<15x192xf32>
    %250 = tpu.matmul %247, %249, %cst_207 {dimension_numbers = #tpu.dot_dimension_numbers<[1], [0], [0], [1], [0, 0, 1, 1], [], []>} : vector<15x128xf32>, vector<128x192xf32>, vector<15x192xf32> -> vector<15x192xf32>
    %251 = arith.addf %246, %250 : vector<15x192xf32>
    %c3_208 = arith.constant 3 : index
    %c0_209 = arith.constant 0 : index
    %252 = vector.load %arg17[%c3_208, %c0_209] : memref<40x128xf32, #tpu.memory_space<vmem>>, vector<15x128xf32>
    %c3_210 = arith.constant 3 : index
    %c0_211 = arith.constant 0 : index
    %c0_212 = arith.constant 0 : index
    %253 = vector.load %arg7[%c3_210, %c0_211, %c0_212] : memref<6x128x192xf32, #tpu.memory_space<vmem>>, vector<1x128x192xf32>
    %254 = vector.shape_cast %253 : vector<1x128x192xf32> to vector<128x192xf32>
    %cst_213 = arith.constant dense<0.000000e+00> : vector<15x192xf32>
    %255 = tpu.matmul %252, %254, %cst_213 {dimension_numbers = #tpu.dot_dimension_numbers<[1], [0], [0], [1], [0, 0, 1, 1], [], []>} : vector<15x128xf32>, vector<128x192xf32>, vector<15x192xf32> -> vector<15x192xf32>
    %256 = arith.addf %251, %255 : vector<15x192xf32>
    %c4_214 = arith.constant 4 : index
    %c0_215 = arith.constant 0 : index
    %257 = vector.load %arg17[%c4_214, %c0_215] : memref<40x128xf32, #tpu.memory_space<vmem>>, vector<15x128xf32>
    %c4_216 = arith.constant 4 : index
    %c0_217 = arith.constant 0 : index
    %c0_218 = arith.constant 0 : index
    %258 = vector.load %arg7[%c4_216, %c0_217, %c0_218] : memref<6x128x192xf32, #tpu.memory_space<vmem>>, vector<1x128x192xf32>
    %259 = vector.shape_cast %258 : vector<1x128x192xf32> to vector<128x192xf32>
    %cst_219 = arith.constant dense<0.000000e+00> : vector<15x192xf32>
    %260 = tpu.matmul %257, %259, %cst_219 {dimension_numbers = #tpu.dot_dimension_numbers<[1], [0], [0], [1], [0, 0, 1, 1], [], []>} : vector<15x128xf32>, vector<128x192xf32>, vector<15x192xf32> -> vector<15x192xf32>
    %261 = arith.addf %256, %260 : vector<15x192xf32>
    %c5_220 = arith.constant 5 : index
    %c0_221 = arith.constant 0 : index
    %262 = vector.load %arg17[%c5_220, %c0_221] : memref<40x128xf32, #tpu.memory_space<vmem>>, vector<15x128xf32>
    %c5_222 = arith.constant 5 : index
    %c0_223 = arith.constant 0 : index
    %c0_224 = arith.constant 0 : index
    %263 = vector.load %arg7[%c5_222, %c0_223, %c0_224] : memref<6x128x192xf32, #tpu.memory_space<vmem>>, vector<1x128x192xf32>
    %264 = vector.shape_cast %263 : vector<1x128x192xf32> to vector<128x192xf32>
    %cst_225 = arith.constant dense<0.000000e+00> : vector<15x192xf32>
    %265 = tpu.matmul %262, %264, %cst_225 {dimension_numbers = #tpu.dot_dimension_numbers<[1], [0], [0], [1], [0, 0, 1, 1], [], []>} : vector<15x128xf32>, vector<128x192xf32>, vector<15x192xf32> -> vector<15x192xf32>
    %266 = arith.addf %261, %265 : vector<15x192xf32>
    %cst_226 = arith.constant dense<0.000000e+00> : vector<8x192xf32>
    %267 = tpu.matmul %233, %266, %cst_226 {dimension_numbers = #tpu.dot_dimension_numbers<[1], [0], [0], [1], [0, 0, 1, 1], [], []>} : vector<8x15xf32>, vector<15x192xf32>, vector<8x192xf32> -> vector<8x192xf32>
    %c0_227 = arith.constant 0 : index
    %c0_228 = arith.constant 0 : index
    %268 = vector.load %arg18[%c0_227, %c0_228] : memref<16x192xf32, #tpu.memory_space<vmem>>, vector<8x192xf32>
    tpu.vector_store %arg18[%c0_227, %c0_228], %267 {strides = array<i32>} : memref<16x192xf32, #tpu.memory_space<vmem>>, vector<8x192xf32>,
    %cst_229 = arith.constant dense<0.000000e+00> : vector<192xf32>
    %269 = vector.multi_reduction <add>, %267, %cst_229 [0] : vector<8x192xf32> to vector<192xf32>
    %270 = vector.shape_cast %269 : vector<192xf32> to vector<1x192xf32>
    %271 = arith.addf %234, %270 : vector<1x192xf32>
    %272 = arith.mulf %267, %267 : vector<8x192xf32>
    %cst_230 = arith.constant dense<0.000000e+00> : vector<192xf32>
    %273 = vector.multi_reduction <add>, %272, %cst_230 [0] : vector<8x192xf32> to vector<192xf32>
    %274 = vector.shape_cast %273 : vector<192xf32> to vector<1x192xf32>
    %275 = arith.addf %235, %274 : vector<1x192xf32>
    %cst_231 = arith.constant 0.000000e+00 : f32
    %276 = vector.broadcast %cst_231 : f32 to vector<15x192xf32>
    %c20_232 = arith.constant 20 : index
    %c0_233 = arith.constant 0 : index
    %277 = vector.load %arg17[%c20_232, %c0_233] : memref<40x128xf32, #tpu.memory_space<vmem>>, vector<15x128xf32>
    %c0_234 = arith.constant 0 : index
    %c0_235 = arith.constant 0 : index
    %c0_236 = arith.constant 0 : index
    %278 = vector.load %arg7[%c0_234, %c0_235, %c0_236] : memref<6x128x192xf32, #tpu.memory_space<vmem>>, vector<1x128x192xf32>
    %279 = vector.shape_cast %278 : vector<1x128x192xf32> to vector<128x192xf32>
    %cst_237 = arith.constant dense<0.000000e+00> : vector<15x192xf32>
    %280 = tpu.matmul %277, %279, %cst_237 {dimension_numbers = #tpu.dot_dimension_numbers<[1], [0], [0], [1], [0, 0, 1, 1], [], []>} : vector<15x128xf32>, vector<128x192xf32>, vector<15x192xf32> -> vector<15x192xf32>
    %281 = arith.addf %276, %280 : vector<15x192xf32>
    %c21 = arith.constant 21 : index
    %c0_238 = arith.constant 0 : index
    %282 = vector.load %arg17[%c21, %c0_238] : memref<40x128xf32, #tpu.memory_space<vmem>>, vector<15x128xf32>
    %c1_239 = arith.constant 1 : index
    %c0_240 = arith.constant 0 : index
    %c0_241 = arith.constant 0 : index
    %283 = vector.load %arg7[%c1_239, %c0_240, %c0_241] : memref<6x128x192xf32, #tpu.memory_space<vmem>>, vector<1x128x192xf32>
    %284 = vector.shape_cast %283 : vector<1x128x192xf32> to vector<128x192xf32>
    %cst_242 = arith.constant dense<0.000000e+00> : vector<15x192xf32>
    %285 = tpu.matmul %282, %284, %cst_242 {dimension_numbers = #tpu.dot_dimension_numbers<[1], [0], [0], [1], [0, 0, 1, 1], [], []>} : vector<15x128xf32>, vector<128x192xf32>, vector<15x192xf32> -> vector<15x192xf32>
    %286 = arith.addf %281, %285 : vector<15x192xf32>
    %c22 = arith.constant 22 : index
    %c0_243 = arith.constant 0 : index
    %287 = vector.load %arg17[%c22, %c0_243] : memref<40x128xf32, #tpu.memory_space<vmem>>, vector<15x128xf32>
    %c2_244 = arith.constant 2 : index
    %c0_245 = arith.constant 0 : index
    %c0_246 = arith.constant 0 : index
    %288 = vector.load %arg7[%c2_244, %c0_245, %c0_246] : memref<6x128x192xf32, #tpu.memory_space<vmem>>, vector<1x128x192xf32>
    %289 = vector.shape_cast %288 : vector<1x128x192xf32> to vector<128x192xf32>
    %cst_247 = arith.constant dense<0.000000e+00> : vector<15x192xf32>
    %290 = tpu.matmul %287, %289, %cst_247 {dimension_numbers = #tpu.dot_dimension_numbers<[1], [0], [0], [1], [0, 0, 1, 1], [], []>} : vector<15x128xf32>, vector<128x192xf32>, vector<15x192xf32> -> vector<15x192xf32>
    %291 = arith.addf %286, %290 : vector<15x192xf32>
    %c23 = arith.constant 23 : index
    %c0_248 = arith.constant 0 : index
    %292 = vector.load %arg17[%c23, %c0_248] : memref<40x128xf32, #tpu.memory_space<vmem>>, vector<15x128xf32>
    %c3_249 = arith.constant 3 : index
    %c0_250 = arith.constant 0 : index
    %c0_251 = arith.constant 0 : index
    %293 = vector.load %arg7[%c3_249, %c0_250, %c0_251] : memref<6x128x192xf32, #tpu.memory_space<vmem>>, vector<1x128x192xf32>
    %294 = vector.shape_cast %293 : vector<1x128x192xf32> to vector<128x192xf32>
    %cst_252 = arith.constant dense<0.000000e+00> : vector<15x192xf32>
    %295 = tpu.matmul %292, %294, %cst_252 {dimension_numbers = #tpu.dot_dimension_numbers<[1], [0], [0], [1], [0, 0, 1, 1], [], []>} : vector<15x128xf32>, vector<128x192xf32>, vector<15x192xf32> -> vector<15x192xf32>
    %296 = arith.addf %291, %295 : vector<15x192xf32>
    %c24 = arith.constant 24 : index
    %c0_253 = arith.constant 0 : index
    %297 = vector.load %arg17[%c24, %c0_253] : memref<40x128xf32, #tpu.memory_space<vmem>>, vector<15x128xf32>
    %c4_254 = arith.constant 4 : index
    %c0_255 = arith.constant 0 : index
    %c0_256 = arith.constant 0 : index
    %298 = vector.load %arg7[%c4_254, %c0_255, %c0_256] : memref<6x128x192xf32, #tpu.memory_space<vmem>>, vector<1x128x192xf32>
    %299 = vector.shape_cast %298 : vector<1x128x192xf32> to vector<128x192xf32>
    %cst_257 = arith.constant dense<0.000000e+00> : vector<15x192xf32>
    %300 = tpu.matmul %297, %299, %cst_257 {dimension_numbers = #tpu.dot_dimension_numbers<[1], [0], [0], [1], [0, 0, 1, 1], [], []>} : vector<15x128xf32>, vector<128x192xf32>, vector<15x192xf32> -> vector<15x192xf32>
    %301 = arith.addf %296, %300 : vector<15x192xf32>
    %c25 = arith.constant 25 : index
    %c0_258 = arith.constant 0 : index
    %302 = vector.load %arg17[%c25, %c0_258] : memref<40x128xf32, #tpu.memory_space<vmem>>, vector<15x128xf32>
    %c5_259 = arith.constant 5 : index
    %c0_260 = arith.constant 0 : index
    %c0_261 = arith.constant 0 : index
    %303 = vector.load %arg7[%c5_259, %c0_260, %c0_261] : memref<6x128x192xf32, #tpu.memory_space<vmem>>, vector<1x128x192xf32>
    %304 = vector.shape_cast %303 : vector<1x128x192xf32> to vector<128x192xf32>
    %cst_262 = arith.constant dense<0.000000e+00> : vector<15x192xf32>
    %305 = tpu.matmul %302, %304, %cst_262 {dimension_numbers = #tpu.dot_dimension_numbers<[1], [0], [0], [1], [0, 0, 1, 1], [], []>} : vector<15x128xf32>, vector<128x192xf32>, vector<15x192xf32> -> vector<15x192xf32>
    %306 = arith.addf %301, %305 : vector<15x192xf32>
    %cst_263 = arith.constant dense<0.000000e+00> : vector<8x192xf32>
    %307 = tpu.matmul %233, %306, %cst_263 {dimension_numbers = #tpu.dot_dimension_numbers<[1], [0], [0], [1], [0, 0, 1, 1], [], []>} : vector<8x15xf32>, vector<15x192xf32>, vector<8x192xf32> -> vector<8x192xf32>
    %c8 = arith.constant 8 : index
    %c0_264 = arith.constant 0 : index
    %308 = vector.load %arg18[%c8, %c0_264] : memref<16x192xf32, #tpu.memory_space<vmem>>, vector<8x192xf32>
    tpu.vector_store %arg18[%c8, %c0_264], %307 {strides = array<i32>} : memref<16x192xf32, #tpu.memory_space<vmem>>, vector<8x192xf32>,
    %cst_265 = arith.constant dense<0.000000e+00> : vector<192xf32>
    %309 = vector.multi_reduction <add>, %307, %cst_265 [0] : vector<8x192xf32> to vector<192xf32>
    %310 = vector.shape_cast %309 : vector<192xf32> to vector<1x192xf32>
    %311 = arith.addf %271, %310 : vector<1x192xf32>
    %312 = arith.mulf %307, %307 : vector<8x192xf32>
    %cst_266 = arith.constant dense<0.000000e+00> : vector<192xf32>
    %313 = vector.multi_reduction <add>, %312, %cst_266 [0] : vector<8x192xf32> to vector<192xf32>
    %314 = vector.shape_cast %313 : vector<192xf32> to vector<1x192xf32>
    %315 = arith.addf %275, %314 : vector<1x192xf32>
    %c0_267 = arith.constant 0 : index
    %c0_268 = arith.constant 0 : index
    %316 = vector.load %arg9[%c0_267, %c0_268] : memref<192x192xf32, #tpu.memory_space<vmem>>, vector<192x192xf32>
    %cst_269 = arith.constant dense<0.000000e+00> : vector<1x192xf32>
    %317 = tpu.matmul %311, %316, %cst_269 {dimension_numbers = #tpu.dot_dimension_numbers<[1], [0], [0], [1], [0, 0, 1, 1], [], []>} : vector<1x192xf32>, vector<192x192xf32>, vector<1x192xf32> -> vector<1x192xf32>
    %cst_270 = arith.constant dense<0.000000e+00> : vector<1x192xf32>
    %318 = tpu.matmul %315, %316, %cst_270 {dimension_numbers = #tpu.dot_dimension_numbers<[1], [0], [0], [1], [0, 0, 1, 1], [], []>} : vector<1x192xf32>, vector<192x192xf32>, vector<1x192xf32> -> vector<1x192xf32>
    %cst_271 = arith.constant 0.020833334 : f32
    %319 = vector.broadcast %cst_271 : f32 to vector<1x192xf32>
    %320 = arith.mulf %317, %319 : vector<1x192xf32>
    %cst_272 = arith.constant 0.020833334 : f32
    %321 = vector.broadcast %cst_272 : f32 to vector<1x192xf32>
    %322 = arith.mulf %318, %321 : vector<1x192xf32>
    %323 = arith.mulf %320, %320 : vector<1x192xf32>
    %324 = arith.subf %322, %323 : vector<1x192xf32>
    %c0_273 = arith.constant 0 : index
    %c0_274 = arith.constant 0 : index
    %325 = vector.load %arg8[%c0_273, %c0_274] : memref<2x192xf32, #tpu.memory_space<vmem>>, vector<2x192xf32>
    %326 = vector.extract_strided_slice %325 {offsets = [0, 0], sizes = [1, 192], strides = [1, 1]} : vector<2x192xf32> to vector<1x192xf32>
    %cst_275 = arith.constant 9.99999974E-6 : f32
    %327 = vector.broadcast %cst_275 : f32 to vector<1x192xf32>
    %328 = arith.addf %324, %327 : vector<1x192xf32>
    %329 = math.rsqrt %328 : vector<1x192xf32>
    %330 = arith.mulf %326, %329 : vector<1x192xf32>
    %331 = vector.extract_strided_slice %325 {offsets = [1, 0], sizes = [1, 192], strides = [1, 1]} : vector<2x192xf32> to vector<1x192xf32>
    %332 = arith.mulf %320, %330 : vector<1x192xf32>
    %333 = arith.subf %331, %332 : vector<1x192xf32>
    %c0_276 = arith.constant 0 : index
    %c0_277 = arith.constant 0 : index
    %334 = vector.load %arg18[%c0_276, %c0_277] : memref<16x192xf32, #tpu.memory_space<vmem>>, vector<16x192xf32>
    %335 = vector.broadcast %330 : vector<1x192xf32> to vector<16x192xf32>
    %336 = arith.mulf %334, %335 : vector<16x192xf32>
    %337 = vector.broadcast %333 : vector<1x192xf32> to vector<16x192xf32>
    %338 = arith.addf %336, %337 : vector<16x192xf32>
    %c0_278 = arith.constant 0 : index
    %c0_279 = arith.constant 0 : index
    %339 = vector.load %arg18[%c0_278, %c0_279] : memref<16x192xf32, #tpu.memory_space<vmem>>, vector<16x192xf32>
    tpu.vector_store %arg18[%c0_278, %c0_279], %338 {strides = array<i32>} : memref<16x192xf32, #tpu.memory_space<vmem>>, vector<16x192xf32>,
    %340 = tpu.iota {dimensions = array<i32: 1>} : vector<2x3xi32>
    %341 = tpu.iota {dimensions = array<i32: 0>} : vector<2x3xi32>
    %c2_i32_280 = arith.constant 2 : i32
    %342 = vector.broadcast %c2_i32_280 : i32 to vector<2x3xi32>
    %343 = arith.muli %342, %341 : vector<2x3xi32>
    %344 = arith.cmpi eq, %340, %343 : vector<2x3xi32>
    %345 = arith.extui %344 : vector<2x3xi1> to vector<2x3xi32>
    %346 = arith.sitofp %345 : vector<2x3xi32> to vector<2x3xf32>
    %cst_281 = arith.constant 0.000000e+00 : f32
    %347 = vector.broadcast %cst_281 : f32 to vector<1x128xf32>
    %cst_282 = arith.constant 0.000000e+00 : f32
    %348 = vector.broadcast %cst_282 : f32 to vector<1x128xf32>
    %cst_283 = arith.constant 0.000000e+00 : f32
    %349 = vector.broadcast %cst_283 : f32 to vector<3x128xf32>
    %c0_284 = arith.constant 0 : index
    %c0_285 = arith.constant 0 : index
    %350 = vector.load %arg18[%c0_284, %c0_285] : memref<16x192xf32, #tpu.memory_space<vmem>>, vector<3x192xf32>
    %c0_286 = arith.constant 0 : index
    %c0_287 = arith.constant 0 : index
    %c0_288 = arith.constant 0 : index
    %351 = vector.load %arg10[%c0_286, %c0_287, %c0_288] : memref<6x192x128xf32, #tpu.memory_space<vmem>>, vector<1x192x128xf32>
    %352 = vector.shape_cast %351 : vector<1x192x128xf32> to vector<192x128xf32>
    %cst_289 = arith.constant dense<0.000000e+00> : vector<3x128xf32>
    %353 = tpu.matmul %350, %352, %cst_289 {dimension_numbers = #tpu.dot_dimension_numbers<[1], [0], [0], [1], [0, 0, 1, 1], [], []>} : vector<3x192xf32>, vector<192x128xf32>, vector<3x128xf32> -> vector<3x128xf32>
    %354 = arith.addf %349, %353 : vector<3x128xf32>
    %c1_290 = arith.constant 1 : index
    %c0_291 = arith.constant 0 : index
    %355 = vector.load %arg18[%c1_290, %c0_291] : memref<16x192xf32, #tpu.memory_space<vmem>>, vector<3x192xf32>
    %c1_292 = arith.constant 1 : index
    %c0_293 = arith.constant 0 : index
    %c0_294 = arith.constant 0 : index
    %356 = vector.load %arg10[%c1_292, %c0_293, %c0_294] : memref<6x192x128xf32, #tpu.memory_space<vmem>>, vector<1x192x128xf32>
    %357 = vector.shape_cast %356 : vector<1x192x128xf32> to vector<192x128xf32>
    %cst_295 = arith.constant dense<0.000000e+00> : vector<3x128xf32>
    %358 = tpu.matmul %355, %357, %cst_295 {dimension_numbers = #tpu.dot_dimension_numbers<[1], [0], [0], [1], [0, 0, 1, 1], [], []>} : vector<3x192xf32>, vector<192x128xf32>, vector<3x128xf32> -> vector<3x128xf32>
    %359 = arith.addf %354, %358 : vector<3x128xf32>
    %c2_296 = arith.constant 2 : index
    %c0_297 = arith.constant 0 : index
    %360 = vector.load %arg18[%c2_296, %c0_297] : memref<16x192xf32, #tpu.memory_space<vmem>>, vector<3x192xf32>
    %c2_298 = arith.constant 2 : index
    %c0_299 = arith.constant 0 : index
    %c0_300 = arith.constant 0 : index
    %361 = vector.load %arg10[%c2_298, %c0_299, %c0_300] : memref<6x192x128xf32, #tpu.memory_space<vmem>>, vector<1x192x128xf32>
    %362 = vector.shape_cast %361 : vector<1x192x128xf32> to vector<192x128xf32>
    %cst_301 = arith.constant dense<0.000000e+00> : vector<3x128xf32>
    %363 = tpu.matmul %360, %362, %cst_301 {dimension_numbers = #tpu.dot_dimension_numbers<[1], [0], [0], [1], [0, 0, 1, 1], [], []>} : vector<3x192xf32>, vector<192x128xf32>, vector<3x128xf32> -> vector<3x128xf32>
    %364 = arith.addf %359, %363 : vector<3x128xf32>
    %c3_302 = arith.constant 3 : index
    %c0_303 = arith.constant 0 : index
    %365 = vector.load %arg18[%c3_302, %c0_303] : memref<16x192xf32, #tpu.memory_space<vmem>>, vector<3x192xf32>
    %c3_304 = arith.constant 3 : index
    %c0_305 = arith.constant 0 : index
    %c0_306 = arith.constant 0 : index
    %366 = vector.load %arg10[%c3_304, %c0_305, %c0_306] : memref<6x192x128xf32, #tpu.memory_space<vmem>>, vector<1x192x128xf32>
    %367 = vector.shape_cast %366 : vector<1x192x128xf32> to vector<192x128xf32>
    %cst_307 = arith.constant dense<0.000000e+00> : vector<3x128xf32>
    %368 = tpu.matmul %365, %367, %cst_307 {dimension_numbers = #tpu.dot_dimension_numbers<[1], [0], [0], [1], [0, 0, 1, 1], [], []>} : vector<3x192xf32>, vector<192x128xf32>, vector<3x128xf32> -> vector<3x128xf32>
    %369 = arith.addf %364, %368 : vector<3x128xf32>
    %c4_308 = arith.constant 4 : index
    %c0_309 = arith.constant 0 : index
    %370 = vector.load %arg18[%c4_308, %c0_309] : memref<16x192xf32, #tpu.memory_space<vmem>>, vector<3x192xf32>
    %c4_310 = arith.constant 4 : index
    %c0_311 = arith.constant 0 : index
    %c0_312 = arith.constant 0 : index
    %371 = vector.load %arg10[%c4_310, %c0_311, %c0_312] : memref<6x192x128xf32, #tpu.memory_space<vmem>>, vector<1x192x128xf32>
    %372 = vector.shape_cast %371 : vector<1x192x128xf32> to vector<192x128xf32>
    %cst_313 = arith.constant dense<0.000000e+00> : vector<3x128xf32>
    %373 = tpu.matmul %370, %372, %cst_313 {dimension_numbers = #tpu.dot_dimension_numbers<[1], [0], [0], [1], [0, 0, 1, 1], [], []>} : vector<3x192xf32>, vector<192x128xf32>, vector<3x128xf32> -> vector<3x128xf32>
    %374 = arith.addf %369, %373 : vector<3x128xf32>
    %c5_314 = arith.constant 5 : index
    %c0_315 = arith.constant 0 : index
    %375 = vector.load %arg18[%c5_314, %c0_315] : memref<16x192xf32, #tpu.memory_space<vmem>>, vector<3x192xf32>
    %c5_316 = arith.constant 5 : index
    %c0_317 = arith.constant 0 : index
    %c0_318 = arith.constant 0 : index
    %376 = vector.load %arg10[%c5_316, %c0_317, %c0_318] : memref<6x192x128xf32, #tpu.memory_space<vmem>>, vector<1x192x128xf32>
    %377 = vector.shape_cast %376 : vector<1x192x128xf32> to vector<192x128xf32>
    %cst_319 = arith.constant dense<0.000000e+00> : vector<3x128xf32>
    %378 = tpu.matmul %375, %377, %cst_319 {dimension_numbers = #tpu.dot_dimension_numbers<[1], [0], [0], [1], [0, 0, 1, 1], [], []>} : vector<3x192xf32>, vector<192x128xf32>, vector<3x128xf32> -> vector<3x128xf32>
    %379 = arith.addf %374, %378 : vector<3x128xf32>
    %cst_320 = arith.constant dense<0.000000e+00> : vector<2x128xf32>
    %380 = tpu.matmul %346, %379, %cst_320 {dimension_numbers = #tpu.dot_dimension_numbers<[1], [0], [0], [1], [0, 0, 1, 1], [], []>} : vector<2x3xf32>, vector<3x128xf32>, vector<2x128xf32> -> vector<2x128xf32>
    %c0_321 = arith.constant 0 : index
    %c0_322 = arith.constant 0 : index
    %381 = vector.load %arg19[%c0_321, %c0_322] : memref<4x128xf32, #tpu.memory_space<vmem>>, vector<2x128xf32>
    tpu.vector_store %arg19[%c0_321, %c0_322], %380 {strides = array<i32>} : memref<4x128xf32, #tpu.memory_space<vmem>>, vector<2x128xf32>,
    %cst_323 = arith.constant dense<0.000000e+00> : vector<128xf32>
    %382 = vector.multi_reduction <add>, %380, %cst_323 [0] : vector<2x128xf32> to vector<128xf32>
    %383 = vector.shape_cast %382 : vector<128xf32> to vector<1x128xf32>
    %384 = arith.addf %347, %383 : vector<1x128xf32>
    %385 = arith.mulf %380, %380 : vector<2x128xf32>
    %cst_324 = arith.constant dense<0.000000e+00> : vector<128xf32>
    %386 = vector.multi_reduction <add>, %385, %cst_324 [0] : vector<2x128xf32> to vector<128xf32>
    %387 = vector.shape_cast %386 : vector<128xf32> to vector<1x128xf32>
    %388 = arith.addf %348, %387 : vector<1x128xf32>
    %cst_325 = arith.constant 0.000000e+00 : f32
    %389 = vector.broadcast %cst_325 : f32 to vector<3x128xf32>
    %c8_326 = arith.constant 8 : index
    %c0_327 = arith.constant 0 : index
    %390 = vector.load %arg18[%c8_326, %c0_327] : memref<16x192xf32, #tpu.memory_space<vmem>>, vector<3x192xf32>
    %c0_328 = arith.constant 0 : index
    %c0_329 = arith.constant 0 : index
    %c0_330 = arith.constant 0 : index
    %391 = vector.load %arg10[%c0_328, %c0_329, %c0_330] : memref<6x192x128xf32, #tpu.memory_space<vmem>>, vector<1x192x128xf32>
    %392 = vector.shape_cast %391 : vector<1x192x128xf32> to vector<192x128xf32>
    %cst_331 = arith.constant dense<0.000000e+00> : vector<3x128xf32>
    %393 = tpu.matmul %390, %392, %cst_331 {dimension_numbers = #tpu.dot_dimension_numbers<[1], [0], [0], [1], [0, 0, 1, 1], [], []>} : vector<3x192xf32>, vector<192x128xf32>, vector<3x128xf32> -> vector<3x128xf32>
    %394 = arith.addf %389, %393 : vector<3x128xf32>
    %c9 = arith.constant 9 : index
    %c0_332 = arith.constant 0 : index
    %395 = vector.load %arg18[%c9, %c0_332] : memref<16x192xf32, #tpu.memory_space<vmem>>, vector<3x192xf32>
    %c1_333 = arith.constant 1 : index
    %c0_334 = arith.constant 0 : index
    %c0_335 = arith.constant 0 : index
    %396 = vector.load %arg10[%c1_333, %c0_334, %c0_335] : memref<6x192x128xf32, #tpu.memory_space<vmem>>, vector<1x192x128xf32>
    %397 = vector.shape_cast %396 : vector<1x192x128xf32> to vector<192x128xf32>
    %cst_336 = arith.constant dense<0.000000e+00> : vector<3x128xf32>
    %398 = tpu.matmul %395, %397, %cst_336 {dimension_numbers = #tpu.dot_dimension_numbers<[1], [0], [0], [1], [0, 0, 1, 1], [], []>} : vector<3x192xf32>, vector<192x128xf32>, vector<3x128xf32> -> vector<3x128xf32>
    %399 = arith.addf %394, %398 : vector<3x128xf32>
    %c10 = arith.constant 10 : index
    %c0_337 = arith.constant 0 : index
    %400 = vector.load %arg18[%c10, %c0_337] : memref<16x192xf32, #tpu.memory_space<vmem>>, vector<3x192xf32>
    %c2_338 = arith.constant 2 : index
    %c0_339 = arith.constant 0 : index
    %c0_340 = arith.constant 0 : index
    %401 = vector.load %arg10[%c2_338, %c0_339, %c0_340] : memref<6x192x128xf32, #tpu.memory_space<vmem>>, vector<1x192x128xf32>
    %402 = vector.shape_cast %401 : vector<1x192x128xf32> to vector<192x128xf32>
    %cst_341 = arith.constant dense<0.000000e+00> : vector<3x128xf32>
    %403 = tpu.matmul %400, %402, %cst_341 {dimension_numbers = #tpu.dot_dimension_numbers<[1], [0], [0], [1], [0, 0, 1, 1], [], []>} : vector<3x192xf32>, vector<192x128xf32>, vector<3x128xf32> -> vector<3x128xf32>
    %404 = arith.addf %399, %403 : vector<3x128xf32>
    %c11 = arith.constant 11 : index
    %c0_342 = arith.constant 0 : index
    %405 = vector.load %arg18[%c11, %c0_342] : memref<16x192xf32, #tpu.memory_space<vmem>>, vector<3x192xf32>
    %c3_343 = arith.constant 3 : index
    %c0_344 = arith.constant 0 : index
    %c0_345 = arith.constant 0 : index
    %406 = vector.load %arg10[%c3_343, %c0_344, %c0_345] : memref<6x192x128xf32, #tpu.memory_space<vmem>>, vector<1x192x128xf32>
    %407 = vector.shape_cast %406 : vector<1x192x128xf32> to vector<192x128xf32>
    %cst_346 = arith.constant dense<0.000000e+00> : vector<3x128xf32>
    %408 = tpu.matmul %405, %407, %cst_346 {dimension_numbers = #tpu.dot_dimension_numbers<[1], [0], [0], [1], [0, 0, 1, 1], [], []>} : vector<3x192xf32>, vector<192x128xf32>, vector<3x128xf32> -> vector<3x128xf32>
    %409 = arith.addf %404, %408 : vector<3x128xf32>
    %c12 = arith.constant 12 : index
    %c0_347 = arith.constant 0 : index
    %410 = vector.load %arg18[%c12, %c0_347] : memref<16x192xf32, #tpu.memory_space<vmem>>, vector<3x192xf32>
    %c4_348 = arith.constant 4 : index
    %c0_349 = arith.constant 0 : index
    %c0_350 = arith.constant 0 : index
    %411 = vector.load %arg10[%c4_348, %c0_349, %c0_350] : memref<6x192x128xf32, #tpu.memory_space<vmem>>, vector<1x192x128xf32>
    %412 = vector.shape_cast %411 : vector<1x192x128xf32> to vector<192x128xf32>
    %cst_351 = arith.constant dense<0.000000e+00> : vector<3x128xf32>
    %413 = tpu.matmul %410, %412, %cst_351 {dimension_numbers = #tpu.dot_dimension_numbers<[1], [0], [0], [1], [0, 0, 1, 1], [], []>} : vector<3x192xf32>, vector<192x128xf32>, vector<3x128xf32> -> vector<3x128xf32>
    %414 = arith.addf %409, %413 : vector<3x128xf32>
    %c13 = arith.constant 13 : index
    %c0_352 = arith.constant 0 : index
    %415 = vector.load %arg18[%c13, %c0_352] : memref<16x192xf32, #tpu.memory_space<vmem>>, vector<3x192xf32>
    %c5_353 = arith.constant 5 : index
    %c0_354 = arith.constant 0 : index
    %c0_355 = arith.constant 0 : index
    %416 = vector.load %arg10[%c5_353, %c0_354, %c0_355] : memref<6x192x128xf32, #tpu.memory_space<vmem>>, vector<1x192x128xf32>
    %417 = vector.shape_cast %416 : vector<1x192x128xf32> to vector<192x128xf32>
    %cst_356 = arith.constant dense<0.000000e+00> : vector<3x128xf32>
    %418 = tpu.matmul %415, %417, %cst_356 {dimension_numbers = #tpu.dot_dimension_numbers<[1], [0], [0], [1], [0, 0, 1, 1], [], []>} : vector<3x192xf32>, vector<192x128xf32>, vector<3x128xf32> -> vector<3x128xf32>
    %419 = arith.addf %414, %418 : vector<3x128xf32>
    %cst_357 = arith.constant dense<0.000000e+00> : vector<2x128xf32>
    %420 = tpu.matmul %346, %419, %cst_357 {dimension_numbers = #tpu.dot_dimension_numbers<[1], [0], [0], [1], [0, 0, 1, 1], [], []>} : vector<2x3xf32>, vector<3x128xf32>, vector<2x128xf32> -> vector<2x128xf32>
    %c2_358 = arith.constant 2 : index
    %c0_359 = arith.constant 0 : index
    %421 = vector.load %arg19[%c2_358, %c0_359] : memref<4x128xf32, #tpu.memory_space<vmem>>, vector<2x128xf32>
    tpu.vector_store %arg19[%c2_358, %c0_359], %420 {strides = array<i32>} : memref<4x128xf32, #tpu.memory_space<vmem>>, vector<2x128xf32>,
    %cst_360 = arith.constant dense<0.000000e+00> : vector<128xf32>
    %422 = vector.multi_reduction <add>, %420, %cst_360 [0] : vector<2x128xf32> to vector<128xf32>
    %423 = vector.shape_cast %422 : vector<128xf32> to vector<1x128xf32>
    %424 = arith.addf %384, %423 : vector<1x128xf32>
    %425 = arith.mulf %420, %420 : vector<2x128xf32>
    %cst_361 = arith.constant dense<0.000000e+00> : vector<128xf32>
    %426 = vector.multi_reduction <add>, %425, %cst_361 [0] : vector<2x128xf32> to vector<128xf32>
    %427 = vector.shape_cast %426 : vector<128xf32> to vector<1x128xf32>
    %428 = arith.addf %388, %427 : vector<1x128xf32>
    %c0_362 = arith.constant 0 : index
    %c0_363 = arith.constant 0 : index
    %429 = vector.load %arg12[%c0_362, %c0_363] : memref<128x128xf32, #tpu.memory_space<vmem>>, vector<128x128xf32>
    %cst_364 = arith.constant dense<0.000000e+00> : vector<1x128xf32>
    %430 = tpu.matmul %424, %429, %cst_364 {dimension_numbers = #tpu.dot_dimension_numbers<[1], [0], [0], [1], [0, 0, 1, 1], [], []>} : vector<1x128xf32>, vector<128x128xf32>, vector<1x128xf32> -> vector<1x128xf32>
    %cst_365 = arith.constant dense<0.000000e+00> : vector<1x128xf32>
    %431 = tpu.matmul %428, %429, %cst_365 {dimension_numbers = #tpu.dot_dimension_numbers<[1], [0], [0], [1], [0, 0, 1, 1], [], []>} : vector<1x128xf32>, vector<128x128xf32>, vector<1x128xf32> -> vector<1x128xf32>
    %cst_366 = arith.constant 1.250000e-01 : f32
    %432 = vector.broadcast %cst_366 : f32 to vector<1x128xf32>
    %433 = arith.mulf %430, %432 : vector<1x128xf32>
    %cst_367 = arith.constant 1.250000e-01 : f32
    %434 = vector.broadcast %cst_367 : f32 to vector<1x128xf32>
    %435 = arith.mulf %431, %434 : vector<1x128xf32>
    %436 = arith.mulf %433, %433 : vector<1x128xf32>
    %437 = arith.subf %435, %436 : vector<1x128xf32>
    %c0_368 = arith.constant 0 : index
    %c0_369 = arith.constant 0 : index
    %438 = vector.load %arg11[%c0_368, %c0_369] : memref<2x128xf32, #tpu.memory_space<vmem>>, vector<2x128xf32>
    %439 = vector.extract_strided_slice %438 {offsets = [0, 0], sizes = [1, 128], strides = [1, 1]} : vector<2x128xf32> to vector<1x128xf32>
    %cst_370 = arith.constant 9.99999974E-6 : f32
    %440 = vector.broadcast %cst_370 : f32 to vector<1x128xf32>
    %441 = arith.addf %437, %440 : vector<1x128xf32>
    %442 = math.rsqrt %441 : vector<1x128xf32>
    %443 = arith.mulf %439, %442 : vector<1x128xf32>
    %444 = vector.extract_strided_slice %438 {offsets = [1, 0], sizes = [1, 128], strides = [1, 1]} : vector<2x128xf32> to vector<1x128xf32>
    %445 = arith.mulf %433, %443 : vector<1x128xf32>
    %446 = arith.subf %444, %445 : vector<1x128xf32>
    %c0_371 = arith.constant 0 : index
    %c0_372 = arith.constant 0 : index
    %447 = vector.load %arg19[%c0_371, %c0_372] : memref<4x128xf32, #tpu.memory_space<vmem>>, vector<4x128xf32>
    %448 = vector.broadcast %443 : vector<1x128xf32> to vector<4x128xf32>
    %449 = arith.mulf %447, %448 : vector<4x128xf32>
    %450 = vector.broadcast %446 : vector<1x128xf32> to vector<4x128xf32>
    %451 = arith.addf %449, %450 : vector<4x128xf32>
    %c0_373 = arith.constant 0 : index
    %c0_374 = arith.constant 0 : index
    %452 = vector.load %arg19[%c0_373, %c0_374] : memref<4x128xf32, #tpu.memory_space<vmem>>, vector<4x128xf32>
    tpu.vector_store %arg19[%c0_373, %c0_374], %451 {strides = array<i32>} : memref<4x128xf32, #tpu.memory_space<vmem>>, vector<4x128xf32>,
    %c0_375 = arith.constant 0 : index
    %c0_376 = arith.constant 0 : index
    %453 = vector.load %arg13[%c0_375, %c0_376] : memref<2x128xf32, #tpu.memory_space<vmem>>, vector<2x128xf32>
    %c0_377 = arith.constant 0 : index
    %c0_378 = arith.constant 0 : index
    %454 = vector.load %arg14[%c0_377, %c0_378] : memref<1x1xf32, #tpu.memory_space<vmem>>, vector<1x1xf32>
    %c0_379 = arith.constant 0 : index
    %c0_380 = arith.constant 0 : index
    %455 = vector.load %arg19[%c0_379, %c0_380] : memref<4x128xf32, #tpu.memory_space<vmem>>, vector<2x128xf32>
    %456 = arith.mulf %455, %453 : vector<2x128xf32>
    %cst_381 = arith.constant dense<0.000000e+00> : vector<2xf32>
    %457 = vector.multi_reduction <add>, %456, %cst_381 [1] : vector<2x128xf32> to vector<2xf32>
    %458 = vector.shape_cast %457 : vector<2xf32> to vector<2x1xf32>
    %cst_382 = arith.constant dense<0.000000e+00> : vector<1xf32>
    %459 = vector.multi_reduction <add>, %458, %cst_382 [0] : vector<2x1xf32> to vector<1xf32>
    %460 = vector.shape_cast %459 : vector<1xf32> to vector<1x1xf32>
    %461 = arith.addf %460, %454 : vector<1x1xf32>
    %cst_383 = arith.constant 0.000000e+00 : f32
    %462 = vector.broadcast %cst_383 : f32 to vector<1x1xf32>
    %463 = arith.subf %462, %461 : vector<1x1xf32>
    %464 = math.exp %463 : vector<1x1xf32>
    %cst_384 = arith.constant 1.000000e+00 : f32
    %465 = vector.broadcast %cst_384 : f32 to vector<1x1xf32>
    %466 = arith.addf %465, %464 : vector<1x1xf32>
    %cst_385 = arith.constant 1.000000e+00 : f32
    %467 = vector.broadcast %cst_385 : f32 to vector<1x1xf32>
    %468 = arith.divf %467, %466 : vector<1x1xf32>
    %c0_386 = arith.constant 0 : index
    %c0_387 = arith.constant 0 : index
    %469 = vector.load %arg15[%c0_386, %c0_387] : memref<2x1xf32, #tpu.memory_space<vmem>>, vector<1x1xf32>
    tpu.vector_store %arg15[%c0_386, %c0_387], %468 {strides = array<i32>} : memref<2x1xf32, #tpu.memory_space<vmem>>, vector<1x1xf32>,
    %c2_388 = arith.constant 2 : index
    %c0_389 = arith.constant 0 : index
    %470 = vector.load %arg19[%c2_388, %c0_389] : memref<4x128xf32, #tpu.memory_space<vmem>>, vector<2x128xf32>
    %471 = arith.mulf %470, %453 : vector<2x128xf32>
    %cst_390 = arith.constant dense<0.000000e+00> : vector<2xf32>
    %472 = vector.multi_reduction <add>, %471, %cst_390 [1] : vector<2x128xf32> to vector<2xf32>
    %473 = vector.shape_cast %472 : vector<2xf32> to vector<2x1xf32>
    %cst_391 = arith.constant dense<0.000000e+00> : vector<1xf32>
    %474 = vector.multi_reduction <add>, %473, %cst_391 [0] : vector<2x1xf32> to vector<1xf32>
    %475 = vector.shape_cast %474 : vector<1xf32> to vector<1x1xf32>
    %476 = arith.addf %475, %454 : vector<1x1xf32>
    %cst_392 = arith.constant 0.000000e+00 : f32
    %477 = vector.broadcast %cst_392 : f32 to vector<1x1xf32>
    %478 = arith.subf %477, %476 : vector<1x1xf32>
    %479 = math.exp %478 : vector<1x1xf32>
    %cst_393 = arith.constant 1.000000e+00 : f32
    %480 = vector.broadcast %cst_393 : f32 to vector<1x1xf32>
    %481 = arith.addf %480, %479 : vector<1x1xf32>
    %cst_394 = arith.constant 1.000000e+00 : f32
    %482 = vector.broadcast %cst_394 : f32 to vector<1x1xf32>
    %483 = arith.divf %482, %481 : vector<1x1xf32>
    %c1_395 = arith.constant 1 : index
    %c0_396 = arith.constant 0 : index
    %484 = vector.load %arg15[%c1_395, %c0_396] : memref<2x1xf32, #tpu.memory_space<vmem>>, vector<1x1xf32>
    tpu.vector_store %arg15[%c1_395, %c0_396], %483 {strides = array<i32>} : memref<2x1xf32, #tpu.memory_space<vmem>>, vector<1x1xf32>,
    return
  }
}

</mosaic_0001>

<llo_original>
// kernel: tpu_custom_call.1
$region0: #{tpu_custom_call.1}
  #allocation0 [shape = 'u32[]', space=smem, size = 0x4, offset = 0x4, fixed_abs, tag = 'smem constant byte address 0x4 - core index']
  #allocation1 [shape = 'u32[72,128]{1,0:T(1,128)}', space=vmem, size = 0x9000, scoped, tag = 'internal scratch']
  #allocation2 [shape = 'f32[88,80]{1,0:T(8,128)}', space=vmem, size = 0xb000, scoped, tag = 'scratch operand']
  #allocation3 [shape = 'f32[40,128]{1,0:T(8,128)}', space=vmem, size = 0x5000, scoped, tag = 'scratch operand']
  #allocation4 [shape = 'f32[16,192]{1,0:T(8,128)}', space=vmem, size = 0x4000, scoped, tag = 'scratch operand']
  #allocation5 [shape = 'f32[4,128]{1,0:T(4,128)}', space=vmem, size = 0x800, scoped, tag = 'scratch operand']
  #allocation6 [shape = 'f32[1,1]{1,0:T(1,128)S(1)}', space=vmem, size = 0x200, scoped, tag = 'scoped memory for tpu_custom_call.1']
  %s0 = inlined_call_operand.vmem [shape: f32[100,6], index: 0, kind: input, shape index: {}]
  %s1 = inlined_call_operand.vmem [shape: f32[7,6,80], index: 1, kind: input, shape index: {}]
  %s2 = inlined_call_operand.vmem [shape: f32[2,80], index: 2, kind: input, shape index: {}]
  %s3 = inlined_call_operand.vmem [shape: f32[80,80], index: 3, kind: input, shape index: {}]
  %s4 = inlined_call_operand.vmem [shape: f32[6,80,128], index: 4, kind: input, shape index: {}]
  %s5 = inlined_call_operand.vmem [shape: f32[2,128], index: 5, kind: input, shape index: {}]
  %s6 = inlined_call_operand.vmem [shape: f32[128,128], index: 6, kind: input, shape index: {}]
  %s7 = inlined_call_operand.vmem [shape: f32[6,128,192], index: 7, kind: input, shape index: {}]
  %s8 = inlined_call_operand.vmem [shape: f32[2,192], index: 8, kind: input, shape index: {}]
  %s9 = inlined_call_operand.vmem [shape: f32[192,192], index: 9, kind: input, shape index: {}]
  %s10 = inlined_call_operand.vmem [shape: f32[6,192,128], index: 10, kind: input, shape index: {}]
  %s11 = inlined_call_operand.vmem [shape: f32[2,128], index: 11, kind: input, shape index: {}]
  %s12 = inlined_call_operand.vmem [shape: f32[128,128], index: 12, kind: input, shape index: {}]
  %s13 = inlined_call_operand.vmem [shape: f32[2,128], index: 13, kind: input, shape index: {}]
  %s14 = inlined_call_operand.<no memory space> [shape: f32[1,1], index: 14, kind: input, shape index: {}]
  %s15 = inlined_call_operand.vmem [shape: f32[2,1], index: 15, kind: output, shape index: {}]
  %s16 = sld [smem:[#allocation0]]
  $region70: #{tpu_custom_call.1} parent=0
    _
  %s18 = ssub.s32 1, %s16
  %s19 = scalar_select 0, %s18, %s16
  %v20 = vstv %s14
  %21 = vst [vmem:[#allocation6] sm:$0x1] %v20
  // Predicated region
  $region2: #{tpu_custom_call.1} parent=0 // pred_check
    _
  $region3: #{tpu_custom_call.1} parent=0 // pred_check_branch
    %23 = sbr.rel (0) target = $region5
  $region4: #{tpu_custom_call.1} parent=0 // pred_region
    _
  $region5: #{tpu_custom_call.1} parent=0 // pred_fallthru
    _
  // Predicated region
  $region6: #{tpu_custom_call.1} parent=0 // pred_check
    _
  $region7: #{tpu_custom_call.1} parent=0 // pred_check_branch
    %25 = sbr.rel (0) target = $region9
  $region8: #{tpu_custom_call.1} parent=0 // pred_region
    _
  $region9: #{tpu_custom_call.1} parent=0 // pred_fallthru
    _
  // Predicated region
  $region10: #{tpu_custom_call.1} parent=0 // pred_check
    _
  $region11: #{tpu_custom_call.1} parent=0 // pred_check_branch
    %27 = sbr.rel (0) target = $region13
  $region12: #{tpu_custom_call.1} parent=0 // pred_region
    _
  $region13: #{tpu_custom_call.1} parent=0 // pred_fallthru
    _
  // Predicated region
  $region14: #{tpu_custom_call.1} parent=0 // pred_check
    _
  $region15: #{tpu_custom_call.1} parent=0 // pred_check_branch
    %29 = sbr.rel (0) target = $region17
  $region16: #{tpu_custom_call.1} parent=0 // pred_region
    _
  $region17: #{tpu_custom_call.1} parent=0 // pred_fallthru
    _
  // Predicated region
  $region18: #{tpu_custom_call.1} parent=0 // pred_check
    _
  $region19: #{tpu_custom_call.1} parent=0 // pred_check_branch
    %31 = sbr.rel (0) target = $region21
  $region20: #{tpu_custom_call.1} parent=0 // pred_region
    _
  $region21: #{tpu_custom_call.1} parent=0 // pred_fallthru
    _
  // Predicated region
  $region22: #{tpu_custom_call.1} parent=0 // pred_check
    _
  $region23: #{tpu_custom_call.1} parent=0 // pred_check_branch
    %33 = sbr.rel (0) target = $region25
  $region24: #{tpu_custom_call.1} parent=0 // pred_region
    _
  $region25: #{tpu_custom_call.1} parent=0 // pred_fallthru
    _
  // Predicated region
  $region26: #{tpu_custom_call.1} parent=0 // pred_check
    _
  $region27: #{tpu_custom_call.1} parent=0 // pred_check_branch
    %35 = sbr.rel (0) target = $region29
  $region28: #{tpu_custom_call.1} parent=0 // pred_region
    _
  $region29: #{tpu_custom_call.1} parent=0 // pred_fallthru
    _
  // Predicated region
  $region30: #{tpu_custom_call.1} parent=0 // pred_check
    _
  $region31: #{tpu_custom_call.1} parent=0 // pred_check_branch
    %37 = sbr.rel (0) target = $region33
  $region32: #{tpu_custom_call.1} parent=0 // pred_region
    _
  $region33: #{tpu_custom_call.1} parent=0 // pred_fallthru
    _
  // Predicated region
  $region34: #{tpu_custom_call.1} parent=0 // pred_check
    _
  $region35: #{tpu_custom_call.1} parent=0 // pred_check_branch
    %39 = sbr.rel (0) target = $region37
  $region36: #{tpu_custom_call.1} parent=0 // pred_region
    _
  $region37: #{tpu_custom_call.1} parent=0 // pred_fallthru
    _
  // Predicated region
  $region38: #{tpu_custom_call.1} parent=0 // pred_check
    _
  $region39: #{tpu_custom_call.1} parent=0 // pred_check_branch
    %41 = sbr.rel (0) target = $region41
  $region40: #{tpu_custom_call.1} parent=0 // pred_region
    _
  $region41: #{tpu_custom_call.1} parent=0 // pred_fallthru
    _
  // Predicated region
  $region42: #{tpu_custom_call.1} parent=0 // pred_check
    _
  $region43: #{tpu_custom_call.1} parent=0 // pred_check_branch
    %43 = sbr.rel (0) target = $region45
  $region44: #{tpu_custom_call.1} parent=0 // pred_region
    _
  $region45: #{tpu_custom_call.1} parent=0 // pred_fallthru
    _
  // Predicated region
  $region46: #{tpu_custom_call.1} parent=0 // pred_check
    _
  $region47: #{tpu_custom_call.1} parent=0 // pred_check_branch
    %45 = sbr.rel (0) target = $region49
  $region48: #{tpu_custom_call.1} parent=0 // pred_region
    _
  $region49: #{tpu_custom_call.1} parent=0 // pred_fallthru
    _
  // Predicated region
  $region50: #{tpu_custom_call.1} parent=0 // pred_check
    _
  $region51: #{tpu_custom_call.1} parent=0 // pred_check_branch
    %47 = sbr.rel (0) target = $region53
  $region52: #{tpu_custom_call.1} parent=0 // pred_region
    _
  $region53: #{tpu_custom_call.1} parent=0 // pred_fallthru
    _
  // Predicated region
  $region54: #{tpu_custom_call.1} parent=0 // pred_check
    _
  $region55: #{tpu_custom_call.1} parent=0 // pred_check_branch
    %49 = sbr.rel (0) target = $region57
  $region56: #{tpu_custom_call.1} parent=0 // pred_region
    _
  $region57: #{tpu_custom_call.1} parent=0 // pred_fallthru
    _
  // Predicated region
  $region58: #{tpu_custom_call.1} parent=0 // pred_check
    _
  $region59: #{tpu_custom_call.1} parent=0 // pred_check_branch
    %51 = sbr.rel (0) target = $region61
  $region60: #{tpu_custom_call.1} parent=0 // pred_region
    _
  $region61: #{tpu_custom_call.1} parent=0 // pred_fallthru
    _
  %v52 = vld [vmem:[%s0] sm:$0xff]
  %v53 = vld [vmem:[%s0 + $0x8] sm:$0xff]
  %v54 = vld [vmem:[%s0 + $0x10] sm:$0xff]
  %v55 = vld [vmem:[%s0 + $0x18] sm:$0xff]
  %v56 = vld [vmem:[%s0 + $0x20] sm:$0xff]
  %v57 = vld [vmem:[%s0 + $0x28] sm:$0xf]
  %v58 = vld [vmem:[%s1] sm:$0x3f]
  %v59 = vld [vmem:[%s0 + $0x1] sm:$0xff]
  %v60 = vld [vmem:[%s0 + $0x9] sm:$0xff]
  %v61 = vld [vmem:[%s0 + $0x11] sm:$0xff]
  %v62 = vld [vmem:[%s0 + $0x19] sm:$0xff]
  %v63 = vld [vmem:[%s0 + $0x21] sm:$0xff]
  %v64 = vld [vmem:[%s0 + $0x29] sm:$0xf]
  %s65 = scalar_lea.vmem %s1, 8
  %v66 = vld [vmem:[%s65] sm:$0x3f]
  %vm67 = vcmask 48128
  %v69 = vsel %vm67, %v59, 0
  %v72 = vsel %vm67, %v60, 0
  %v75 = vsel %vm67, %v61, 0
  %v78 = vsel %vm67, %v62, 0
  %v81 = vsel %vm67, %v63, 0
  %v84 = vsel %vm67, %v64, 0
  %vm86 = vcmask 1045504
  %v88 = vsel %vm86, %v66, 0
  %90 = vmatpush.msra.mxu0 0.0
  %91 = vmatpush.msra.mxu0 0.0
  %92 = vmatpush.msra.mxu0 0.0
  %93 = vmatpush.msra.mxu0 0.0
  %94 = vmatpush.msra.mxu0 0.0
  %95 = vmatpush.msra.mxu0 0.0
  %96 = vmatpush.msra.mxu0 0.0
  %97 = vmatpush.msra.mxu0 0.0
  %98 = vmatpush.msra.mxu0 0.0
  %99 = vmatpush.msra.mxu0 0.0
  %100 = vmatpush.msra.mxu0 0.0
  %101 = vmatpush.msra.mxu0 0.0
  %102 = vmatpush.msra.mxu0 0.0
  %103 = vmatpush.msra.mxu0 0.0
  %104 = vmatpush.msra.mxu0 0.0
  %105 = vmatpush.msra.mxu0 %v88
  %106 = vmatmul.f32.gmra.mxu0 %v69
  %v107 = vpop.f32.mrf.mxu0
  %v108 = vadd.f32 0.0, %v107
  %109 = vmatmul.f32.gmra.mxu0 %v72
  %v110 = vpop.f32.mrf.mxu0
  %v111 = vadd.f32 0.0, %v110
  %112 = vmatmul.f32.gmra.mxu0 %v75
  %v113 = vpop.f32.mrf.mxu0
  %v114 = vadd.f32 0.0, %v113
  %115 = vmatmul.f32.gmra.mxu0 %v78
  %v116 = vpop.f32.mrf.mxu0
  %v117 = vadd.f32 0.0, %v116
  %118 = vmatmul.f32.gmra.mxu0 %v81
  %v119 = vpop.f32.mrf.mxu0
  %v120 = vadd.f32 0.0, %v119
  %121 = vmatmul.f32.gmra.mxu0 %v84
  %v122 = vpop.f32.mrf.mxu0
  %v123 = vadd.f32 0.0, %v122
  %124 = vdwg.mxu0
  %v126 = vsel %vm67, %v52, 0
  %v129 = vsel %vm67, %v53, 0
  %v132 = vsel %vm67, %v54, 0
  %v135 = vsel %vm67, %v55, 0
  %v138 = vsel %vm67, %v56, 0
  %v141 = vsel %vm67, %v57, 0
  %v144 = vsel %vm86, %v58, 0
  %146 = vmatpush.msra.mxu0 0.0
  %147 = vmatpush.msra.mxu0 0.0
  %148 = vmatpush.msra.mxu0 0.0
  %149 = vmatpush.msra.mxu0 0.0
  %150 = vmatpush.msra.mxu0 0.0
  %151 = vmatpush.msra.mxu0 0.0
  %152 = vmatpush.msra.mxu0 0.0
  %153 = vmatpush.msra.mxu0 0.0
  %154 = vmatpush.msra.mxu0 0.0
  %155 = vmatpush.msra.mxu0 0.0
  %156 = vmatpush.msra.mxu0 0.0
  %157 = vmatpush.msra.mxu0 0.0
  %158 = vmatpush.msra.mxu0 0.0
  %159 = vmatpush.msra.mxu0 0.0
  %160 = vmatpush.msra.mxu0 0.0
  %161 = vmatpush.msra.mxu0 %v144
  %162 = vmatmul.f32.gmra.mxu0 %v126
  %v163 = vpop.f32.mrf.mxu0
  %v164 = vadd.f32 %v108, %v163
  %165 = vmatmul.f32.gmra.mxu0 %v129
  %v166 = vpop.f32.mrf.mxu0
  %v167 = vadd.f32 %v111, %v166
  %168 = vmatmul.f32.gmra.mxu0 %v132
  %v169 = vpop.f32.mrf.mxu0
  %v170 = vadd.f32 %v114, %v169
  %171 = vmatmul.f32.gmra.mxu0 %v135
  %v172 = vpop.f32.mrf.mxu0
  %v173 = vadd.f32 %v117, %v172
  %174 = vmatmul.f32.gmra.mxu0 %v138
  %v175 = vpop.f32.mrf.mxu0
  %v176 = vadd.f32 %v120, %v175
  %177 = vmatmul.f32.gmra.mxu0 %v141
  %v178 = vpop.f32.mrf.mxu0
  %v179 = vadd.f32 %v123, %v178
  %180 = vdwg.mxu0
  %v181 = vld [vmem:[%s0 + $0x2] sm:$0xff]
  %v182 = vld [vmem:[%s0 + $0xa] sm:$0xff]
  %v183 = vld [vmem:[%s0 + $0x12] sm:$0xff]
  %v184 = vld [vmem:[%s0 + $0x1a] sm:$0xff]
  %v185 = vld [vmem:[%s0 + $0x22] sm:$0xff]
  %v186 = vld [vmem:[%s0 + $0x2a] sm:$0xf]
  %s187 = scalar_lea.vmem %s1, 16
  %v188 = vld [vmem:[%s187] sm:$0x3f]
  %v190 = vsel %vm67, %v181, 0
  %v193 = vsel %vm67, %v182, 0
  %v196 = vsel %vm67, %v183, 0
  %v199 = vsel %vm67, %v184, 0
  %v202 = vsel %vm67, %v185, 0
  %v205 = vsel %vm67, %v186, 0
  %v208 = vsel %vm86, %v188, 0
  %210 = vmatpush.msra.mxu0 0.0
  %211 = vmatpush.msra.mxu0 0.0
  %212 = vmatpush.msra.mxu0 0.0
  %213 = vmatpush.msra.mxu0 0.0
  %214 = vmatpush.msra.mxu0 0.0
  %215 = vmatpush.msra.mxu0 0.0
  %216 = vmatpush.msra.mxu0 0.0
  %217 = vmatpush.msra.mxu0 0.0
  %218 = vmatpush.msra.mxu0 0.0
  %219 = vmatpush.msra.mxu0 0.0
  %220 = vmatpush.msra.mxu0 0.0
  %221 = vmatpush.msra.mxu0 0.0
  %222 = vmatpush.msra.mxu0 0.0
  %223 = vmatpush.msra.mxu0 0.0
  %224 = vmatpush.msra.mxu0 0.0
  %225 = vmatpush.msra.mxu0 %v208
  %226 = vmatmul.f32.gmra.mxu0 %v190
  %v227 = vpop.f32.mrf.mxu0
  %v228 = vadd.f32 0.0, %v227
  %229 = vmatmul.f32.gmra.mxu0 %v193
  %v230 = vpop.f32.mrf.mxu0
  %v231 = vadd.f32 0.0, %v230
  %232 = vmatmul.f32.gmra.mxu0 %v196
  %v233 = vpop.f32.mrf.mxu0
  %v234 = vadd.f32 0.0, %v233
  %235 = vmatmul.f32.gmra.mxu0 %v199
  %v236 = vpop.f32.mrf.mxu0
  %v237 = vadd.f32 0.0, %v236
  %238 = vmatmul.f32.gmra.mxu0 %v202
  %v239 = vpop.f32.mrf.mxu0
  %v240 = vadd.f32 0.0, %v239
  %241 = vmatmul.f32.gmra.mxu0 %v205
  %v242 = vpop.f32.mrf.mxu0
  %v243 = vadd.f32 0.0, %v242
  %244 = vdwg.mxu0
  %v245 = vadd.f32 %v164, %v228
  %v246 = vadd.f32 %v167, %v231
  %v247 = vadd.f32 %v170, %v234
  %v248 = vadd.f32 %v173, %v237
  %v249 = vadd.f32 %v176, %v240
  %v250 = vadd.f32 %v179, %v243
  %v251 = vld [vmem:[%s0 + $0x3] sm:$0xff]
  %v252 = vld [vmem:[%s0 + $0xb] sm:$0xff]
  %v253 = vld [vmem:[%s0 + $0x13] sm:$0xff]
  %v254 = vld [vmem:[%s0 + $0x1b] sm:$0xff]
  %v255 = vld [vmem:[%s0 + $0x23] sm:$0xff]
  %v256 = vld [vmem:[%s0 + $0x2b] sm:$0xf]
  %s257 = scalar_lea.vmem %s1, 24
  %v258 = vld [vmem:[%s257] sm:$0x3f]
  %v260 = vsel %vm67, %v251, 0
  %v263 = vsel %vm67, %v252, 0
  %v266 = vsel %vm67, %v253, 0
  %v269 = vsel %vm67, %v254, 0
  %v272 = vsel %vm67, %v255, 0
  %v275 = vsel %vm67, %v256, 0
  %v278 = vsel %vm86, %v258, 0
  %280 = vmatpush.msra.mxu0 0.0
  %281 = vmatpush.msra.mxu0 0.0
  %282 = vmatpush.msra.mxu0 0.0
  %283 = vmatpush.msra.mxu0 0.0
  %284 = vmatpush.msra.mxu0 0.0
  %285 = vmatpush.msra.mxu0 0.0
  %286 = vmatpush.msra.mxu0 0.0
  %287 = vmatpush.msra.mxu0 0.0
  %288 = vmatpush.msra.mxu0 0.0
  %289 = vmatpush.msra.mxu0 0.0
  %290 = vmatpush.msra.mxu0 0.0
  %291 = vmatpush.msra.mxu0 0.0
  %292 = vmatpush.msra.mxu0 0.0
  %293 = vmatpush.msra.mxu0 0.0
  %294 = vmatpush.msra.mxu0 0.0
  %295 = vmatpush.msra.mxu0 %v278
  %296 = vmatmul.f32.gmra.mxu0 %v260
  %v297 = vpop.f32.mrf.mxu0
  %v298 = vadd.f32 0.0, %v297
  %299 = vmatmul.f32.gmra.mxu0 %v263
  %v300 = vpop.f32.mrf.mxu0
  %v301 = vadd.f32 0.0, %v300
  %302 = vmatmul.f32.gmra.mxu0 %v266
  %v303 = vpop.f32.mrf.mxu0
  %v304 = vadd.f32 0.0, %v303
  %305 = vmatmul.f32.gmra.mxu0 %v269
  %v306 = vpop.f32.mrf.mxu0
  %v307 = vadd.f32 0.0, %v306
  %308 = vmatmul.f32.gmra.mxu0 %v272
  %v309 = vpop.f32.mrf.mxu0
  %v310 = vadd.f32 0.0, %v309
  %311 = vmatmul.f32.gmra.mxu0 %v275
  %v312 = vpop.f32.mrf.mxu0
  %v313 = vadd.f32 0.0, %v312
  %314 = vdwg.mxu0
  %v315 = vadd.f32 %v245, %v298
  %v316 = vadd.f32 %v246, %v301
  %v317 = vadd.f32 %v247, %v304
  %v318 = vadd.f32 %v248, %v307
  %v319 = vadd.f32 %v249, %v310
  %v320 = vadd.f32 %v250, %v313
  %v321 = vld [vmem:[%s0 + $0x4] sm:$0xff]
  %v322 = vld [vmem:[%s0 + $0xc] sm:$0xff]
  %v323 = vld [vmem:[%s0 + $0x14] sm:$0xff]
  %v324 = vld [vmem:[%s0 + $0x1c] sm:$0xff]
  %v325 = vld [vmem:[%s0 + $0x24] sm:$0xff]
  %v326 = vld [vmem:[%s0 + $0x2c] sm:$0xf]
  %s327 = scalar_lea.vmem %s1, 32
  %v328 = vld [vmem:[%s327] sm:$0x3f]
  %v330 = vsel %vm67, %v321, 0
  %v333 = vsel %vm67, %v322, 0
  %v336 = vsel %vm67, %v323, 0
  %v339 = vsel %vm67, %v324, 0
  %v342 = vsel %vm67, %v325, 0
  %v345 = vsel %vm67, %v326, 0
  %v348 = vsel %vm86, %v328, 0
  %350 = vmatpush.msra.mxu0 0.0
  %351 = vmatpush.msra.mxu0 0.0
  %352 = vmatpush.msra.mxu0 0.0
  %353 = vmatpush.msra.mxu0 0.0
  %354 = vmatpush.msra.mxu0 0.0
  %355 = vmatpush.msra.mxu0 0.0
  %356 = vmatpush.msra.mxu0 0.0
  %357 = vmatpush.msra.mxu0 0.0
  %358 = vmatpush.msra.mxu0 0.0
  %359 = vmatpush.msra.mxu0 0.0
  %360 = vmatpush.msra.mxu0 0.0
  %361 = vmatpush.msra.mxu0 0.0
  %362 = vmatpush.msra.mxu0 0.0
  %363 = vmatpush.msra.mxu0 0.0
  %364 = vmatpush.msra.mxu0 0.0
  %365 = vmatpush.msra.mxu0 %v348
  %366 = vmatmul.f32.gmra.mxu0 %v330
  %v367 = vpop.f32.mrf.mxu0
  %v368 = vadd.f32 0.0, %v367
  %369 = vmatmul.f32.gmra.mxu0 %v333
  %v370 = vpop.f32.mrf.mxu0
  %v371 = vadd.f32 0.0, %v370
  %372 = vmatmul.f32.gmra.mxu0 %v336
  %v373 = vpop.f32.mrf.mxu0
  %v374 = vadd.f32 0.0, %v373
  %375 = vmatmul.f32.gmra.mxu0 %v339
  %v376 = vpop.f32.mrf.mxu0
  %v377 = vadd.f32 0.0, %v376
  %378 = vmatmul.f32.gmra.mxu0 %v342
  %v379 = vpop.f32.mrf.mxu0
  %v380 = vadd.f32 0.0, %v379
  %381 = vmatmul.f32.gmra.mxu0 %v345
  %v382 = vpop.f32.mrf.mxu0
  %v383 = vadd.f32 0.0, %v382
  %384 = vdwg.mxu0
  %v385 = vadd.f32 %v315, %v368
  %v386 = vadd.f32 %v316, %v371
  %v387 = vadd.f32 %v317, %v374
  %v388 = vadd.f32 %v318, %v377
  %v389 = vadd.f32 %v319, %v380
  %v390 = vadd.f32 %v320, %v383
  %v391 = vld [vmem:[%s0 + $0x5] sm:$0xff]
  %v392 = vld [vmem:[%s0 + $0xd] sm:$0xff]
  %v393 = vld [vmem:[%s0 + $0x15] sm:$0xff]
  %v394 = vld [vmem:[%s0 + $0x1d] sm:$0xff]
  %v395 = vld [vmem:[%s0 + $0x25] sm:$0xff]
  %v396 = vld [vmem:[%s0 + $0x2d] sm:$0xf]
  %s397 = scalar_lea.vmem %s1, 40
  %v398 = vld [vmem:[%s397] sm:$0x3f]
  %v400 = vsel %vm67, %v391, 0
  %v403 = vsel %vm67, %v392, 0
  %v406 = vsel %vm67, %v393, 0
  %v409 = vsel %vm67, %v394, 0
  %v412 = vsel %vm67, %v395, 0
  %v415 = vsel %vm67, %v396, 0
  %v418 = vsel %vm86, %v398, 0
  %420 = vmatpush.msra.mxu0 0.0
  %421 = vmatpush.msra.mxu0 0.0
  %422 = vmatpush.msra.mxu0 0.0
  %423 = vmatpush.msra.mxu0 0.0
  %424 = vmatpush.msra.mxu0 0.0
  %425 = vmatpush.msra.mxu0 0.0
  %426 = vmatpush.msra.mxu0 0.0
  %427 = vmatpush.msra.mxu0 0.0
  %428 = vmatpush.msra.mxu0 0.0
  %429 = vmatpush.msra.mxu0 0.0
  %430 = vmatpush.msra.mxu0 0.0
  %431 = vmatpush.msra.mxu0 0.0
  %432 = vmatpush.msra.mxu0 0.0
  %433 = vmatpush.msra.mxu0 0.0
  %434 = vmatpush.msra.mxu0 0.0
  %435 = vmatpush.msra.mxu0 %v418
  %436 = vmatmul.f32.gmra.mxu0 %v400
  %v437 = vpop.f32.mrf.mxu0
  %v438 = vadd.f32 0.0, %v437
  %439 = vmatmul.f32.gmra.mxu0 %v403
  %v440 = vpop.f32.mrf.mxu0
  %v441 = vadd.f32 0.0, %v440
  %442 = vmatmul.f32.gmra.mxu0 %v406
  %v443 = vpop.f32.mrf.mxu0
  %v444 = vadd.f32 0.0, %v443
  %445 = vmatmul.f32.gmra.mxu0 %v409
  %v446 = vpop.f32.mrf.mxu0
  %v447 = vadd.f32 0.0, %v446
  %448 = vmatmul.f32.gmra.mxu0 %v412
  %v449 = vpop.f32.mrf.mxu0
  %v450 = vadd.f32 0.0, %v449
  %451 = vmatmul.f32.gmra.mxu0 %v415
  %v452 = vpop.f32.mrf.mxu0
  %v453 = vadd.f32 0.0, %v452
  %454 = vdwg.mxu0
  %v455 = vadd.f32 %v385, %v438
  %v456 = vadd.f32 %v386, %v441
  %v457 = vadd.f32 %v387, %v444
  %v458 = vadd.f32 %v388, %v447
  %v459 = vadd.f32 %v389, %v450
  %v460 = vadd.f32 %v390, %v453
  %v461 = vld [vmem:[%s0 + $0x6] sm:$0xff]
  %v462 = vld [vmem:[%s0 + $0xe] sm:$0xff]
  %v463 = vld [vmem:[%s0 + $0x16] sm:$0xff]
  %v464 = vld [vmem:[%s0 + $0x1e] sm:$0xff]
  %v465 = vld [vmem:[%s0 + $0x26] sm:$0xff]
  %v466 = vld [vmem:[%s0 + $0x2e] sm:$0xf]
  %s467 = scalar_lea.vmem %s1, 48
  %v468 = vld [vmem:[%s467] sm:$0x3f]
  %v470 = vsel %vm67, %v461, 0
  %v473 = vsel %vm67, %v462, 0
  %v476 = vsel %vm67, %v463, 0
  %v479 = vsel %vm67, %v464, 0
  %v482 = vsel %vm67, %v465, 0
  %v485 = vsel %vm67, %v466, 0
  %v488 = vsel %vm86, %v468, 0
  %490 = vmatpush.msra.mxu0 0.0
  %491 = vmatpush.msra.mxu0 0.0
  %492 = vmatpush.msra.mxu0 0.0
  %493 = vmatpush.msra.mxu0 0.0
  %494 = vmatpush.msra.mxu0 0.0
  %495 = vmatpush.msra.mxu0 0.0
  %496 = vmatpush.msra.mxu0 0.0
  %497 = vmatpush.msra.mxu0 0.0
  %498 = vmatpush.msra.mxu0 0.0
  %499 = vmatpush.msra.mxu0 0.0
  %500 = vmatpush.msra.mxu0 0.0
  %501 = vmatpush.msra.mxu0 0.0
  %502 = vmatpush.msra.mxu0 0.0
  %503 = vmatpush.msra.mxu0 0.0
  %504 = vmatpush.msra.mxu0 0.0
  %505 = vmatpush.msra.mxu0 %v488
  %506 = vmatmul.f32.gmra.mxu0 %v470
  %v507 = vpop.f32.mrf.mxu0
  %v508 = vadd.f32 0.0, %v507
  %509 = vmatmul.f32.gmra.mxu0 %v473
  %v510 = vpop.f32.mrf.mxu0
  %v511 = vadd.f32 0.0, %v510
  %512 = vmatmul.f32.gmra.mxu0 %v476
  %v513 = vpop.f32.mrf.mxu0
  %v514 = vadd.f32 0.0, %v513
  %515 = vmatmul.f32.gmra.mxu0 %v479
  %v516 = vpop.f32.mrf.mxu0
  %v517 = vadd.f32 0.0, %v516
  %518 = vmatmul.f32.gmra.mxu0 %v482
  %v519 = vpop.f32.mrf.mxu0
  %v520 = vadd.f32 0.0, %v519
  %521 = vmatmul.f32.gmra.mxu0 %v485
  %v522 = vpop.f32.mrf.mxu0
  %v523 = vadd.f32 0.0, %v522
  %524 = vdwg.mxu0
  %v525 = vadd.f32 %v455, %v508
  %v526 = vadd.f32 %v456, %v511
  %v527 = vadd.f32 %v457, %v514
  %v528 = vadd.f32 %v458, %v517
  %v529 = vadd.f32 %v459, %v520
  %v530 = vadd.f32 %v460, %v523
  %vm531 = vcmask 654336
  %532 = vst.msk [vmem:[#allocation2] sm:$0xff] %vm531, %v525
  %533 = vst.msk [vmem:[#allocation2 + $0x8] sm:$0xff] %vm531, %v526
  %534 = vst.msk [vmem:[#allocation2 + $0x10] sm:$0xff] %vm531, %v527
  %535 = vst.msk [vmem:[#allocation2 + $0x18] sm:$0xff] %vm531, %v528
  %536 = vst.msk [vmem:[#allocation2 + $0x20] sm:$0xff] %vm531, %v529
  %vm537 = vcmask 650240
  %538 = vst.msk [vmem:[#allocation2 + $0x28] sm:$0xf] %vm537, %v530
  %v539 = vsel %vm531, %v525, 0.0
  %v540 = vsel %vm531, %v526, 0.0
  %v541 = vadd.f32 %v539, %v540
  %v542 = vsel %vm531, %v527, 0.0
  %v543 = vadd.f32 %v541, %v542
  %v544 = vsel %vm531, %v528, 0.0
  %v545 = vadd.f32 %v543, %v544
  %v546 = vsel %vm531, %v529, 0.0
  %v547 = vadd.f32 %v545, %v546
  %v548 = vsel %vm537, %v530, 0.0
  %v549 = vadd.f32 %v547, %v548
  %v550 = vrot.slane %v549, 4
  %v551 = vadd.f32 %v549, %v550
  %v552 = vrot.slane %v551, 2
  %v553 = vadd.f32 %v551, %v552
  %v554 = vrot.slane %v553, 1
  %v555 = vadd.f32 %v553, %v554
  %v556 = vadd.f32 %v555, 0.0
  %v557 = vmul.f32 %v525, %v525
  %v558 = vmul.f32 %v526, %v526
  %v559 = vmul.f32 %v527, %v527
  %v560 = vmul.f32 %v528, %v528
  %v561 = vmul.f32 %v529, %v529
  %v562 = vmul.f32 %v530, %v530
  %v563 = vsel %vm531, %v557, 0.0
  %v564 = vsel %vm531, %v558, 0.0
  %v565 = vadd.f32 %v563, %v564
  %v566 = vsel %vm531, %v559, 0.0
  %v567 = vadd.f32 %v565, %v566
  %v568 = vsel %vm531, %v560, 0.0
  %v569 = vadd.f32 %v567, %v568
  %v570 = vsel %vm531, %v561, 0.0
  %v571 = vadd.f32 %v569, %v570
  %v572 = vsel %vm537, %v562, 0.0
  %v573 = vadd.f32 %v571, %v572
  %v574 = vrot.slane %v573, 4
  %v575 = vadd.f32 %v573, %v574
  %v576 = vrot.slane %v575, 2
  %v577 = vadd.f32 %v575, %v576
  %v578 = vrot.slane %v577, 1
  %v579 = vadd.f32 %v577, %v578
  %v580 = vadd.f32 %v579, 0.0
  %v581 = vld [vmem:[%s0 + $0x32] sm:$0xff]
  %v582 = vld [vmem:[%s0 + $0x3a] sm:$0xff]
  %v583 = vld [vmem:[%s0 + $0x42] sm:$0xff]
  %v584 = vld [vmem:[%s0 + $0x4a] sm:$0xff]
  %v585 = vld [vmem:[%s0 + $0x52] sm:$0xff]
  %v586 = vld [vmem:[%s0 + $0x5a] sm:$0xf]
  %v587 = vld [vmem:[%s1] sm:$0x3f]
  %v588 = vld [vmem:[%s0 + $0x33] sm:$0xff]
  %v589 = vld [vmem:[%s0 + $0x3b] sm:$0xff]
  %v590 = vld [vmem:[%s0 + $0x43] sm:$0xff]
  %v591 = vld [vmem:[%s0 + $0x4b] sm:$0xff]
  %v592 = vld [vmem:[%s0 + $0x53] sm:$0xff]
  %v593 = vld [vmem:[%s0 + $0x5b] sm:$0xf]
  %v594 = vld [vmem:[%s65] sm:$0x3f]
  %v596 = vsel %vm67, %v588, 0
  %v599 = vsel %vm67, %v589, 0
  %v602 = vsel %vm67, %v590, 0
  %v605 = vsel %vm67, %v591, 0
  %v608 = vsel %vm67, %v592, 0
  %v611 = vsel %vm67, %v593, 0
  %v614 = vsel %vm86, %v594, 0
  %616 = vmatpush.msra.mxu0 0.0
  %617 = vmatpush.msra.mxu0 0.0
  %618 = vmatpush.msra.mxu0 0.0
  %619 = vmatpush.msra.mxu0 0.0
  %620 = vmatpush.msra.mxu0 0.0
  %621 = vmatpush.msra.mxu0 0.0
  %622 = vmatpush.msra.mxu0 0.0
  %623 = vmatpush.msra.mxu0 0.0
  %624 = vmatpush.msra.mxu0 0.0
  %625 = vmatpush.msra.mxu0 0.0
  %626 = vmatpush.msra.mxu0 0.0
  %627 = vmatpush.msra.mxu0 0.0
  %628 = vmatpush.msra.mxu0 0.0
  %629 = vmatpush.msra.mxu0 0.0
  %630 = vmatpush.msra.mxu0 0.0
  %631 = vmatpush.msra.mxu0 %v614
  %632 = vmatmul.f32.gmra.mxu0 %v596
  %v633 = vpop.f32.mrf.mxu0
  %v634 = vadd.f32 0.0, %v633
  %635 = vmatmul.f32.gmra.mxu0 %v599
  %v636 = vpop.f32.mrf.mxu0
  %v637 = vadd.f32 0.0, %v636
  %638 = vmatmul.f32.gmra.mxu0 %v602
  %v639 = vpop.f32.mrf.mxu0
  %v640 = vadd.f32 0.0, %v639
  %641 = vmatmul.f32.gmra.mxu0 %v605
  %v642 = vpop.f32.mrf.mxu0
  %v643 = vadd.f32 0.0, %v642
  %644 = vmatmul.f32.gmra.mxu0 %v608
  %v645 = vpop.f32.mrf.mxu0
  %v646 = vadd.f32 0.0, %v645
  %647 = vmatmul.f32.gmra.mxu0 %v611
  %v648 = vpop.f32.mrf.mxu0
  %v649 = vadd.f32 0.0, %v648
  %650 = vdwg.mxu0
  %v652 = vsel %vm67, %v581, 0
  %v655 = vsel %vm67, %v582, 0
  %v658 = vsel %vm67, %v583, 0
  %v661 = vsel %vm67, %v584, 0
  %v664 = vsel %vm67, %v585, 0
  %v667 = vsel %vm67, %v586, 0
  %v670 = vsel %vm86, %v587, 0
  %672 = vmatpush.msra.mxu0 0.0
  %673 = vmatpush.msra.mxu0 0.0
  %674 = vmatpush.msra.mxu0 0.0
  %675 = vmatpush.msra.mxu0 0.0
  %676 = vmatpush.msra.mxu0 0.0
  %677 = vmatpush.msra.mxu0 0.0
  %678 = vmatpush.msra.mxu0 0.0
  %679 = vmatpush.msra.mxu0 0.0
  %680 = vmatpush.msra.mxu0 0.0
  %681 = vmatpush.msra.mxu0 0.0
  %682 = vmatpush.msra.mxu0 0.0
  %683 = vmatpush.msra.mxu0 0.0
  %684 = vmatpush.msra.mxu0 0.0
  %685 = vmatpush.msra.mxu0 0.0
  %686 = vmatpush.msra.mxu0 0.0
  %687 = vmatpush.msra.mxu0 %v670
  %688 = vmatmul.f32.gmra.mxu0 %v652
  %v689 = vpop.f32.mrf.mxu0
  %v690 = vadd.f32 %v634, %v689
  %691 = vmatmul.f32.gmra.mxu0 %v655
  %v692 = vpop.f32.mrf.mxu0
  %v693 = vadd.f32 %v637, %v692
  %694 = vmatmul.f32.gmra.mxu0 %v658
  %v695 = vpop.f32.mrf.mxu0
  %v696 = vadd.f32 %v640, %v695
  %697 = vmatmul.f32.gmra.mxu0 %v661
  %v698 = vpop.f32.mrf.mxu0
  %v699 = vadd.f32 %v643, %v698
  %700 = vmatmul.f32.gmra.mxu0 %v664
  %v701 = vpop.f32.mrf.mxu0
  %v702 = vadd.f32 %v646, %v701
  %703 = vmatmul.f32.gmra.mxu0 %v667
  %v704 = vpop.f32.mrf.mxu0
  %v705 = vadd.f32 %v649, %v704
  %706 = vdwg.mxu0
  %v707 = vld [vmem:[%s0 + $0x34] sm:$0xff]
  %v708 = vld [vmem:[%s0 + $0x3c] sm:$0xff]
  %v709 = vld [vmem:[%s0 + $0x44] sm:$0xff]
  %v710 = vld [vmem:[%s0 + $0x4c] sm:$0xff]
  %v711 = vld [vmem:[%s0 + $0x54] sm:$0xff]
  %v712 = vld [vmem:[%s0 + $0x5c] sm:$0xf]
  %v713 = vld [vmem:[%s187] sm:$0x3f]
  %v715 = vsel %vm67, %v707, 0
  %v718 = vsel %vm67, %v708, 0
  %v721 = vsel %vm67, %v709, 0
  %v724 = vsel %vm67, %v710, 0
  %v727 = vsel %vm67, %v711, 0
  %v730 = vsel %vm67, %v712, 0
  %v733 = vsel %vm86, %v713, 0
  %735 = vmatpush.msra.mxu0 0.0
  %736 = vmatpush.msra.mxu0 0.0
  %737 = vmatpush.msra.mxu0 0.0
  %738 = vmatpush.msra.mxu0 0.0
  %739 = vmatpush.msra.mxu0 0.0
  %740 = vmatpush.msra.mxu0 0.0
  %741 = vmatpush.msra.mxu0 0.0
  %742 = vmatpush.msra.mxu0 0.0
  %743 = vmatpush.msra.mxu0 0.0
  %744 = vmatpush.msra.mxu0 0.0
  %745 = vmatpush.msra.mxu0 0.0
  %746 = vmatpush.msra.mxu0 0.0
  %747 = vmatpush.msra.mxu0 0.0
  %748 = vmatpush.msra.mxu0 0.0
  %749 = vmatpush.msra.mxu0 0.0
  %750 = vmatpush.msra.mxu0 %v733
  %751 = vmatmul.f32.gmra.mxu0 %v715
  %v752 = vpop.f32.mrf.mxu0
  %v753 = vadd.f32 0.0, %v752
  %754 = vmatmul.f32.gmra.mxu0 %v718
  %v755 = vpop.f32.mrf.mxu0
  %v756 = vadd.f32 0.0, %v755
  %757 = vmatmul.f32.gmra.mxu0 %v721
  %v758 = vpop.f32.mrf.mxu0
  %v759 = vadd.f32 0.0, %v758
  %760 = vmatmul.f32.gmra.mxu0 %v724
  %v761 = vpop.f32.mrf.mxu0
  %v762 = vadd.f32 0.0, %v761
  %763 = vmatmul.f32.gmra.mxu0 %v727
  %v764 = vpop.f32.mrf.mxu0
  %v765 = vadd.f32 0.0, %v764
  %766 = vmatmul.f32.gmra.mxu0 %v730
  %v767 = vpop.f32.mrf.mxu0
  %v768 = vadd.f32 0.0, %v767
  %769 = vdwg.mxu0
  %v770 = vadd.f32 %v690, %v753
  %v771 = vadd.f32 %v693, %v756
  %v772 = vadd.f32 %v696, %v759
  %v773 = vadd.f32 %v699, %v762
  %v774 = vadd.f32 %v702, %v765
  %v775 = vadd.f32 %v705, %v768
  %v776 = vld [vmem:[%s0 + $0x35] sm:$0xff]
  %v777 = vld [vmem:[%s0 + $0x3d] sm:$0xff]
  %v778 = vld [vmem:[%s0 + $0x45] sm:$0xff]
  %v779 = vld [vmem:[%s0 + $0x4d] sm:$0xff]
  %v780 = vld [vmem:[%s0 + $0x55] sm:$0xff]
  %v781 = vld [vmem:[%s0 + $0x5d] sm:$0xf]
  %v782 = vld [vmem:[%s257] sm:$0x3f]
  %v784 = vsel %vm67, %v776, 0
  %v787 = vsel %vm67, %v777, 0
  %v790 = vsel %vm67, %v778, 0
  %v793 = vsel %vm67, %v779, 0
  %v796 = vsel %vm67, %v780, 0
  %v799 = vsel %vm67, %v781, 0
  %v802 = vsel %vm86, %v782, 0
  %804 = vmatpush.msra.mxu0 0.0
  %805 = vmatpush.msra.mxu0 0.0
  %806 = vmatpush.msra.mxu0 0.0
  %807 = vmatpush.msra.mxu0 0.0
  %808 = vmatpush.msra.mxu0 0.0
  %809 = vmatpush.msra.mxu0 0.0
  %810 = vmatpush.msra.mxu0 0.0
  %811 = vmatpush.msra.mxu0 0.0
  %812 = vmatpush.msra.mxu0 0.0
  %813 = vmatpush.msra.mxu0 0.0
  %814 = vmatpush.msra.mxu0 0.0
  %815 = vmatpush.msra.mxu0 0.0
  %816 = vmatpush.msra.mxu0 0.0
  %817 = vmatpush.msra.mxu0 0.0
  %818 = vmatpush.msra.mxu0 0.0
  %819 = vmatpush.msra.mxu0 %v802
  %820 = vmatmul.f32.gmra.mxu0 %v784
  %v821 = vpop.f32.mrf.mxu0
  %v822 = vadd.f32 0.0, %v821
  %823 = vmatmul.f32.gmra.mxu0 %v787
  %v824 = vpop.f32.mrf.mxu0
  %v825 = vadd.f32 0.0, %v824
  %826 = vmatmul.f32.gmra.mxu0 %v790
  %v827 = vpop.f32.mrf.mxu0
  %v828 = vadd.f32 0.0, %v827
  %829 = vmatmul.f32.gmra.mxu0 %v793
  %v830 = vpop.f32.mrf.mxu0
  %v831 = vadd.f32 0.0, %v830
  %832 = vmatmul.f32.gmra.mxu0 %v796
  %v833 = vpop.f32.mrf.mxu0
  %v834 = vadd.f32 0.0, %v833
  %835 = vmatmul.f32.gmra.mxu0 %v799
  %v836 = vpop.f32.mrf.mxu0
  %v837 = vadd.f32 0.0, %v836
  %838 = vdwg.mxu0
  %v839 = vadd.f32 %v770, %v822
  %v840 = vadd.f32 %v771, %v825
  %v841 = vadd.f32 %v772, %v828
  %v842 = vadd.f32 %v773, %v831
  %v843 = vadd.f32 %v774, %v834
  %v844 = vadd.f32 %v775, %v837
  %v845 = vld [vmem:[%s0 + $0x36] sm:$0xff]
  %v846 = vld [vmem:[%s0 + $0x3e] sm:$0xff]
  %v847 = vld [vmem:[%s0 + $0x46] sm:$0xff]
  %v848 = vld [vmem:[%s0 + $0x4e] sm:$0xff]
  %v849 = vld [vmem:[%s0 + $0x56] sm:$0xff]
  %v850 = vld [vmem:[%s0 + $0x5e] sm:$0xf]
  %v851 = vld [vmem:[%s327] sm:$0x3f]
  %v853 = vsel %vm67, %v845, 0
  %v856 = vsel %vm67, %v846, 0
  %v859 = vsel %vm67, %v847, 0
  %v862 = vsel %vm67, %v848, 0
  %v865 = vsel %vm67, %v849, 0
  %v868 = vsel %vm67, %v850, 0
  %v871 = vsel %vm86, %v851, 0
  %873 = vmatpush.msra.mxu0 0.0
  %874 = vmatpush.msra.mxu0 0.0
  %875 = vmatpush.msra.mxu0 0.0
  %876 = vmatpush.msra.mxu0 0.0
  %877 = vmatpush.msra.mxu0 0.0
  %878 = vmatpush.msra.mxu0 0.0
  %879 = vmatpush.msra.mxu0 0.0
  %880 = vmatpush.msra.mxu0 0.0
  %881 = vmatpush.msra.mxu0 0.0
  %882 = vmatpush.msra.mxu0 0.0
  %883 = vmatpush.msra.mxu0 0.0
  %884 = vmatpush.msra.mxu0 0.0
  %885 = vmatpush.msra.mxu0 0.0
  %886 = vmatpush.msra.mxu0 0.0
  %887 = vmatpush.msra.mxu0 0.0
  %888 = vmatpush.msra.mxu0 %v871
  %889 = vmatmul.f32.gmra.mxu0 %v853
  %v890 = vpop.f32.mrf.mxu0
  %v891 = vadd.f32 0.0, %v890
  %892 = vmatmul.f32.gmra.mxu0 %v856
  %v893 = vpop.f32.mrf.mxu0
  %v894 = vadd.f32 0.0, %v893
  %895 = vmatmul.f32.gmra.mxu0 %v859
  %v896 = vpop.f32.mrf.mxu0
  %v897 = vadd.f32 0.0, %v896
  %898 = vmatmul.f32.gmra.mxu0 %v862
  %v899 = vpop.f32.mrf.mxu0
  %v900 = vadd.f32 0.0, %v899
  %901 = vmatmul.f32.gmra.mxu0 %v865
  %v902 = vpop.f32.mrf.mxu0
  %v903 = vadd.f32 0.0, %v902
  %904 = vmatmul.f32.gmra.mxu0 %v868
  %v905 = vpop.f32.mrf.mxu0
  %v906 = vadd.f32 0.0, %v905
  %907 = vdwg.mxu0
  %v908 = vadd.f32 %v839, %v891
  %v909 = vadd.f32 %v840, %v894
  %v910 = vadd.f32 %v841, %v897
  %v911 = vadd.f32 %v842, %v900
  %v912 = vadd.f32 %v843, %v903
  %v913 = vadd.f32 %v844, %v906
  %v914 = vld [vmem:[%s0 + $0x37] sm:$0xff]
  %v915 = vld [vmem:[%s0 + $0x3f] sm:$0xff]
  %v916 = vld [vmem:[%s0 + $0x47] sm:$0xff]
  %v917 = vld [vmem:[%s0 + $0x4f] sm:$0xff]
  %v918 = vld [vmem:[%s0 + $0x57] sm:$0xff]
  %v919 = vld [vmem:[%s0 + $0x5f] sm:$0xf]
  %v920 = vld [vmem:[%s397] sm:$0x3f]
  %v922 = vsel %vm67, %v914, 0
  %v925 = vsel %vm67, %v915, 0
  %v928 = vsel %vm67, %v916, 0
  %v931 = vsel %vm67, %v917, 0
  %v934 = vsel %vm67, %v918, 0
  %v937 = vsel %vm67, %v919, 0
  %v940 = vsel %vm86, %v920, 0
  %942 = vmatpush.msra.mxu0 0.0
  %943 = vmatpush.msra.mxu0 0.0
  %944 = vmatpush.msra.mxu0 0.0
  %945 = vmatpush.msra.mxu0 0.0
  %946 = vmatpush.msra.mxu0 0.0
  %947 = vmatpush.msra.mxu0 0.0
  %948 = vmatpush.msra.mxu0 0.0
  %949 = vmatpush.msra.mxu0 0.0
  %950 = vmatpush.msra.mxu0 0.0
  %951 = vmatpush.msra.mxu0 0.0
  %952 = vmatpush.msra.mxu0 0.0
  %953 = vmatpush.msra.mxu0 0.0
  %954 = vmatpush.msra.mxu0 0.0
  %955 = vmatpush.msra.mxu0 0.0
  %956 = vmatpush.msra.mxu0 0.0
  %957 = vmatpush.msra.mxu0 %v940
  %958 = vmatmul.f32.gmra.mxu0 %v922
  %v959 = vpop.f32.mrf.mxu0
  %v960 = vadd.f32 0.0, %v959
  %961 = vmatmul.f32.gmra.mxu0 %v925
  %v962 = vpop.f32.mrf.mxu0
  %v963 = vadd.f32 0.0, %v962
  %964 = vmatmul.f32.gmra.mxu0 %v928
  %v965 = vpop.f32.mrf.mxu0
  %v966 = vadd.f32 0.0, %v965
  %967 = vmatmul.f32.gmra.mxu0 %v931
  %v968 = vpop.f32.mrf.mxu0
  %v969 = vadd.f32 0.0, %v968
  %970 = vmatmul.f32.gmra.mxu0 %v934
  %v971 = vpop.f32.mrf.mxu0
  %v972 = vadd.f32 0.0, %v971
  %973 = vmatmul.f32.gmra.mxu0 %v937
  %v974 = vpop.f32.mrf.mxu0
  %v975 = vadd.f32 0.0, %v974
  %976 = vdwg.mxu0
  %v977 = vadd.f32 %v908, %v960
  %v978 = vadd.f32 %v909, %v963
  %v979 = vadd.f32 %v910, %v966
  %v980 = vadd.f32 %v911, %v969
  %v981 = vadd.f32 %v912, %v972
  %v982 = vadd.f32 %v913, %v975
  %v983 = vld [vmem:[%s0 + $0x38] sm:$0xff]
  %v984 = vld [vmem:[%s0 + $0x40] sm:$0xff]
  %v985 = vld [vmem:[%s0 + $0x48] sm:$0xff]
  %v986 = vld [vmem:[%s0 + $0x50] sm:$0xff]
  %v987 = vld [vmem:[%s0 + $0x58] sm:$0xff]
  %v988 = vld [vmem:[%s0 + $0x60] sm:$0xf]
  %v989 = vld [vmem:[%s467] sm:$0x3f]
  %v991 = vsel %vm67, %v983, 0
  %v994 = vsel %vm67, %v984, 0
  %v997 = vsel %vm67, %v985, 0
  %v1000 = vsel %vm67, %v986, 0
  %v1003 = vsel %vm67, %v987, 0
  %v1006 = vsel %vm67, %v988, 0
  %v1009 = vsel %vm86, %v989, 0
  %1011 = vmatpush.msra.mxu0 0.0
  %1012 = vmatpush.msra.mxu0 0.0
  %1013 = vmatpush.msra.mxu0 0.0
  %1014 = vmatpush.msra.mxu0 0.0
  %1015 = vmatpush.msra.mxu0 0.0
  %1016 = vmatpush.msra.mxu0 0.0
  %1017 = vmatpush.msra.mxu0 0.0
  %1018 = vmatpush.msra.mxu0 0.0
  %1019 = vmatpush.msra.mxu0 0.0
  %1020 = vmatpush.msra.mxu0 0.0
  %1021 = vmatpush.msra.mxu0 0.0
  %1022 = vmatpush.msra.mxu0 0.0
  %1023 = vmatpush.msra.mxu0 0.0
  %1024 = vmatpush.msra.mxu0 0.0
  %1025 = vmatpush.msra.mxu0 0.0
  %1026 = vmatpush.msra.mxu0 %v1009
  %1027 = vmatmul.f32.gmra.mxu0 %v991
  %v1028 = vpop.f32.mrf.mxu0
  %v1029 = vadd.f32 0.0, %v1028
  %1030 = vmatmul.f32.gmra.mxu0 %v994
  %v1031 = vpop.f32.mrf.mxu0
  %v1032 = vadd.f32 0.0, %v1031
  %1033 = vmatmul.f32.gmra.mxu0 %v997
  %v1034 = vpop.f32.mrf.mxu0
  %v1035 = vadd.f32 0.0, %v1034
  %1036 = vmatmul.f32.gmra.mxu0 %v1000
  %v1037 = vpop.f32.mrf.mxu0
  %v1038 = vadd.f32 0.0, %v1037
  %1039 = vmatmul.f32.gmra.mxu0 %v1003
  %v1040 = vpop.f32.mrf.mxu0
  %v1041 = vadd.f32 0.0, %v1040
  %1042 = vmatmul.f32.gmra.mxu0 %v1006
  %v1043 = vpop.f32.mrf.mxu0
  %v1044 = vadd.f32 0.0, %v1043
  %1045 = vdwg.mxu0
  %v1046 = vadd.f32 %v977, %v1029
  %v1047 = vadd.f32 %v978, %v1032
  %v1048 = vadd.f32 %v979, %v1035
  %v1049 = vadd.f32 %v980, %v1038
  %v1050 = vadd.f32 %v981, %v1041
  %v1051 = vadd.f32 %v982, %v1044
  %1052 = vst.msk [vmem:[#allocation2 + $0x2c] sm:$0xff] %vm531, %v1046
  %1053 = vst.msk [vmem:[#allocation2 + $0x34] sm:$0xff] %vm531, %v1047
  %1054 = vst.msk [vmem:[#allocation2 + $0x3c] sm:$0xff] %vm531, %v1048
  %1055 = vst.msk [vmem:[#allocation2 + $0x44] sm:$0xff] %vm531, %v1049
  %1056 = vst.msk [vmem:[#allocation2 + $0x4c] sm:$0xff] %vm531, %v1050
  %1057 = vst.msk [vmem:[#allocation2 + $0x54] sm:$0xf] %vm537, %v1051
  %v1058 = vsel %vm531, %v1046, 0.0
  %v1059 = vsel %vm531, %v1047, 0.0
  %v1060 = vadd.f32 %v1058, %v1059
  %v1061 = vsel %vm531, %v1048, 0.0
  %v1062 = vadd.f32 %v1060, %v1061
  %v1063 = vsel %vm531, %v1049, 0.0
  %v1064 = vadd.f32 %v1062, %v1063
  %v1065 = vsel %vm531, %v1050, 0.0
  %v1066 = vadd.f32 %v1064, %v1065
  %v1067 = vsel %vm537, %v1051, 0.0
  %v1068 = vadd.f32 %v1066, %v1067
  %v1069 = vrot.slane %v1068, 4
  %v1070 = vadd.f32 %v1068, %v1069
  %v1071 = vrot.slane %v1070, 2
  %v1072 = vadd.f32 %v1070, %v1071
  %v1073 = vrot.slane %v1072, 1
  %v1074 = vadd.f32 %v1072, %v1073
  %v1075 = vadd.f32 %v556, %v1074
  %v1076 = vmul.f32 %v1046, %v1046
  %v1077 = vmul.f32 %v1047, %v1047
  %v1078 = vmul.f32 %v1048, %v1048
  %v1079 = vmul.f32 %v1049, %v1049
  %v1080 = vmul.f32 %v1050, %v1050
  %v1081 = vmul.f32 %v1051, %v1051
  %v1082 = vsel %vm531, %v1076, 0.0
  %v1083 = vsel %vm531, %v1077, 0.0
  %v1084 = vadd.f32 %v1082, %v1083
  %v1085 = vsel %vm531, %v1078, 0.0
  %v1086 = vadd.f32 %v1084, %v1085
  %v1087 = vsel %vm531, %v1079, 0.0
  %v1088 = vadd.f32 %v1086, %v1087
  %v1089 = vsel %vm531, %v1080, 0.0
  %v1090 = vadd.f32 %v1088, %v1089
  %v1091 = vsel %vm537, %v1081, 0.0
  %v1092 = vadd.f32 %v1090, %v1091
  %v1093 = vrot.slane %v1092, 4
  %v1094 = vadd.f32 %v1092, %v1093
  %v1095 = vrot.slane %v1094, 2
  %v1096 = vadd.f32 %v1094, %v1095
  %v1097 = vrot.slane %v1096, 1
  %v1098 = vadd.f32 %v1096, %v1097
  %v1099 = vadd.f32 %v580, %v1098
  %v1100 = vld [vmem:[%s3] sm:$0xff]
  %v1101 = vld [vmem:[%s3 + $0x8] sm:$0xff]
  %v1102 = vld [vmem:[%s3 + $0x10] sm:$0xff]
  %v1103 = vld [vmem:[%s3 + $0x18] sm:$0xff]
  %v1104 = vld [vmem:[%s3 + $0x20] sm:$0xff]
  %v1105 = vld [vmem:[%s3 + $0x28] sm:$0xff]
  %v1106 = vld [vmem:[%s3 + $0x30] sm:$0xff]
  %v1107 = vld [vmem:[%s3 + $0x38] sm:$0xff]
  %v1108 = vld [vmem:[%s3 + $0x40] sm:$0xff]
  %v1109 = vld [vmem:[%s3 + $0x48] sm:$0xff]
  %v1111 = vsel %vm531, %v1075, 0
  %1113 = vmatpush.msra.mxu0 0.0
  %1114 = vmatpush.msra.mxu0 0.0
  %1115 = vmatpush.msra.mxu0 0.0
  %1116 = vmatpush.msra.mxu0 0.0
  %1117 = vmatpush.msra.mxu0 0.0
  %1118 = vmatpush.msra.mxu0 0.0
  %1119 = vmatpush.msra.mxu0 %v1109
  %1120 = vmatpush.msra.mxu0 %v1108
  %1121 = vmatpush.msra.mxu0 %v1107
  %1122 = vmatpush.msra.mxu0 %v1106
  %1123 = vmatpush.msra.mxu0 %v1105
  %1124 = vmatpush.msra.mxu0 %v1104
  %1125 = vmatpush.msra.mxu0 %v1103
  %1126 = vmatpush.msra.mxu0 %v1102
  %1127 = vmatpush.msra.mxu0 %v1101
  %1128 = vmatpush.msra.mxu0 %v1100
  %1129 = vmatmul.f32.gmra.mxu0 %v1111
  %v1130 = vpop.f32.mrf.mxu0
  %v1131 = vadd.f32 0.0, %v1130
  %1132 = vdwg.mxu0
  %v1134 = vsel %vm531, %v1099, 0
  %1136 = vmatpush.msra.mxu0 0.0
  %1137 = vmatpush.msra.mxu0 0.0
  %1138 = vmatpush.msra.mxu0 0.0
  %1139 = vmatpush.msra.mxu0 0.0
  %1140 = vmatpush.msra.mxu0 0.0
  %1141 = vmatpush.msra.mxu0 0.0
  %1142 = vmatpush.msra.mxu0 %v1109
  %1143 = vmatpush.msra.mxu0 %v1108
  %1144 = vmatpush.msra.mxu0 %v1107
  %1145 = vmatpush.msra.mxu0 %v1106
  %1146 = vmatpush.msra.mxu0 %v1105
  %1147 = vmatpush.msra.mxu0 %v1104
  %1148 = vmatpush.msra.mxu0 %v1103
  %1149 = vmatpush.msra.mxu0 %v1102
  %1150 = vmatpush.msra.mxu0 %v1101
  %1151 = vmatpush.msra.mxu0 %v1100
  %1152 = vmatmul.f32.gmra.mxu0 %v1134
  %v1153 = vpop.f32.mrf.mxu0
  %v1154 = vadd.f32 0.0, %v1153
  %1155 = vdwg.mxu0
  %v1156 = vmul.f32 %v1131, 0.0022727272
  %v1157 = vmul.f32 %v1154, 0.0022727272
  %v1158 = vmul.f32 %v1156, %v1156
  %v1159 = vsub.f32 %v1157, %v1158
  %v1160 = vld [vmem:[%s2] sm:$0x3]
  %v1161 = vadd.f32 %v1159, 1e-05
  %v1162 = vrsqrt.pop %v1161
  %v1163 = vmul.f32 %v1162, %v1161
  %v1164 = vmul.f32 %v1163, %v1162
  %v1165 = vmul.f32 0.5, %v1164
  %v1166 = vsub.f32 1.5, %v1165
  %v1167 = vmul.f32 %v1162, %v1166
  %vm1168 = vweird.f32 %v1161
  %vm1169 = vweird.f32 %v1162
  %vm1170 = vmor %vm1168, %vm1169
  %v1171 = vsel %vm1170, %v1162, %v1167
  %v1172 = vmul.f32 %v1160, %v1171
  %v1173 = vmul.f32 %v1156, %v1172
  %v1175 = vrot.slane %v1173, 7
  %v1177 = vsub.f32 %v1160, %v1175
  %v1178 = vld [vmem:[#allocation2] sm:$0xff]
  %v1179 = vld [vmem:[#allocation2 + $0x8] sm:$0xff]
  %v1180 = vld [vmem:[#allocation2 + $0x10] sm:$0xff]
  %v1181 = vld [vmem:[#allocation2 + $0x18] sm:$0xff]
  %v1182 = vld [vmem:[#allocation2 + $0x20] sm:$0xff]
  %v1183 = vld [vmem:[#allocation2 + $0x28] sm:$0xff]
  %v1184 = vld [vmem:[#allocation2 + $0x30] sm:$0xff]
  %v1185 = vld [vmem:[#allocation2 + $0x38] sm:$0xff]
  %v1186 = vld [vmem:[#allocation2 + $0x40] sm:$0xff]
  %v1187 = vld [vmem:[#allocation2 + $0x48] sm:$0xff]
  %v1188 = vld [vmem:[#allocation2 + $0x50] sm:$0xff]
  %v1189 = vperm.slane %v1172, 0
  %v1190 = vmul.f32 %v1178, %v1189
  %v1191 = vmul.f32 %v1179, %v1189
  %v1192 = vmul.f32 %v1180, %v1189
  %v1193 = vmul.f32 %v1181, %v1189
  %v1194 = vmul.f32 %v1182, %v1189
  %v1195 = vmul.f32 %v1183, %v1189
  %v1196 = vmul.f32 %v1184, %v1189
  %v1197 = vmul.f32 %v1185, %v1189
  %v1198 = vmul.f32 %v1186, %v1189
  %v1199 = vmul.f32 %v1187, %v1189
  %v1200 = vmul.f32 %v1188, %v1189
  %v1201 = vperm.slane %v1177, 1
  %v1202 = vadd.f32 %v1190, %v1201
  %v1203 = vadd.f32 %v1191, %v1201
  %v1204 = vadd.f32 %v1192, %v1201
  %v1205 = vadd.f32 %v1193, %v1201
  %v1206 = vadd.f32 %v1194, %v1201
  %v1207 = vadd.f32 %v1195, %v1201
  %v1208 = vadd.f32 %v1196, %v1201
  %v1209 = vadd.f32 %v1197, %v1201
  %v1210 = vadd.f32 %v1198, %v1201
  %v1211 = vadd.f32 %v1199, %v1201
  %v1212 = vadd.f32 %v1200, %v1201
  %1213 = vst.msk [vmem:[#allocation2] sm:$0xff] %vm531, %v1202
  %1214 = vst.msk [vmem:[#allocation2 + $0x8] sm:$0xff] %vm531, %v1203
  %1215 = vst.msk [vmem:[#allocation2 + $0x10] sm:$0xff] %vm531, %v1204
  %1216 = vst.msk [vmem:[#allocation2 + $0x18] sm:$0xff] %vm531, %v1205
  %1217 = vst.msk [vmem:[#allocation2 + $0x20] sm:$0xff] %vm531, %v1206
  %1218 = vst.msk [vmem:[#allocation2 + $0x28] sm:$0xff] %vm531, %v1207
  %1219 = vst.msk [vmem:[#allocation2 + $0x30] sm:$0xff] %vm531, %v1208
  %1220 = vst.msk [vmem:[#allocation2 + $0x38] sm:$0xff] %vm531, %v1209
  %1221 = vst.msk [vmem:[#allocation2 + $0x40] sm:$0xff] %vm531, %v1210
  %1222 = vst.msk [vmem:[#allocation2 + $0x48] sm:$0xff] %vm531, %v1211
  %1223 = vst.msk [vmem:[#allocation2 + $0x50] sm:$0xff] %vm531, %v1212
  %v1224 = vlaneseq
  %v1225 = vand.u32 %v1224, 127
  %v1226 = vlaneseq
  %v1227 = vshrl.u32 %v1226, 7
  %v1228 = vadd.s32 %v1227, 8
  %v1229 = vadd.s32 %v1227, 16
  %v1230 = vmul.u32 %v1227, 2
  %v1231 = vmul.u32 %v1228, 2
  %v1232 = vmul.u32 %v1229, 2
  %vm1233 = vcmp.eq.s32.totalorder %v1225, %v1230
  %vm1234 = vcmp.eq.s32.totalorder %v1225, %v1231
  %vm1235 = vcmp.eq.s32.totalorder %v1225, %v1232
  %v1236 = vsel %vm1233, 1, 0
  %v1237 = vsel %vm1234, 1, 0
  %v1238 = vsel %vm1235, 1, 0
  %v1239 = vcvt.s32.f32 %v1236
  %v1240 = vcvt.s32.f32 %v1237
  %v1241 = vcvt.s32.f32 %v1238
  %v1242 = vld [vmem:[#allocation2] sm:$0xff]
  %v1243 = vld [vmem:[#allocation2 + $0x8] sm:$0xff]
  %v1244 = vld [vmem:[#allocation2 + $0x10] sm:$0xff]
  %v1245 = vld [vmem:[#allocation2 + $0x18] sm:$0xff]
  %v1246 = vld [vmem:[#allocation2 + $0x20] sm:$0x7f]
  %v1247 = vld [vmem:[%s4] sm:$0xff]
  %v1248 = vld [vmem:[%s4 + $0x8] sm:$0xff]
  %v1249 = vld [vmem:[%s4 + $0x10] sm:$0xff]
  %v1250 = vld [vmem:[%s4 + $0x18] sm:$0xff]
  %v1251 = vld [vmem:[%s4 + $0x20] sm:$0xff]
  %v1252 = vld [vmem:[%s4 + $0x28] sm:$0xff]
  %v1253 = vld [vmem:[%s4 + $0x30] sm:$0xff]
  %v1254 = vld [vmem:[%s4 + $0x38] sm:$0xff]
  %v1255 = vld [vmem:[%s4 + $0x40] sm:$0xff]
  %v1256 = vld [vmem:[%s4 + $0x48] sm:$0xff]
  %v1257 = vld [vmem:[#allocation2 + $0x1] sm:$0xff]
  %v1258 = vld [vmem:[#allocation2 + $0x9] sm:$0xff]
  %v1259 = vld [vmem:[#allocation2 + $0x11] sm:$0xff]
  %v1260 = vld [vmem:[#allocation2 + $0x19] sm:$0xff]
  %v1261 = vld [vmem:[#allocation2 + $0x21] sm:$0x7f]
  %s1262 = scalar_lea.vmem %s4, 80
  %v1263 = vld [vmem:[%s1262] sm:$0xff]
  %v1264 = vld [vmem:[%s1262 + $0x8] sm:$0xff]
  %v1265 = vld [vmem:[%s1262 + $0x10] sm:$0xff]
  %v1266 = vld [vmem:[%s1262 + $0x18] sm:$0xff]
  %v1267 = vld [vmem:[%s1262 + $0x20] sm:$0xff]
  %v1268 = vld [vmem:[%s1262 + $0x28] sm:$0xff]
  %v1269 = vld [vmem:[%s1262 + $0x30] sm:$0xff]
  %v1270 = vld [vmem:[%s1262 + $0x38] sm:$0xff]
  %v1271 = vld [vmem:[%s1262 + $0x40] sm:$0xff]
  %v1272 = vld [vmem:[%s1262 + $0x48] sm:$0xff]
  %v1274 = vsel %vm531, %v1257, 0
  %v1277 = vsel %vm531, %v1258, 0
  %v1280 = vsel %vm531, %v1259, 0
  %v1283 = vsel %vm531, %v1260, 0
  %v1286 = vsel %vm531, %v1261, 0
  %1288 = vmatpush.msra.mxu0 0.0
  %1289 = vmatpush.msra.mxu0 0.0
  %1290 = vmatpush.msra.mxu0 0.0
  %1291 = vmatpush.msra.mxu0 0.0
  %1292 = vmatpush.msra.mxu0 0.0
  %1293 = vmatpush.msra.mxu0 0.0
  %1294 = vmatpush.msra.mxu0 %v1272
  %1295 = vmatpush.msra.mxu0 %v1271
  %1296 = vmatpush.msra.mxu0 %v1270
  %1297 = vmatpush.msra.mxu0 %v1269
  %1298 = vmatpush.msra.mxu0 %v1268
  %1299 = vmatpush.msra.mxu0 %v1267
  %1300 = vmatpush.msra.mxu0 %v1266
  %1301 = vmatpush.msra.mxu0 %v1265
  %1302 = vmatpush.msra.mxu0 %v1264
  %1303 = vmatpush.msra.mxu0 %v1263
  %1304 = vmatmul.f32.gmra.mxu0 %v1274
  %v1305 = vpop.f32.mrf.mxu0
  %v1306 = vadd.f32 0.0, %v1305
  %1307 = vmatmul.f32.gmra.mxu0 %v1277
  %v1308 = vpop.f32.mrf.mxu0
  %v1309 = vadd.f32 0.0, %v1308
  %1310 = vmatmul.f32.gmra.mxu0 %v1280
  %v1311 = vpop.f32.mrf.mxu0
  %v1312 = vadd.f32 0.0, %v1311
  %1313 = vmatmul.f32.gmra.mxu0 %v1283
  %v1314 = vpop.f32.mrf.mxu0
  %v1315 = vadd.f32 0.0, %v1314
  %1316 = vmatmul.f32.gmra.mxu0 %v1286
  %v1317 = vpop.f32.mrf.mxu0
  %v1318 = vadd.f32 0.0, %v1317
  %1319 = vdwg.mxu0
  %v1321 = vsel %vm531, %v1242, 0
  %v1324 = vsel %vm531, %v1243, 0
  %v1327 = vsel %vm531, %v1244, 0
  %v1330 = vsel %vm531, %v1245, 0
  %v1333 = vsel %vm531, %v1246, 0
  %1335 = vmatpush.msra.mxu0 0.0
  %1336 = vmatpush.msra.mxu0 0.0
  %1337 = vmatpush.msra.mxu0 0.0
  %1338 = vmatpush.msra.mxu0 0.0
  %1339 = vmatpush.msra.mxu0 0.0
  %1340 = vmatpush.msra.mxu0 0.0
  %1341 = vmatpush.msra.mxu0 %v1256
  %1342 = vmatpush.msra.mxu0 %v1255
  %1343 = vmatpush.msra.mxu0 %v1254
  %1344 = vmatpush.msra.mxu0 %v1253
  %1345 = vmatpush.msra.mxu0 %v1252
  %1346 = vmatpush.msra.mxu0 %v1251
  %1347 = vmatpush.msra.mxu0 %v1250
  %1348 = vmatpush.msra.mxu0 %v1249
  %1349 = vmatpush.msra.mxu0 %v1248
  %1350 = vmatpush.msra.mxu0 %v1247
  %1351 = vmatmul.f32.gmra.mxu0 %v1321
  %v1352 = vpop.f32.mrf.mxu0
  %v1353 = vadd.f32 %v1306, %v1352
  %1354 = vmatmul.f32.gmra.mxu0 %v1324
  %v1355 = vpop.f32.mrf.mxu0
  %v1356 = vadd.f32 %v1309, %v1355
  %1357 = vmatmul.f32.gmra.mxu0 %v1327
  %v1358 = vpop.f32.mrf.mxu0
  %v1359 = vadd.f32 %v1312, %v1358
  %1360 = vmatmul.f32.gmra.mxu0 %v1330
  %v1361 = vpop.f32.mrf.mxu0
  %v1362 = vadd.f32 %v1315, %v1361
  %1363 = vmatmul.f32.gmra.mxu0 %v1333
  %v1364 = vpop.f32.mrf.mxu0
  %v1365 = vadd.f32 %v1318, %v1364
  %1366 = vdwg.mxu0
  %v1367 = vld [vmem:[#allocation2 + $0x2] sm:$0xff]
  %v1368 = vld [vmem:[#allocation2 + $0xa] sm:$0xff]
  %v1369 = vld [vmem:[#allocation2 + $0x12] sm:$0xff]
  %v1370 = vld [vmem:[#allocation2 + $0x1a] sm:$0xff]
  %v1371 = vld [vmem:[#allocation2 + $0x22] sm:$0x7f]
  %s1372 = scalar_lea.vmem %s4, 160
  %v1373 = vld [vmem:[%s1372] sm:$0xff]
  %v1374 = vld [vmem:[%s1372 + $0x8] sm:$0xff]
  %v1375 = vld [vmem:[%s1372 + $0x10] sm:$0xff]
  %v1376 = vld [vmem:[%s1372 + $0x18] sm:$0xff]
  %v1377 = vld [vmem:[%s1372 + $0x20] sm:$0xff]
  %v1378 = vld [vmem:[%s1372 + $0x28] sm:$0xff]
  %v1379 = vld [vmem:[%s1372 + $0x30] sm:$0xff]
  %v1380 = vld [vmem:[%s1372 + $0x38] sm:$0xff]
  %v1381 = vld [vmem:[%s1372 + $0x40] sm:$0xff]
  %v1382 = vld [vmem:[%s1372 + $0x48] sm:$0xff]
  %v1384 = vsel %vm531, %v1367, 0
  %v1387 = vsel %vm531, %v1368, 0
  %v1390 = vsel %vm531, %v1369, 0
  %v1393 = vsel %vm531, %v1370, 0
  %v1396 = vsel %vm531, %v1371, 0
  %1398 = vmatpush.msra.mxu0 0.0
  %1399 = vmatpush.msra.mxu0 0.0
  %1400 = vmatpush.msra.mxu0 0.0
  %1401 = vmatpush.msra.mxu0 0.0
  %1402 = vmatpush.msra.mxu0 0.0
  %1403 = vmatpush.msra.mxu0 0.0
  %1404 = vmatpush.msra.mxu0 %v1382
  %1405 = vmatpush.msra.mxu0 %v1381
  %1406 = vmatpush.msra.mxu0 %v1380
  %1407 = vmatpush.msra.mxu0 %v1379
  %1408 = vmatpush.msra.mxu0 %v1378
  %1409 = vmatpush.msra.mxu0 %v1377
  %1410 = vmatpush.msra.mxu0 %v1376
  %1411 = vmatpush.msra.mxu0 %v1375
  %1412 = vmatpush.msra.mxu0 %v1374
  %1413 = vmatpush.msra.mxu0 %v1373
  %1414 = vmatmul.f32.gmra.mxu0 %v1384
  %v1415 = vpop.f32.mrf.mxu0
  %v1416 = vadd.f32 0.0, %v1415
  %1417 = vmatmul.f32.gmra.mxu0 %v1387
  %v1418 = vpop.f32.mrf.mxu0
  %v1419 = vadd.f32 0.0, %v1418
  %1420 = vmatmul.f32.gmra.mxu0 %v1390
  %v1421 = vpop.f32.mrf.mxu0
  %v1422 = vadd.f32 0.0, %v1421
  %1423 = vmatmul.f32.gmra.mxu0 %v1393
  %v1424 = vpop.f32.mrf.mxu0
  %v1425 = vadd.f32 0.0, %v1424
  %1426 = vmatmul.f32.gmra.mxu0 %v1396
  %v1427 = vpop.f32.mrf.mxu0
  %v1428 = vadd.f32 0.0, %v1427
  %1429 = vdwg.mxu0
  %v1430 = vadd.f32 %v1353, %v1416
  %v1431 = vadd.f32 %v1356, %v1419
  %v1432 = vadd.f32 %v1359, %v1422
  %v1433 = vadd.f32 %v1362, %v1425
  %v1434 = vadd.f32 %v1365, %v1428
  %v1435 = vld [vmem:[#allocation2 + $0x3] sm:$0xff]
  %v1436 = vld [vmem:[#allocation2 + $0xb] sm:$0xff]
  %v1437 = vld [vmem:[#allocation2 + $0x13] sm:$0xff]
  %v1438 = vld [vmem:[#allocation2 + $0x1b] sm:$0xff]
  %v1439 = vld [vmem:[#allocation2 + $0x23] sm:$0x7f]
  %s1440 = scalar_lea.vmem %s4, 240
  %v1441 = vld [vmem:[%s1440] sm:$0xff]
  %v1442 = vld [vmem:[%s1440 + $0x8] sm:$0xff]
  %v1443 = vld [vmem:[%s1440 + $0x10] sm:$0xff]
  %v1444 = vld [vmem:[%s1440 + $0x18] sm:$0xff]
  %v1445 = vld [vmem:[%s1440 + $0x20] sm:$0xff]
  %v1446 = vld [vmem:[%s1440 + $0x28] sm:$0xff]
  %v1447 = vld [vmem:[%s1440 + $0x30] sm:$0xff]
  %v1448 = vld [vmem:[%s1440 + $0x38] sm:$0xff]
  %v1449 = vld [vmem:[%s1440 + $0x40] sm:$0xff]
  %v1450 = vld [vmem:[%s1440 + $0x48] sm:$0xff]
  %v1452 = vsel %vm531, %v1435, 0
  %v1455 = vsel %vm531, %v1436, 0
  %v1458 = vsel %vm531, %v1437, 0
  %v1461 = vsel %vm531, %v1438, 0
  %v1464 = vsel %vm531, %v1439, 0
  %1466 = vmatpush.msra.mxu0 0.0
  %1467 = vmatpush.msra.mxu0 0.0
  %1468 = vmatpush.msra.mxu0 0.0
  %1469 = vmatpush.msra.mxu0 0.0
  %1470 = vmatpush.msra.mxu0 0.0
  %1471 = vmatpush.msra.mxu0 0.0
  %1472 = vmatpush.msra.mxu0 %v1450
  %1473 = vmatpush.msra.mxu0 %v1449
  %1474 = vmatpush.msra.mxu0 %v1448
  %1475 = vmatpush.msra.mxu0 %v1447
  %1476 = vmatpush.msra.mxu0 %v1446
  %1477 = vmatpush.msra.mxu0 %v1445
  %1478 = vmatpush.msra.mxu0 %v1444
  %1479 = vmatpush.msra.mxu0 %v1443
  %1480 = vmatpush.msra.mxu0 %v1442
  %1481 = vmatpush.msra.mxu0 %v1441
  %1482 = vmatmul.f32.gmra.mxu0 %v1452
  %v1483 = vpop.f32.mrf.mxu0
  %v1484 = vadd.f32 0.0, %v1483
  %1485 = vmatmul.f32.gmra.mxu0 %v1455
  %v1486 = vpop.f32.mrf.mxu0
  %v1487 = vadd.f32 0.0, %v1486
  %1488 = vmatmul.f32.gmra.mxu0 %v1458
  %v1489 = vpop.f32.mrf.mxu0
  %v1490 = vadd.f32 0.0, %v1489
  %1491 = vmatmul.f32.gmra.mxu0 %v1461
  %v1492 = vpop.f32.mrf.mxu0
  %v1493 = vadd.f32 0.0, %v1492
  %1494 = vmatmul.f32.gmra.mxu0 %v1464
  %v1495 = vpop.f32.mrf.mxu0
  %v1496 = vadd.f32 0.0, %v1495
  %1497 = vdwg.mxu0
  %v1498 = vadd.f32 %v1430, %v1484
  %v1499 = vadd.f32 %v1431, %v1487
  %v1500 = vadd.f32 %v1432, %v1490
  %v1501 = vadd.f32 %v1433, %v1493
  %v1502 = vadd.f32 %v1434, %v1496
  %v1503 = vld [vmem:[#allocation2 + $0x4] sm:$0xff]
  %v1504 = vld [vmem:[#allocation2 + $0xc] sm:$0xff]
  %v1505 = vld [vmem:[#allocation2 + $0x14] sm:$0xff]
  %v1506 = vld [vmem:[#allocation2 + $0x1c] sm:$0xff]
  %v1507 = vld [vmem:[#allocation2 + $0x24] sm:$0x7f]
  %s1508 = scalar_lea.vmem %s4, 320
  %v1509 = vld [vmem:[%s1508] sm:$0xff]
  %v1510 = vld [vmem:[%s1508 + $0x8] sm:$0xff]
  %v1511 = vld [vmem:[%s1508 + $0x10] sm:$0xff]
  %v1512 = vld [vmem:[%s1508 + $0x18] sm:$0xff]
  %v1513 = vld [vmem:[%s1508 + $0x20] sm:$0xff]
  %v1514 = vld [vmem:[%s1508 + $0x28] sm:$0xff]
  %v1515 = vld [vmem:[%s1508 + $0x30] sm:$0xff]
  %v1516 = vld [vmem:[%s1508 + $0x38] sm:$0xff]
  %v1517 = vld [vmem:[%s1508 + $0x40] sm:$0xff]
  %v1518 = vld [vmem:[%s1508 + $0x48] sm:$0xff]
  %v1520 = vsel %vm531, %v1503, 0
  %v1523 = vsel %vm531, %v1504, 0
  %v1526 = vsel %vm531, %v1505, 0
  %v1529 = vsel %vm531, %v1506, 0
  %v1532 = vsel %vm531, %v1507, 0
  %1534 = vmatpush.msra.mxu0 0.0
  %1535 = vmatpush.msra.mxu0 0.0
  %1536 = vmatpush.msra.mxu0 0.0
  %1537 = vmatpush.msra.mxu0 0.0
  %1538 = vmatpush.msra.mxu0 0.0
  %1539 = vmatpush.msra.mxu0 0.0
  %1540 = vmatpush.msra.mxu0 %v1518
  %1541 = vmatpush.msra.mxu0 %v1517
  %1542 = vmatpush.msra.mxu0 %v1516
  %1543 = vmatpush.msra.mxu0 %v1515
  %1544 = vmatpush.msra.mxu0 %v1514
  %1545 = vmatpush.msra.mxu0 %v1513
  %1546 = vmatpush.msra.mxu0 %v1512
  %1547 = vmatpush.msra.mxu0 %v1511
  %1548 = vmatpush.msra.mxu0 %v1510
  %1549 = vmatpush.msra.mxu0 %v1509
  %1550 = vmatmul.f32.gmra.mxu0 %v1520
  %v1551 = vpop.f32.mrf.mxu0
  %v1552 = vadd.f32 0.0, %v1551
  %1553 = vmatmul.f32.gmra.mxu0 %v1523
  %v1554 = vpop.f32.mrf.mxu0
  %v1555 = vadd.f32 0.0, %v1554
  %1556 = vmatmul.f32.gmra.mxu0 %v1526
  %v1557 = vpop.f32.mrf.mxu0
  %v1558 = vadd.f32 0.0, %v1557
  %1559 = vmatmul.f32.gmra.mxu0 %v1529
  %v1560 = vpop.f32.mrf.mxu0
  %v1561 = vadd.f32 0.0, %v1560
  %1562 = vmatmul.f32.gmra.mxu0 %v1532
  %v1563 = vpop.f32.mrf.mxu0
  %v1564 = vadd.f32 0.0, %v1563
  %1565 = vdwg.mxu0
  %v1566 = vadd.f32 %v1498, %v1552
  %v1567 = vadd.f32 %v1499, %v1555
  %v1568 = vadd.f32 %v1500, %v1558
  %v1569 = vadd.f32 %v1501, %v1561
  %v1570 = vadd.f32 %v1502, %v1564
  %v1571 = vld [vmem:[#allocation2 + $0x5] sm:$0xff]
  %v1572 = vld [vmem:[#allocation2 + $0xd] sm:$0xff]
  %v1573 = vld [vmem:[#allocation2 + $0x15] sm:$0xff]
  %v1574 = vld [vmem:[#allocation2 + $0x1d] sm:$0xff]
  %v1575 = vld [vmem:[#allocation2 + $0x25] sm:$0x7f]
  %s1576 = scalar_lea.vmem %s4, 400
  %v1577 = vld [vmem:[%s1576] sm:$0xff]
  %v1578 = vld [vmem:[%s1576 + $0x8] sm:$0xff]
  %v1579 = vld [vmem:[%s1576 + $0x10] sm:$0xff]
  %v1580 = vld [vmem:[%s1576 + $0x18] sm:$0xff]
  %v1581 = vld [vmem:[%s1576 + $0x20] sm:$0xff]
  %v1582 = vld [vmem:[%s1576 + $0x28] sm:$0xff]
  %v1583 = vld [vmem:[%s1576 + $0x30] sm:$0xff]
  %v1584 = vld [vmem:[%s1576 + $0x38] sm:$0xff]
  %v1585 = vld [vmem:[%s1576 + $0x40] sm:$0xff]
  %v1586 = vld [vmem:[%s1576 + $0x48] sm:$0xff]
  %v1588 = vsel %vm531, %v1571, 0
  %v1591 = vsel %vm531, %v1572, 0
  %v1594 = vsel %vm531, %v1573, 0
  %v1597 = vsel %vm531, %v1574, 0
  %v1600 = vsel %vm531, %v1575, 0
  %1602 = vmatpush.msra.mxu0 0.0
  %1603 = vmatpush.msra.mxu0 0.0
  %1604 = vmatpush.msra.mxu0 0.0
  %1605 = vmatpush.msra.mxu0 0.0
  %1606 = vmatpush.msra.mxu0 0.0
  %1607 = vmatpush.msra.mxu0 0.0
  %1608 = vmatpush.msra.mxu0 %v1586
  %1609 = vmatpush.msra.mxu0 %v1585
  %1610 = vmatpush.msra.mxu0 %v1584
  %1611 = vmatpush.msra.mxu0 %v1583
  %1612 = vmatpush.msra.mxu0 %v1582
  %1613 = vmatpush.msra.mxu0 %v1581
  %1614 = vmatpush.msra.mxu0 %v1580
  %1615 = vmatpush.msra.mxu0 %v1579
  %1616 = vmatpush.msra.mxu0 %v1578
  %1617 = vmatpush.msra.mxu0 %v1577
  %1618 = vmatmul.f32.gmra.mxu0 %v1588
  %v1619 = vpop.f32.mrf.mxu0
  %v1620 = vadd.f32 0.0, %v1619
  %1621 = vmatmul.f32.gmra.mxu0 %v1591
  %v1622 = vpop.f32.mrf.mxu0
  %v1623 = vadd.f32 0.0, %v1622
  %1624 = vmatmul.f32.gmra.mxu0 %v1594
  %v1625 = vpop.f32.mrf.mxu0
  %v1626 = vadd.f32 0.0, %v1625
  %1627 = vmatmul.f32.gmra.mxu0 %v1597
  %v1628 = vpop.f32.mrf.mxu0
  %v1629 = vadd.f32 0.0, %v1628
  %1630 = vmatmul.f32.gmra.mxu0 %v1600
  %v1631 = vpop.f32.mrf.mxu0
  %v1632 = vadd.f32 0.0, %v1631
  %1633 = vdwg.mxu0
  %v1634 = vadd.f32 %v1566, %v1620
  %v1635 = vadd.f32 %v1567, %v1623
  %v1636 = vadd.f32 %v1568, %v1626
  %v1637 = vadd.f32 %v1569, %v1629
  %v1638 = vadd.f32 %v1570, %v1632
  %vm1639 = vcmask 318464
  %v1641 = vsel %vm1639, %v1239, 0
  %v1644 = vsel %vm1639, %v1240, 0
  %v1647 = vsel %vm1639, %v1241, 0
  %vm1649 = vcmask 1046528
  %v1651 = vsel %vm1649, %v1638, 0
  %1653 = vmatpush.msra.mxu0 0.0
  %1654 = vmatpush.msra.mxu0 0.0
  %1655 = vmatpush.msra.mxu0 0.0
  %1656 = vmatpush.msra.mxu0 0.0
  %1657 = vmatpush.msra.mxu0 0.0
  %1658 = vmatpush.msra.mxu0 0.0
  %1659 = vmatpush.msra.mxu0 0.0
  %1660 = vmatpush.msra.mxu0 0.0
  %1661 = vmatpush.msra.mxu0 0.0
  %1662 = vmatpush.msra.mxu0 0.0
  %1663 = vmatpush.msra.mxu0 0.0
  %1664 = vmatpush.msra.mxu0 %v1651
  %1665 = vmatpush.msra.mxu0 %v1637
  %1666 = vmatpush.msra.mxu0 %v1636
  %1667 = vmatpush.msra.mxu0 %v1635
  %1668 = vmatpush.msra.mxu0 %v1634
  %1669 = vmatmul.f32.gmra.mxu0 %v1641
  %v1670 = vpop.f32.mrf.mxu0
  %v1671 = vadd.f32 0.0, %v1670
  %1672 = vmatmul.f32.gmra.mxu0 %v1644
  %v1673 = vpop.f32.mrf.mxu0
  %v1674 = vadd.f32 0.0, %v1673
  %1675 = vmatmul.f32.gmra.mxu0 %v1647
  %v1676 = vpop.f32.mrf.mxu0
  %v1677 = vadd.f32 0.0, %v1676
  %1678 = vdwg.mxu0
  %1679 = vst [vmem:[#allocation3] sm:$0xff] %v1671
  %1680 = vst [vmem:[#allocation3 + $0x8] sm:$0xff] %v1674
  %1681 = vst [vmem:[#allocation3 + $0x10] sm:$0xf] %v1677
  %v1682 = vadd.f32 %v1671, %v1674
  %vm1683 = vcmask 1043456
  %v1684 = vsel %vm1683, %v1677, 0.0
  %v1685 = vadd.f32 %v1682, %v1684
  %v1686 = vrot.slane %v1685, 4
  %v1687 = vadd.f32 %v1685, %v1686
  %v1688 = vrot.slane %v1687, 2
  %v1689 = vadd.f32 %v1687, %v1688
  %v1690 = vrot.slane %v1689, 1
  %v1691 = vadd.f32 %v1689, %v1690
  %v1692 = vadd.f32 %v1691, 0.0
  %v1693 = vmul.f32 %v1671, %v1671
  %v1694 = vmul.f32 %v1674, %v1674
  %v1695 = vmul.f32 %v1677, %v1677
  %v1696 = vadd.f32 %v1693, %v1694
  %v1697 = vsel %vm1683, %v1695, 0.0
  %v1698 = vadd.f32 %v1696, %v1697
  %v1699 = vrot.slane %v1698, 4
  %v1700 = vadd.f32 %v1698, %v1699
  %v1701 = vrot.slane %v1700, 2
  %v1702 = vadd.f32 %v1700, %v1701
  %v1703 = vrot.slane %v1702, 1
  %v1704 = vadd.f32 %v1702, %v1703
  %v1705 = vadd.f32 %v1704, 0.0
  %v1706 = vld [vmem:[#allocation2 + $0x2c] sm:$0xff]
  %v1707 = vld [vmem:[#allocation2 + $0x34] sm:$0xff]
  %v1708 = vld [vmem:[#allocation2 + $0x3c] sm:$0xff]
  %v1709 = vld [vmem:[#allocation2 + $0x44] sm:$0xff]
  %v1710 = vld [vmem:[#allocation2 + $0x4c] sm:$0x7f]
  %v1711 = vld [vmem:[%s4] sm:$0xff]
  %v1712 = vld [vmem:[%s4 + $0x8] sm:$0xff]
  %v1713 = vld [vmem:[%s4 + $0x10] sm:$0xff]
  %v1714 = vld [vmem:[%s4 + $0x18] sm:$0xff]
  %v1715 = vld [vmem:[%s4 + $0x20] sm:$0xff]
  %v1716 = vld [vmem:[%s4 + $0x28] sm:$0xff]
  %v1717 = vld [vmem:[%s4 + $0x30] sm:$0xff]
  %v1718 = vld [vmem:[%s4 + $0x38] sm:$0xff]
  %v1719 = vld [vmem:[%s4 + $0x40] sm:$0xff]
  %v1720 = vld [vmem:[%s4 + $0x48] sm:$0xff]
  %v1721 = vld [vmem:[#allocation2 + $0x2d] sm:$0xff]
  %v1722 = vld [vmem:[#allocation2 + $0x35] sm:$0xff]
  %v1723 = vld [vmem:[#allocation2 + $0x3d] sm:$0xff]
  %v1724 = vld [vmem:[#allocation2 + $0x45] sm:$0xff]
  %v1725 = vld [vmem:[#allocation2 + $0x4d] sm:$0x7f]
  %v1726 = vld [vmem:[%s1262] sm:$0xff]
  %v1727 = vld [vmem:[%s1262 + $0x8] sm:$0xff]
  %v1728 = vld [vmem:[%s1262 + $0x10] sm:$0xff]
  %v1729 = vld [vmem:[%s1262 + $0x18] sm:$0xff]
  %v1730 = vld [vmem:[%s1262 + $0x20] sm:$0xff]
  %v1731 = vld [vmem:[%s1262 + $0x28] sm:$0xff]
  %v1732 = vld [vmem:[%s1262 + $0x30] sm:$0xff]
  %v1733 = vld [vmem:[%s1262 + $0x38] sm:$0xff]
  %v1734 = vld [vmem:[%s1262 + $0x40] sm:$0xff]
  %v1735 = vld [vmem:[%s1262 + $0x48] sm:$0xff]
  %v1737 = vsel %vm531, %v1721, 0
  %v1740 = vsel %vm531, %v1722, 0
  %v1743 = vsel %vm531, %v1723, 0
  %v1746 = vsel %vm531, %v1724, 0
  %v1749 = vsel %vm531, %v1725, 0
  %1751 = vmatpush.msra.mxu0 0.0
  %1752 = vmatpush.msra.mxu0 0.0
  %1753 = vmatpush.msra.mxu0 0.0
  %1754 = vmatpush.msra.mxu0 0.0
  %1755 = vmatpush.msra.mxu0 0.0
  %1756 = vmatpush.msra.mxu0 0.0
  %1757 = vmatpush.msra.mxu0 %v1735
  %1758 = vmatpush.msra.mxu0 %v1734
  %1759 = vmatpush.msra.mxu0 %v1733
  %1760 = vmatpush.msra.mxu0 %v1732
  %1761 = vmatpush.msra.mxu0 %v1731
  %1762 = vmatpush.msra.mxu0 %v1730
  %1763 = vmatpush.msra.mxu0 %v1729
  %1764 = vmatpush.msra.mxu0 %v1728
  %1765 = vmatpush.msra.mxu0 %v1727
  %1766 = vmatpush.msra.mxu0 %v1726
  %1767 = vmatmul.f32.gmra.mxu0 %v1737
  %v1768 = vpop.f32.mrf.mxu0
  %v1769 = vadd.f32 0.0, %v1768
  %1770 = vmatmul.f32.gmra.mxu0 %v1740
  %v1771 = vpop.f32.mrf.mxu0
  %v1772 = vadd.f32 0.0, %v1771
  %1773 = vmatmul.f32.gmra.mxu0 %v1743
  %v1774 = vpop.f32.mrf.mxu0
  %v1775 = vadd.f32 0.0, %v1774
  %1776 = vmatmul.f32.gmra.mxu0 %v1746
  %v1777 = vpop.f32.mrf.mxu0
  %v1778 = vadd.f32 0.0, %v1777
  %1779 = vmatmul.f32.gmra.mxu0 %v1749
  %v1780 = vpop.f32.mrf.mxu0
  %v1781 = vadd.f32 0.0, %v1780
  %1782 = vdwg.mxu0
  %v1784 = vsel %vm531, %v1706, 0
  %v1787 = vsel %vm531, %v1707, 0
  %v1790 = vsel %vm531, %v1708, 0
  %v1793 = vsel %vm531, %v1709, 0
  %v1796 = vsel %vm531, %v1710, 0
  %1798 = vmatpush.msra.mxu0 0.0
  %1799 = vmatpush.msra.mxu0 0.0
  %1800 = vmatpush.msra.mxu0 0.0
  %1801 = vmatpush.msra.mxu0 0.0
  %1802 = vmatpush.msra.mxu0 0.0
  %1803 = vmatpush.msra.mxu0 0.0
  %1804 = vmatpush.msra.mxu0 %v1720
  %1805 = vmatpush.msra.mxu0 %v1719
  %1806 = vmatpush.msra.mxu0 %v1718
  %1807 = vmatpush.msra.mxu0 %v1717
  %1808 = vmatpush.msra.mxu0 %v1716
  %1809 = vmatpush.msra.mxu0 %v1715
  %1810 = vmatpush.msra.mxu0 %v1714
  %1811 = vmatpush.msra.mxu0 %v1713
  %1812 = vmatpush.msra.mxu0 %v1712
  %1813 = vmatpush.msra.mxu0 %v1711
  %1814 = vmatmul.f32.gmra.mxu0 %v1784
  %v1815 = vpop.f32.mrf.mxu0
  %v1816 = vadd.f32 %v1769, %v1815
  %1817 = vmatmul.f32.gmra.mxu0 %v1787
  %v1818 = vpop.f32.mrf.mxu0
  %v1819 = vadd.f32 %v1772, %v1818
  %1820 = vmatmul.f32.gmra.mxu0 %v1790
  %v1821 = vpop.f32.mrf.mxu0
  %v1822 = vadd.f32 %v1775, %v1821
  %1823 = vmatmul.f32.gmra.mxu0 %v1793
  %v1824 = vpop.f32.mrf.mxu0
  %v1825 = vadd.f32 %v1778, %v1824
  %1826 = vmatmul.f32.gmra.mxu0 %v1796
  %v1827 = vpop.f32.mrf.mxu0
  %v1828 = vadd.f32 %v1781, %v1827
  %1829 = vdwg.mxu0
  %v1830 = vld [vmem:[#allocation2 + $0x2e] sm:$0xff]
  %v1831 = vld [vmem:[#allocation2 + $0x36] sm:$0xff]
  %v1832 = vld [vmem:[#allocation2 + $0x3e] sm:$0xff]
  %v1833 = vld [vmem:[#allocation2 + $0x46] sm:$0xff]
  %v1834 = vld [vmem:[#allocation2 + $0x4e] sm:$0x7f]
  %v1835 = vld [vmem:[%s1372] sm:$0xff]
  %v1836 = vld [vmem:[%s1372 + $0x8] sm:$0xff]
  %v1837 = vld [vmem:[%s1372 + $0x10] sm:$0xff]
  %v1838 = vld [vmem:[%s1372 + $0x18] sm:$0xff]
  %v1839 = vld [vmem:[%s1372 + $0x20] sm:$0xff]
  %v1840 = vld [vmem:[%s1372 + $0x28] sm:$0xff]
  %v1841 = vld [vmem:[%s1372 + $0x30] sm:$0xff]
  %v1842 = vld [vmem:[%s1372 + $0x38] sm:$0xff]
  %v1843 = vld [vmem:[%s1372 + $0x40] sm:$0xff]
  %v1844 = vld [vmem:[%s1372 + $0x48] sm:$0xff]
  %v1846 = vsel %vm531, %v1830, 0
  %v1849 = vsel %vm531, %v1831, 0
  %v1852 = vsel %vm531, %v1832, 0
  %v1855 = vsel %vm531, %v1833, 0
  %v1858 = vsel %vm531, %v1834, 0
  %1860 = vmatpush.msra.mxu0 0.0
  %1861 = vmatpush.msra.mxu0 0.0
  %1862 = vmatpush.msra.mxu0 0.0
  %1863 = vmatpush.msra.mxu0 0.0
  %1864 = vmatpush.msra.mxu0 0.0
  %1865 = vmatpush.msra.mxu0 0.0
  %1866 = vmatpush.msra.mxu0 %v1844
  %1867 = vmatpush.msra.mxu0 %v1843
  %1868 = vmatpush.msra.mxu0 %v1842
  %1869 = vmatpush.msra.mxu0 %v1841
  %1870 = vmatpush.msra.mxu0 %v1840
  %1871 = vmatpush.msra.mxu0 %v1839
  %1872 = vmatpush.msra.mxu0 %v1838
  %1873 = vmatpush.msra.mxu0 %v1837
  %1874 = vmatpush.msra.mxu0 %v1836
  %1875 = vmatpush.msra.mxu0 %v1835
  %1876 = vmatmul.f32.gmra.mxu0 %v1846
  %v1877 = vpop.f32.mrf.mxu0
  %v1878 = vadd.f32 0.0, %v1877
  %1879 = vmatmul.f32.gmra.mxu0 %v1849
  %v1880 = vpop.f32.mrf.mxu0
  %v1881 = vadd.f32 0.0, %v1880
  %1882 = vmatmul.f32.gmra.mxu0 %v1852
  %v1883 = vpop.f32.mrf.mxu0
  %v1884 = vadd.f32 0.0, %v1883
  %1885 = vmatmul.f32.gmra.mxu0 %v1855
  %v1886 = vpop.f32.mrf.mxu0
  %v1887 = vadd.f32 0.0, %v1886
  %1888 = vmatmul.f32.gmra.mxu0 %v1858
  %v1889 = vpop.f32.mrf.mxu0
  %v1890 = vadd.f32 0.0, %v1889
  %1891 = vdwg.mxu0
  %v1892 = vadd.f32 %v1816, %v1878
  %v1893 = vadd.f32 %v1819, %v1881
  %v1894 = vadd.f32 %v1822, %v1884
  %v1895 = vadd.f32 %v1825, %v1887
  %v1896 = vadd.f32 %v1828, %v1890
  %v1897 = vld [vmem:[#allocation2 + $0x2f] sm:$0xff]
  %v1898 = vld [vmem:[#allocation2 + $0x37] sm:$0xff]
  %v1899 = vld [vmem:[#allocation2 + $0x3f] sm:$0xff]
  %v1900 = vld [vmem:[#allocation2 + $0x47] sm:$0xff]
  %v1901 = vld [vmem:[#allocation2 + $0x4f] sm:$0x7f]
  %v1902 = vld [vmem:[%s1440] sm:$0xff]
  %v1903 = vld [vmem:[%s1440 + $0x8] sm:$0xff]
  %v1904 = vld [vmem:[%s1440 + $0x10] sm:$0xff]
  %v1905 = vld [vmem:[%s1440 + $0x18] sm:$0xff]
  %v1906 = vld [vmem:[%s1440 + $0x20] sm:$0xff]
  %v1907 = vld [vmem:[%s1440 + $0x28] sm:$0xff]
  %v1908 = vld [vmem:[%s1440 + $0x30] sm:$0xff]
  %v1909 = vld [vmem:[%s1440 + $0x38] sm:$0xff]
  %v1910 = vld [vmem:[%s1440 + $0x40] sm:$0xff]
  %v1911 = vld [vmem:[%s1440 + $0x48] sm:$0xff]
  %v1913 = vsel %vm531, %v1897, 0
  %v1916 = vsel %vm531, %v1898, 0
  %v1919 = vsel %vm531, %v1899, 0
  %v1922 = vsel %vm531, %v1900, 0
  %v1925 = vsel %vm531, %v1901, 0
  %1927 = vmatpush.msra.mxu0 0.0
  %1928 = vmatpush.msra.mxu0 0.0
  %1929 = vmatpush.msra.mxu0 0.0
  %1930 = vmatpush.msra.mxu0 0.0
  %1931 = vmatpush.msra.mxu0 0.0
  %1932 = vmatpush.msra.mxu0 0.0
  %1933 = vmatpush.msra.mxu0 %v1911
  %1934 = vmatpush.msra.mxu0 %v1910
  %1935 = vmatpush.msra.mxu0 %v1909
  %1936 = vmatpush.msra.mxu0 %v1908
  %1937 = vmatpush.msra.mxu0 %v1907
  %1938 = vmatpush.msra.mxu0 %v1906
  %1939 = vmatpush.msra.mxu0 %v1905
  %1940 = vmatpush.msra.mxu0 %v1904
  %1941 = vmatpush.msra.mxu0 %v1903
  %1942 = vmatpush.msra.mxu0 %v1902
  %1943 = vmatmul.f32.gmra.mxu0 %v1913
  %v1944 = vpop.f32.mrf.mxu0
  %v1945 = vadd.f32 0.0, %v1944
  %1946 = vmatmul.f32.gmra.mxu0 %v1916
  %v1947 = vpop.f32.mrf.mxu0
  %v1948 = vadd.f32 0.0, %v1947
  %1949 = vmatmul.f32.gmra.mxu0 %v1919
  %v1950 = vpop.f32.mrf.mxu0
  %v1951 = vadd.f32 0.0, %v1950
  %1952 = vmatmul.f32.gmra.mxu0 %v1922
  %v1953 = vpop.f32.mrf.mxu0
  %v1954 = vadd.f32 0.0, %v1953
  %1955 = vmatmul.f32.gmra.mxu0 %v1925
  %v1956 = vpop.f32.mrf.mxu0
  %v1957 = vadd.f32 0.0, %v1956
  %1958 = vdwg.mxu0
  %v1959 = vadd.f32 %v1892, %v1945
  %v1960 = vadd.f32 %v1893, %v1948
  %v1961 = vadd.f32 %v1894, %v1951
  %v1962 = vadd.f32 %v1895, %v1954
  %v1963 = vadd.f32 %v1896, %v1957
  %v1964 = vld [vmem:[#allocation2 + $0x30] sm:$0xff]
  %v1965 = vld [vmem:[#allocation2 + $0x38] sm:$0xff]
  %v1966 = vld [vmem:[#allocation2 + $0x40] sm:$0xff]
  %v1967 = vld [vmem:[#allocation2 + $0x48] sm:$0xff]
  %v1968 = vld [vmem:[#allocation2 + $0x50] sm:$0x7f]
  %v1969 = vld [vmem:[%s1508] sm:$0xff]
  %v1970 = vld [vmem:[%s1508 + $0x8] sm:$0xff]
  %v1971 = vld [vmem:[%s1508 + $0x10] sm:$0xff]
  %v1972 = vld [vmem:[%s1508 + $0x18] sm:$0xff]
  %v1973 = vld [vmem:[%s1508 + $0x20] sm:$0xff]
  %v1974 = vld [vmem:[%s1508 + $0x28] sm:$0xff]
  %v1975 = vld [vmem:[%s1508 + $0x30] sm:$0xff]
  %v1976 = vld [vmem:[%s1508 + $0x38] sm:$0xff]
  %v1977 = vld [vmem:[%s1508 + $0x40] sm:$0xff]
  %v1978 = vld [vmem:[%s1508 + $0x48] sm:$0xff]
  %v1980 = vsel %vm531, %v1964, 0
  %v1983 = vsel %vm531, %v1965, 0
  %v1986 = vsel %vm531, %v1966, 0
  %v1989 = vsel %vm531, %v1967, 0
  %v1992 = vsel %vm531, %v1968, 0
  %1994 = vmatpush.msra.mxu0 0.0
  %1995 = vmatpush.msra.mxu0 0.0
  %1996 = vmatpush.msra.mxu0 0.0
  %1997 = vmatpush.msra.mxu0 0.0
  %1998 = vmatpush.msra.mxu0 0.0
  %1999 = vmatpush.msra.mxu0 0.0
  %2000 = vmatpush.msra.mxu0 %v1978
  %2001 = vmatpush.msra.mxu0 %v1977
  %2002 = vmatpush.msra.mxu0 %v1976
  %2003 = vmatpush.msra.mxu0 %v1975
  %2004 = vmatpush.msra.mxu0 %v1974
  %2005 = vmatpush.msra.mxu0 %v1973
  %2006 = vmatpush.msra.mxu0 %v1972
  %2007 = vmatpush.msra.mxu0 %v1971
  %2008 = vmatpush.msra.mxu0 %v1970
  %2009 = vmatpush.msra.mxu0 %v1969
  %2010 = vmatmul.f32.gmra.mxu0 %v1980
  %v2011 = vpop.f32.mrf.mxu0
  %v2012 = vadd.f32 0.0, %v2011
  %2013 = vmatmul.f32.gmra.mxu0 %v1983
  %v2014 = vpop.f32.mrf.mxu0
  %v2015 = vadd.f32 0.0, %v2014
  %2016 = vmatmul.f32.gmra.mxu0 %v1986
  %v2017 = vpop.f32.mrf.mxu0
  %v2018 = vadd.f32 0.0, %v2017
  %2019 = vmatmul.f32.gmra.mxu0 %v1989
  %v2020 = vpop.f32.mrf.mxu0
  %v2021 = vadd.f32 0.0, %v2020
  %2022 = vmatmul.f32.gmra.mxu0 %v1992
  %v2023 = vpop.f32.mrf.mxu0
  %v2024 = vadd.f32 0.0, %v2023
  %2025 = vdwg.mxu0
  %v2026 = vadd.f32 %v1959, %v2012
  %v2027 = vadd.f32 %v1960, %v2015
  %v2028 = vadd.f32 %v1961, %v2018
  %v2029 = vadd.f32 %v1962, %v2021
  %v2030 = vadd.f32 %v1963, %v2024
  %v2031 = vld [vmem:[#allocation2 + $0x31] sm:$0xff]
  %v2032 = vld [vmem:[#allocation2 + $0x39] sm:$0xff]
  %v2033 = vld [vmem:[#allocation2 + $0x41] sm:$0xff]
  %v2034 = vld [vmem:[#allocation2 + $0x49] sm:$0xff]
  %v2035 = vld [vmem:[#allocation2 + $0x51] sm:$0x7f]
  %v2036 = vld [vmem:[%s1576] sm:$0xff]
  %v2037 = vld [vmem:[%s1576 + $0x8] sm:$0xff]
  %v2038 = vld [vmem:[%s1576 + $0x10] sm:$0xff]
  %v2039 = vld [vmem:[%s1576 + $0x18] sm:$0xff]
  %v2040 = vld [vmem:[%s1576 + $0x20] sm:$0xff]
  %v2041 = vld [vmem:[%s1576 + $0x28] sm:$0xff]
  %v2042 = vld [vmem:[%s1576 + $0x30] sm:$0xff]
  %v2043 = vld [vmem:[%s1576 + $0x38] sm:$0xff]
  %v2044 = vld [vmem:[%s1576 + $0x40] sm:$0xff]
  %v2045 = vld [vmem:[%s1576 + $0x48] sm:$0xff]
  %v2047 = vsel %vm531, %v2031, 0
  %v2050 = vsel %vm531, %v2032, 0
  %v2053 = vsel %vm531, %v2033, 0
  %v2056 = vsel %vm531, %v2034, 0
  %v2059 = vsel %vm531, %v2035, 0
  %2061 = vmatpush.msra.mxu0 0.0
  %2062 = vmatpush.msra.mxu0 0.0
  %2063 = vmatpush.msra.mxu0 0.0
  %2064 = vmatpush.msra.mxu0 0.0
  %2065 = vmatpush.msra.mxu0 0.0
  %2066 = vmatpush.msra.mxu0 0.0
  %2067 = vmatpush.msra.mxu0 %v2045
  %2068 = vmatpush.msra.mxu0 %v2044
  %2069 = vmatpush.msra.mxu0 %v2043
  %2070 = vmatpush.msra.mxu0 %v2042
  %2071 = vmatpush.msra.mxu0 %v2041
  %2072 = vmatpush.msra.mxu0 %v2040
  %2073 = vmatpush.msra.mxu0 %v2039
  %2074 = vmatpush.msra.mxu0 %v2038
  %2075 = vmatpush.msra.mxu0 %v2037
  %2076 = vmatpush.msra.mxu0 %v2036
  %2077 = vmatmul.f32.gmra.mxu0 %v2047
  %v2078 = vpop.f32.mrf.mxu0
  %v2079 = vadd.f32 0.0, %v2078
  %2080 = vmatmul.f32.gmra.mxu0 %v2050
  %v2081 = vpop.f32.mrf.mxu0
  %v2082 = vadd.f32 0.0, %v2081
  %2083 = vmatmul.f32.gmra.mxu0 %v2053
  %v2084 = vpop.f32.mrf.mxu0
  %v2085 = vadd.f32 0.0, %v2084
  %2086 = vmatmul.f32.gmra.mxu0 %v2056
  %v2087 = vpop.f32.mrf.mxu0
  %v2088 = vadd.f32 0.0, %v2087
  %2089 = vmatmul.f32.gmra.mxu0 %v2059
  %v2090 = vpop.f32.mrf.mxu0
  %v2091 = vadd.f32 0.0, %v2090
  %2092 = vdwg.mxu0
  %v2093 = vadd.f32 %v2026, %v2079
  %v2094 = vadd.f32 %v2027, %v2082
  %v2095 = vadd.f32 %v2028, %v2085
  %v2096 = vadd.f32 %v2029, %v2088
  %v2097 = vadd.f32 %v2030, %v2091
  %v2099 = vsel %vm1649, %v2097, 0
  %2101 = vmatpush.msra.mxu0 0.0
  %2102 = vmatpush.msra.mxu0 0.0
  %2103 = vmatpush.msra.mxu0 0.0
  %2104 = vmatpush.msra.mxu0 0.0
  %2105 = vmatpush.msra.mxu0 0.0
  %2106 = vmatpush.msra.mxu0 0.0
  %2107 = vmatpush.msra.mxu0 0.0
  %2108 = vmatpush.msra.mxu0 0.0
  %2109 = vmatpush.msra.mxu0 0.0
  %2110 = vmatpush.msra.mxu0 0.0
  %2111 = vmatpush.msra.mxu0 0.0
  %2112 = vmatpush.msra.mxu0 %v2099
  %2113 = vmatpush.msra.mxu0 %v2096
  %2114 = vmatpush.msra.mxu0 %v2095
  %2115 = vmatpush.msra.mxu0 %v2094
  %2116 = vmatpush.msra.mxu0 %v2093
  %2117 = vmatmul.f32.gmra.mxu0 %v1641
  %v2118 = vpop.f32.mrf.mxu0
  %v2119 = vadd.f32 0.0, %v2118
  %2120 = vmatmul.f32.gmra.mxu0 %v1644
  %v2121 = vpop.f32.mrf.mxu0
  %v2122 = vadd.f32 0.0, %v2121
  %2123 = vmatmul.f32.gmra.mxu0 %v1647
  %v2124 = vpop.f32.mrf.mxu0
  %v2125 = vadd.f32 0.0, %v2124
  %2126 = vdwg.mxu0
  %2127 = vst [vmem:[#allocation3 + $0x14] sm:$0xff] %v2119
  %2128 = vst [vmem:[#allocation3 + $0x1c] sm:$0xff] %v2122
  %2129 = vst [vmem:[#allocation3 + $0x24] sm:$0xf] %v2125
  %v2130 = vadd.f32 %v2119, %v2122
  %v2131 = vsel %vm1683, %v2125, 0.0
  %v2132 = vadd.f32 %v2130, %v2131
  %v2133 = vrot.slane %v2132, 4
  %v2134 = vadd.f32 %v2132, %v2133
  %v2135 = vrot.slane %v2134, 2
  %v2136 = vadd.f32 %v2134, %v2135
  %v2137 = vrot.slane %v2136, 1
  %v2138 = vadd.f32 %v2136, %v2137
  %v2139 = vadd.f32 %v1692, %v2138
  %v2140 = vmul.f32 %v2119, %v2119
  %v2141 = vmul.f32 %v2122, %v2122
  %v2142 = vmul.f32 %v2125, %v2125
  %v2143 = vadd.f32 %v2140, %v2141
  %v2144 = vsel %vm1683, %v2142, 0.0
  %v2145 = vadd.f32 %v2143, %v2144
  %v2146 = vrot.slane %v2145, 4
  %v2147 = vadd.f32 %v2145, %v2146
  %v2148 = vrot.slane %v2147, 2
  %v2149 = vadd.f32 %v2147, %v2148
  %v2150 = vrot.slane %v2149, 1
  %v2151 = vadd.f32 %v2149, %v2150
  %v2152 = vadd.f32 %v1705, %v2151
  %v2153 = vld [vmem:[%s6] sm:$0xff]
  %v2154 = vld [vmem:[%s6 + $0x8] sm:$0xff]
  %v2155 = vld [vmem:[%s6 + $0x10] sm:$0xff]
  %v2156 = vld [vmem:[%s6 + $0x18] sm:$0xff]
  %v2157 = vld [vmem:[%s6 + $0x20] sm:$0xff]
  %v2158 = vld [vmem:[%s6 + $0x28] sm:$0xff]
  %v2159 = vld [vmem:[%s6 + $0x30] sm:$0xff]
  %v2160 = vld [vmem:[%s6 + $0x38] sm:$0xff]
  %v2161 = vld [vmem:[%s6 + $0x40] sm:$0xff]
  %v2162 = vld [vmem:[%s6 + $0x48] sm:$0xff]
  %v2163 = vld [vmem:[%s6 + $0x50] sm:$0xff]
  %v2164 = vld [vmem:[%s6 + $0x58] sm:$0xff]
  %v2165 = vld [vmem:[%s6 + $0x60] sm:$0xff]
  %v2166 = vld [vmem:[%s6 + $0x68] sm:$0xff]
  %v2167 = vld [vmem:[%s6 + $0x70] sm:$0xff]
  %v2168 = vld [vmem:[%s6 + $0x78] sm:$0xff]
  %2169 = vmatpush.msra.mxu0 %v2168
  %2170 = vmatpush.msra.mxu0 %v2167
  %2171 = vmatpush.msra.mxu0 %v2166
  %2172 = vmatpush.msra.mxu0 %v2165
  %2173 = vmatpush.msra.mxu0 %v2164
  %2174 = vmatpush.msra.mxu0 %v2163
  %2175 = vmatpush.msra.mxu0 %v2162
  %2176 = vmatpush.msra.mxu0 %v2161
  %2177 = vmatpush.msra.mxu0 %v2160
  %2178 = vmatpush.msra.mxu0 %v2159
  %2179 = vmatpush.msra.mxu0 %v2158
  %2180 = vmatpush.msra.mxu0 %v2157
  %2181 = vmatpush.msra.mxu0 %v2156
  %2182 = vmatpush.msra.mxu0 %v2155
  %2183 = vmatpush.msra.mxu0 %v2154
  %2184 = vmatpush.msra.mxu0 %v2153
  %2185 = vmatmul.f32.gmra.mxu0 %v2139
  %v2186 = vpop.f32.mrf.mxu0
  %v2187 = vadd.f32 0.0, %v2186
  %2188 = vdwg.mxu0
  %2189 = vmatpush.msra.mxu0 %v2168
  %2190 = vmatpush.msra.mxu0 %v2167
  %2191 = vmatpush.msra.mxu0 %v2166
  %2192 = vmatpush.msra.mxu0 %v2165
  %2193 = vmatpush.msra.mxu0 %v2164
  %2194 = vmatpush.msra.mxu0 %v2163
  %2195 = vmatpush.msra.mxu0 %v2162
  %2196 = vmatpush.msra.mxu0 %v2161
  %2197 = vmatpush.msra.mxu0 %v2160
  %2198 = vmatpush.msra.mxu0 %v2159
  %2199 = vmatpush.msra.mxu0 %v2158
  %2200 = vmatpush.msra.mxu0 %v2157
  %2201 = vmatpush.msra.mxu0 %v2156
  %2202 = vmatpush.msra.mxu0 %v2155
  %2203 = vmatpush.msra.mxu0 %v2154
  %2204 = vmatpush.msra.mxu0 %v2153
  %2205 = vmatmul.f32.gmra.mxu0 %v2152
  %v2206 = vpop.f32.mrf.mxu0
  %v2207 = vadd.f32 0.0, %v2206
  %2208 = vdwg.mxu0
  %v2209 = vmul.f32 %v2187, 0.00625
  %v2210 = vmul.f32 %v2207, 0.00625
  %v2211 = vmul.f32 %v2209, %v2209
  %v2212 = vsub.f32 %v2210, %v2211
  %v2213 = vld [vmem:[%s5] sm:$0x3]
  %v2214 = vadd.f32 %v2212, 1e-05
  %v2215 = vrsqrt.pop %v2214
  %v2216 = vmul.f32 %v2215, %v2214
  %v2217 = vmul.f32 %v2216, %v2215
  %v2218 = vmul.f32 0.5, %v2217
  %v2219 = vsub.f32 1.5, %v2218
  %v2220 = vmul.f32 %v2215, %v2219
  %vm2221 = vweird.f32 %v2214
  %vm2222 = vweird.f32 %v2215
  %vm2223 = vmor %vm2221, %vm2222
  %v2224 = vsel %vm2223, %v2215, %v2220
  %v2225 = vmul.f32 %v2213, %v2224
  %v2226 = vmul.f32 %v2209, %v2225
  %v2228 = vrot.slane %v2226, 7
  %v2230 = vsub.f32 %v2213, %v2228
  %v2231 = vld [vmem:[#allocation3] sm:$0xff]
  %v2232 = vld [vmem:[#allocation3 + $0x8] sm:$0xff]
  %v2233 = vld [vmem:[#allocation3 + $0x10] sm:$0xff]
  %v2234 = vld [vmem:[#allocation3 + $0x18] sm:$0xff]
  %v2235 = vld [vmem:[#allocation3 + $0x20] sm:$0xff]
  %v2236 = vperm.slane %v2225, 0
  %v2237 = vmul.f32 %v2231, %v2236
  %v2238 = vmul.f32 %v2232, %v2236
  %v2239 = vmul.f32 %v2233, %v2236
  %v2240 = vmul.f32 %v2234, %v2236
  %v2241 = vmul.f32 %v2235, %v2236
  %v2242 = vperm.slane %v2230, 1
  %v2243 = vadd.f32 %v2237, %v2242
  %v2244 = vadd.f32 %v2238, %v2242
  %v2245 = vadd.f32 %v2239, %v2242
  %v2246 = vadd.f32 %v2240, %v2242
  %v2247 = vadd.f32 %v2241, %v2242
  %2248 = vst [vmem:[#allocation3] sm:$0xff] %v2243
  %2249 = vst [vmem:[#allocation3 + $0x8] sm:$0xff] %v2244
  %2250 = vst [vmem:[#allocation3 + $0x10] sm:$0xff] %v2245
  %2251 = vst [vmem:[#allocation3 + $0x18] sm:$0xff] %v2246
  %2252 = vst [vmem:[#allocation3 + $0x20] sm:$0xff] %v2247
  %v2253 = vld [vmem:[#allocation3] sm:$0xff]
  %v2254 = vld [vmem:[#allocation3 + $0x8] sm:$0x7f]
  %v2255 = vld [vmem:[%s7] sm:$0xff]
  %v2256 = vld [vmem:[%s7 + $0x8] sm:$0xff]
  %v2257 = vld [vmem:[%s7 + $0x10] sm:$0xff]
  %v2258 = vld [vmem:[%s7 + $0x18] sm:$0xff]
  %v2259 = vld [vmem:[%s7 + $0x20] sm:$0xff]
  %v2260 = vld [vmem:[%s7 + $0x28] sm:$0xff]
  %v2261 = vld [vmem:[%s7 + $0x30] sm:$0xff]
  %v2262 = vld [vmem:[%s7 + $0x38] sm:$0xff]
  %v2263 = vld [vmem:[%s7 + $0x40] sm:$0xff]
  %v2264 = vld [vmem:[%s7 + $0x48] sm:$0xff]
  %v2265 = vld [vmem:[%s7 + $0x50] sm:$0xff]
  %v2266 = vld [vmem:[%s7 + $0x58] sm:$0xff]
  %v2267 = vld [vmem:[%s7 + $0x60] sm:$0xff]
  %v2268 = vld [vmem:[%s7 + $0x68] sm:$0xff]
  %v2269 = vld [vmem:[%s7 + $0x70] sm:$0xff]
  %v2270 = vld [vmem:[%s7 + $0x78] sm:$0xff]
  %v2271 = vld [vmem:[%s7 + $0x80] sm:$0xff]
  %v2272 = vld [vmem:[%s7 + $0x88] sm:$0xff]
  %v2273 = vld [vmem:[%s7 + $0x90] sm:$0xff]
  %v2274 = vld [vmem:[%s7 + $0x98] sm:$0xff]
  %v2275 = vld [vmem:[%s7 + $0xa0] sm:$0xff]
  %v2276 = vld [vmem:[%s7 + $0xa8] sm:$0xff]
  %v2277 = vld [vmem:[%s7 + $0xb0] sm:$0xff]
  %v2278 = vld [vmem:[%s7 + $0xb8] sm:$0xff]
  %v2279 = vld [vmem:[%s7 + $0xc0] sm:$0xff]
  %v2280 = vld [vmem:[%s7 + $0xc8] sm:$0xff]
  %v2281 = vld [vmem:[%s7 + $0xd0] sm:$0xff]
  %v2282 = vld [vmem:[%s7 + $0xd8] sm:$0xff]
  %v2283 = vld [vmem:[%s7 + $0xe0] sm:$0xff]
  %v2284 = vld [vmem:[%s7 + $0xe8] sm:$0xff]
  %v2285 = vld [vmem:[%s7 + $0xf0] sm:$0xff]
  %v2286 = vld [vmem:[%s7 + $0xf8] sm:$0xff]
  %v2287 = vld [vmem:[#allocation3 + $0x1] sm:$0xff]
  %v2288 = vld [vmem:[#allocation3 + $0x9] sm:$0x7f]
  %s2289 = scalar_lea.vmem %s7, 256
  %v2290 = vld [vmem:[%s2289] sm:$0xff]
  %v2291 = vld [vmem:[%s2289 + $0x8] sm:$0xff]
  %v2292 = vld [vmem:[%s2289 + $0x10] sm:$0xff]
  %v2293 = vld [vmem:[%s2289 + $0x18] sm:$0xff]
  %v2294 = vld [vmem:[%s2289 + $0x20] sm:$0xff]
  %v2295 = vld [vmem:[%s2289 + $0x28] sm:$0xff]
  %v2296 = vld [vmem:[%s2289 + $0x30] sm:$0xff]
  %v2297 = vld [vmem:[%s2289 + $0x38] sm:$0xff]
  %v2298 = vld [vmem:[%s2289 + $0x40] sm:$0xff]
  %v2299 = vld [vmem:[%s2289 + $0x48] sm:$0xff]
  %v2300 = vld [vmem:[%s2289 + $0x50] sm:$0xff]
  %v2301 = vld [vmem:[%s2289 + $0x58] sm:$0xff]
  %v2302 = vld [vmem:[%s2289 + $0x60] sm:$0xff]
  %v2303 = vld [vmem:[%s2289 + $0x68] sm:$0xff]
  %v2304 = vld [vmem:[%s2289 + $0x70] sm:$0xff]
  %v2305 = vld [vmem:[%s2289 + $0x78] sm:$0xff]
  %v2306 = vld [vmem:[%s2289 + $0x80] sm:$0xff]
  %v2307 = vld [vmem:[%s2289 + $0x88] sm:$0xff]
  %v2308 = vld [vmem:[%s2289 + $0x90] sm:$0xff]
  %v2309 = vld [vmem:[%s2289 + $0x98] sm:$0xff]
  %v2310 = vld [vmem:[%s2289 + $0xa0] sm:$0xff]
  %v2311 = vld [vmem:[%s2289 + $0xa8] sm:$0xff]
  %v2312 = vld [vmem:[%s2289 + $0xb0] sm:$0xff]
  %v2313 = vld [vmem:[%s2289 + $0xb8] sm:$0xff]
  %v2314 = vld [vmem:[%s2289 + $0xc0] sm:$0xff]
  %v2315 = vld [vmem:[%s2289 + $0xc8] sm:$0xff]
  %v2316 = vld [vmem:[%s2289 + $0xd0] sm:$0xff]
  %v2317 = vld [vmem:[%s2289 + $0xd8] sm:$0xff]
  %v2318 = vld [vmem:[%s2289 + $0xe0] sm:$0xff]
  %v2319 = vld [vmem:[%s2289 + $0xe8] sm:$0xff]
  %v2320 = vld [vmem:[%s2289 + $0xf0] sm:$0xff]
  %v2321 = vld [vmem:[%s2289 + $0xf8] sm:$0xff]
  %2322 = vmatpush.msra.mxu0 %v2320
  %2323 = vmatpush.msra.mxu0 %v2318
  %2324 = vmatpush.msra.mxu0 %v2316
  %2325 = vmatpush.msra.mxu0 %v2314
  %2326 = vmatpush.msra.mxu0 %v2312
  %2327 = vmatpush.msra.mxu0 %v2310
  %2328 = vmatpush.msra.mxu0 %v2308
  %2329 = vmatpush.msra.mxu0 %v2306
  %2330 = vmatpush.msra.mxu0 %v2304
  %2331 = vmatpush.msra.mxu0 %v2302
  %2332 = vmatpush.msra.mxu0 %v2300
  %2333 = vmatpush.msra.mxu0 %v2298
  %2334 = vmatpush.msra.mxu0 %v2296
  %2335 = vmatpush.msra.mxu0 %v2294
  %2336 = vmatpush.msra.mxu0 %v2292
  %2337 = vmatpush.msra.mxu0 %v2290
  %2338 = vmatmul.f32.gmra.mxu0 %v2287
  %v2339 = vpop.f32.mrf.mxu0
  %v2340 = vadd.f32 0.0, %v2339
  %2341 = vmatmul.f32.gmra.mxu0 %v2288
  %v2342 = vpop.f32.mrf.mxu0
  %v2343 = vadd.f32 0.0, %v2342
  %2344 = vdwg.mxu0
  %2345 = vmatpush.msra.mxu0 %v2321
  %2346 = vmatpush.msra.mxu0 %v2319
  %2347 = vmatpush.msra.mxu0 %v2317
  %2348 = vmatpush.msra.mxu0 %v2315
  %2349 = vmatpush.msra.mxu0 %v2313
  %2350 = vmatpush.msra.mxu0 %v2311
  %2351 = vmatpush.msra.mxu0 %v2309
  %2352 = vmatpush.msra.mxu0 %v2307
  %2353 = vmatpush.msra.mxu0 %v2305
  %2354 = vmatpush.msra.mxu0 %v2303
  %2355 = vmatpush.msra.mxu0 %v2301
  %2356 = vmatpush.msra.mxu0 %v2299
  %2357 = vmatpush.msra.mxu0 %v2297
  %2358 = vmatpush.msra.mxu0 %v2295
  %2359 = vmatpush.msra.mxu0 %v2293
  %2360 = vmatpush.msra.mxu0 %v2291
  %2361 = vmatmul.f32.gmra.mxu0 %v2287
  %v2362 = vpop.f32.mrf.mxu0
  %v2363 = vadd.f32 0.0, %v2362
  %2364 = vmatmul.f32.gmra.mxu0 %v2288
  %v2365 = vpop.f32.mrf.mxu0
  %v2366 = vadd.f32 0.0, %v2365
  %2367 = vdwg.mxu0
  %2368 = vmatpush.msra.mxu0 %v2285
  %2369 = vmatpush.msra.mxu0 %v2283
  %2370 = vmatpush.msra.mxu0 %v2281
  %2371 = vmatpush.msra.mxu0 %v2279
  %2372 = vmatpush.msra.mxu0 %v2277
  %2373 = vmatpush.msra.mxu0 %v2275
  %2374 = vmatpush.msra.mxu0 %v2273
  %2375 = vmatpush.msra.mxu0 %v2271
  %2376 = vmatpush.msra.mxu0 %v2269
  %2377 = vmatpush.msra.mxu0 %v2267
  %2378 = vmatpush.msra.mxu0 %v2265
  %2379 = vmatpush.msra.mxu0 %v2263
  %2380 = vmatpush.msra.mxu0 %v2261
  %2381 = vmatpush.msra.mxu0 %v2259
  %2382 = vmatpush.msra.mxu0 %v2257
  %2383 = vmatpush.msra.mxu0 %v2255
  %2384 = vmatmul.f32.gmra.mxu0 %v2253
  %v2385 = vpop.f32.mrf.mxu0
  %v2386 = vadd.f32 %v2340, %v2385
  %2387 = vmatmul.f32.gmra.mxu0 %v2254
  %v2388 = vpop.f32.mrf.mxu0
  %v2389 = vadd.f32 %v2343, %v2388
  %2390 = vdwg.mxu0
  %2391 = vmatpush.msra.mxu0 %v2286
  %2392 = vmatpush.msra.mxu0 %v2284
  %2393 = vmatpush.msra.mxu0 %v2282
  %2394 = vmatpush.msra.mxu0 %v2280
  %2395 = vmatpush.msra.mxu0 %v2278
  %2396 = vmatpush.msra.mxu0 %v2276
  %2397 = vmatpush.msra.mxu0 %v2274
  %2398 = vmatpush.msra.mxu0 %v2272
  %2399 = vmatpush.msra.mxu0 %v2270
  %2400 = vmatpush.msra.mxu0 %v2268
  %2401 = vmatpush.msra.mxu0 %v2266
  %2402 = vmatpush.msra.mxu0 %v2264
  %2403 = vmatpush.msra.mxu0 %v2262
  %2404 = vmatpush.msra.mxu0 %v2260
  %2405 = vmatpush.msra.mxu0 %v2258
  %2406 = vmatpush.msra.mxu0 %v2256
  %2407 = vmatmul.f32.gmra.mxu0 %v2253
  %v2408 = vpop.f32.mrf.mxu0
  %v2409 = vadd.f32 %v2363, %v2408
  %2410 = vmatmul.f32.gmra.mxu0 %v2254
  %v2411 = vpop.f32.mrf.mxu0
  %v2412 = vadd.f32 %v2366, %v2411
  %2413 = vdwg.mxu0
  %v2414 = vld [vmem:[#allocation3 + $0x2] sm:$0xff]
  %v2415 = vld [vmem:[#allocation3 + $0xa] sm:$0x7f]
  %s2416 = scalar_lea.vmem %s7, 512
  %v2417 = vld [vmem:[%s2416] sm:$0xff]
  %v2418 = vld [vmem:[%s2416 + $0x8] sm:$0xff]
  %v2419 = vld [vmem:[%s2416 + $0x10] sm:$0xff]
  %v2420 = vld [vmem:[%s2416 + $0x18] sm:$0xff]
  %v2421 = vld [vmem:[%s2416 + $0x20] sm:$0xff]
  %v2422 = vld [vmem:[%s2416 + $0x28] sm:$0xff]
  %v2423 = vld [vmem:[%s2416 + $0x30] sm:$0xff]
  %v2424 = vld [vmem:[%s2416 + $0x38] sm:$0xff]
  %v2425 = vld [vmem:[%s2416 + $0x40] sm:$0xff]
  %v2426 = vld [vmem:[%s2416 + $0x48] sm:$0xff]
  %v2427 = vld [vmem:[%s2416 + $0x50] sm:$0xff]
  %v2428 = vld [vmem:[%s2416 + $0x58] sm:$0xff]
  %v2429 = vld [vmem:[%s2416 + $0x60] sm:$0xff]
  %v2430 = vld [vmem:[%s2416 + $0x68] sm:$0xff]
  %v2431 = vld [vmem:[%s2416 + $0x70] sm:$0xff]
  %v2432 = vld [vmem:[%s2416 + $0x78] sm:$0xff]
  %v2433 = vld [vmem:[%s2416 + $0x80] sm:$0xff]
  %v2434 = vld [vmem:[%s2416 + $0x88] sm:$0xff]
  %v2435 = vld [vmem:[%s2416 + $0x90] sm:$0xff]
  %v2436 = vld [vmem:[%s2416 + $0x98] sm:$0xff]
  %v2437 = vld [vmem:[%s2416 + $0xa0] sm:$0xff]
  %v2438 = vld [vmem:[%s2416 + $0xa8] sm:$0xff]
  %v2439 = vld [vmem:[%s2416 + $0xb0] sm:$0xff]
  %v2440 = vld [vmem:[%s2416 + $0xb8] sm:$0xff]
  %v2441 = vld [vmem:[%s2416 + $0xc0] sm:$0xff]
  %v2442 = vld [vmem:[%s2416 + $0xc8] sm:$0xff]
  %v2443 = vld [vmem:[%s2416 + $0xd0] sm:$0xff]
  %v2444 = vld [vmem:[%s2416 + $0xd8] sm:$0xff]
  %v2445 = vld [vmem:[%s2416 + $0xe0] sm:$0xff]
  %v2446 = vld [vmem:[%s2416 + $0xe8] sm:$0xff]
  %v2447 = vld [vmem:[%s2416 + $0xf0] sm:$0xff]
  %v2448 = vld [vmem:[%s2416 + $0xf8] sm:$0xff]
  %2449 = vmatpush.msra.mxu0 %v2447
  %2450 = vmatpush.msra.mxu0 %v2445
  %2451 = vmatpush.msra.mxu0 %v2443
  %2452 = vmatpush.msra.mxu0 %v2441
  %2453 = vmatpush.msra.mxu0 %v2439
  %2454 = vmatpush.msra.mxu0 %v2437
  %2455 = vmatpush.msra.mxu0 %v2435
  %2456 = vmatpush.msra.mxu0 %v2433
  %2457 = vmatpush.msra.mxu0 %v2431
  %2458 = vmatpush.msra.mxu0 %v2429
  %2459 = vmatpush.msra.mxu0 %v2427
  %2460 = vmatpush.msra.mxu0 %v2425
  %2461 = vmatpush.msra.mxu0 %v2423
  %2462 = vmatpush.msra.mxu0 %v2421
  %2463 = vmatpush.msra.mxu0 %v2419
  %2464 = vmatpush.msra.mxu0 %v2417
  %2465 = vmatmul.f32.gmra.mxu0 %v2414
  %v2466 = vpop.f32.mrf.mxu0
  %v2467 = vadd.f32 0.0, %v2466
  %2468 = vmatmul.f32.gmra.mxu0 %v2415
  %v2469 = vpop.f32.mrf.mxu0
  %v2470 = vadd.f32 0.0, %v2469
  %2471 = vdwg.mxu0
  %2472 = vmatpush.msra.mxu0 %v2448
  %2473 = vmatpush.msra.mxu0 %v2446
  %2474 = vmatpush.msra.mxu0 %v2444
  %2475 = vmatpush.msra.mxu0 %v2442
  %2476 = vmatpush.msra.mxu0 %v2440
  %2477 = vmatpush.msra.mxu0 %v2438
  %2478 = vmatpush.msra.mxu0 %v2436
  %2479 = vmatpush.msra.mxu0 %v2434
  %2480 = vmatpush.msra.mxu0 %v2432
  %2481 = vmatpush.msra.mxu0 %v2430
  %2482 = vmatpush.msra.mxu0 %v2428
  %2483 = vmatpush.msra.mxu0 %v2426
  %2484 = vmatpush.msra.mxu0 %v2424
  %2485 = vmatpush.msra.mxu0 %v2422
  %2486 = vmatpush.msra.mxu0 %v2420
  %2487 = vmatpush.msra.mxu0 %v2418
  %2488 = vmatmul.f32.gmra.mxu0 %v2414
  %v2489 = vpop.f32.mrf.mxu0
  %v2490 = vadd.f32 0.0, %v2489
  %2491 = vmatmul.f32.gmra.mxu0 %v2415
  %v2492 = vpop.f32.mrf.mxu0
  %v2493 = vadd.f32 0.0, %v2492
  %2494 = vdwg.mxu0
  %v2495 = vadd.f32 %v2386, %v2467
  %v2496 = vadd.f32 %v2409, %v2490
  %v2497 = vadd.f32 %v2389, %v2470
  %v2498 = vadd.f32 %v2412, %v2493
  %v2499 = vld [vmem:[#allocation3 + $0x3] sm:$0xff]
  %v2500 = vld [vmem:[#allocation3 + $0xb] sm:$0x7f]
  %s2501 = scalar_lea.vmem %s7, 768
  %v2502 = vld [vmem:[%s2501] sm:$0xff]
  %v2503 = vld [vmem:[%s2501 + $0x8] sm:$0xff]
  %v2504 = vld [vmem:[%s2501 + $0x10] sm:$0xff]
  %v2505 = vld [vmem:[%s2501 + $0x18] sm:$0xff]
  %v2506 = vld [vmem:[%s2501 + $0x20] sm:$0xff]
  %v2507 = vld [vmem:[%s2501 + $0x28] sm:$0xff]
  %v2508 = vld [vmem:[%s2501 + $0x30] sm:$0xff]
  %v2509 = vld [vmem:[%s2501 + $0x38] sm:$0xff]
  %v2510 = vld [vmem:[%s2501 + $0x40] sm:$0xff]
  %v2511 = vld [vmem:[%s2501 + $0x48] sm:$0xff]
  %v2512 = vld [vmem:[%s2501 + $0x50] sm:$0xff]
  %v2513 = vld [vmem:[%s2501 + $0x58] sm:$0xff]
  %v2514 = vld [vmem:[%s2501 + $0x60] sm:$0xff]
  %v2515 = vld [vmem:[%s2501 + $0x68] sm:$0xff]
  %v2516 = vld [vmem:[%s2501 + $0x70] sm:$0xff]
  %v2517 = vld [vmem:[%s2501 + $0x78] sm:$0xff]
  %v2518 = vld [vmem:[%s2501 + $0x80] sm:$0xff]
  %v2519 = vld [vmem:[%s2501 + $0x88] sm:$0xff]
  %v2520 = vld [vmem:[%s2501 + $0x90] sm:$0xff]
  %v2521 = vld [vmem:[%s2501 + $0x98] sm:$0xff]
  %v2522 = vld [vmem:[%s2501 + $0xa0] sm:$0xff]
  %v2523 = vld [vmem:[%s2501 + $0xa8] sm:$0xff]
  %v2524 = vld [vmem:[%s2501 + $0xb0] sm:$0xff]
  %v2525 = vld [vmem:[%s2501 + $0xb8] sm:$0xff]
  %v2526 = vld [vmem:[%s2501 + $0xc0] sm:$0xff]
  %v2527 = vld [vmem:[%s2501 + $0xc8] sm:$0xff]
  %v2528 = vld [vmem:[%s2501 + $0xd0] sm:$0xff]
  %v2529 = vld [vmem:[%s2501 + $0xd8] sm:$0xff]
  %v2530 = vld [vmem:[%s2501 + $0xe0] sm:$0xff]
  %v2531 = vld [vmem:[%s2501 + $0xe8] sm:$0xff]
  %v2532 = vld [vmem:[%s2501 + $0xf0] sm:$0xff]
  %v2533 = vld [vmem:[%s2501 + $0xf8] sm:$0xff]
  %2534 = vmatpush.msra.mxu0 %v2532
  %2535 = vmatpush.msra.mxu0 %v2530
  %2536 = vmatpush.msra.mxu0 %v2528
  %2537 = vmatpush.msra.mxu0 %v2526
  %2538 = vmatpush.msra.mxu0 %v2524
  %2539 = vmatpush.msra.mxu0 %v2522
  %2540 = vmatpush.msra.mxu0 %v2520
  %2541 = vmatpush.msra.mxu0 %v2518
  %2542 = vmatpush.msra.mxu0 %v2516
  %2543 = vmatpush.msra.mxu0 %v2514
  %2544 = vmatpush.msra.mxu0 %v2512
  %2545 = vmatpush.msra.mxu0 %v2510
  %2546 = vmatpush.msra.mxu0 %v2508
  %2547 = vmatpush.msra.mxu0 %v2506
  %2548 = vmatpush.msra.mxu0 %v2504
  %2549 = vmatpush.msra.mxu0 %v2502
  %2550 = vmatmul.f32.gmra.mxu0 %v2499
  %v2551 = vpop.f32.mrf.mxu0
  %v2552 = vadd.f32 0.0, %v2551
  %2553 = vmatmul.f32.gmra.mxu0 %v2500
  %v2554 = vpop.f32.mrf.mxu0
  %v2555 = vadd.f32 0.0, %v2554
  %2556 = vdwg.mxu0
  %2557 = vmatpush.msra.mxu0 %v2533
  %2558 = vmatpush.msra.mxu0 %v2531
  %2559 = vmatpush.msra.mxu0 %v2529
  %2560 = vmatpush.msra.mxu0 %v2527
  %2561 = vmatpush.msra.mxu0 %v2525
  %2562 = vmatpush.msra.mxu0 %v2523
  %2563 = vmatpush.msra.mxu0 %v2521
  %2564 = vmatpush.msra.mxu0 %v2519
  %2565 = vmatpush.msra.mxu0 %v2517
  %2566 = vmatpush.msra.mxu0 %v2515
  %2567 = vmatpush.msra.mxu0 %v2513
  %2568 = vmatpush.msra.mxu0 %v2511
  %2569 = vmatpush.msra.mxu0 %v2509
  %2570 = vmatpush.msra.mxu0 %v2507
  %2571 = vmatpush.msra.mxu0 %v2505
  %2572 = vmatpush.msra.mxu0 %v2503
  %2573 = vmatmul.f32.gmra.mxu0 %v2499
  %v2574 = vpop.f32.mrf.mxu0
  %v2575 = vadd.f32 0.0, %v2574
  %2576 = vmatmul.f32.gmra.mxu0 %v2500
  %v2577 = vpop.f32.mrf.mxu0
  %v2578 = vadd.f32 0.0, %v2577
  %2579 = vdwg.mxu0
  %v2580 = vadd.f32 %v2495, %v2552
  %v2581 = vadd.f32 %v2496, %v2575
  %v2582 = vadd.f32 %v2497, %v2555
  %v2583 = vadd.f32 %v2498, %v2578
  %v2584 = vld [vmem:[#allocation3 + $0x4] sm:$0xff]
  %v2585 = vld [vmem:[#allocation3 + $0xc] sm:$0x7f]
  %s2586 = scalar_lea.vmem %s7, 1024
  %v2587 = vld [vmem:[%s2586] sm:$0xff]
  %v2588 = vld [vmem:[%s2586 + $0x8] sm:$0xff]
  %v2589 = vld [vmem:[%s2586 + $0x10] sm:$0xff]
  %v2590 = vld [vmem:[%s2586 + $0x18] sm:$0xff]
  %v2591 = vld [vmem:[%s2586 + $0x20] sm:$0xff]
  %v2592 = vld [vmem:[%s2586 + $0x28] sm:$0xff]
  %v2593 = vld [vmem:[%s2586 + $0x30] sm:$0xff]
  %v2594 = vld [vmem:[%s2586 + $0x38] sm:$0xff]
  %v2595 = vld [vmem:[%s2586 + $0x40] sm:$0xff]
  %v2596 = vld [vmem:[%s2586 + $0x48] sm:$0xff]
  %v2597 = vld [vmem:[%s2586 + $0x50] sm:$0xff]
  %v2598 = vld [vmem:[%s2586 + $0x58] sm:$0xff]
  %v2599 = vld [vmem:[%s2586 + $0x60] sm:$0xff]
  %v2600 = vld [vmem:[%s2586 + $0x68] sm:$0xff]
  %v2601 = vld [vmem:[%s2586 + $0x70] sm:$0xff]
  %v2602 = vld [vmem:[%s2586 + $0x78] sm:$0xff]
  %v2603 = vld [vmem:[%s2586 + $0x80] sm:$0xff]
  %v2604 = vld [vmem:[%s2586 + $0x88] sm:$0xff]
  %v2605 = vld [vmem:[%s2586 + $0x90] sm:$0xff]
  %v2606 = vld [vmem:[%s2586 + $0x98] sm:$0xff]
  %v2607 = vld [vmem:[%s2586 + $0xa0] sm:$0xff]
  %v2608 = vld [vmem:[%s2586 + $0xa8] sm:$0xff]
  %v2609 = vld [vmem:[%s2586 + $0xb0] sm:$0xff]
  %v2610 = vld [vmem:[%s2586 + $0xb8] sm:$0xff]
  %v2611 = vld [vmem:[%s2586 + $0xc0] sm:$0xff]
  %v2612 = vld [vmem:[%s2586 + $0xc8] sm:$0xff]
  %v2613 = vld [vmem:[%s2586 + $0xd0] sm:$0xff]
  %v2614 = vld [vmem:[%s2586 + $0xd8] sm:$0xff]
  %v2615 = vld [vmem:[%s2586 + $0xe0] sm:$0xff]
  %v2616 = vld [vmem:[%s2586 + $0xe8] sm:$0xff]
  %v2617 = vld [vmem:[%s2586 + $0xf0] sm:$0xff]
  %v2618 = vld [vmem:[%s2586 + $0xf8] sm:$0xff]
  %2619 = vmatpush.msra.mxu0 %v2617
  %2620 = vmatpush.msra.mxu0 %v2615
  %2621 = vmatpush.msra.mxu0 %v2613
  %2622 = vmatpush.msra.mxu0 %v2611
  %2623 = vmatpush.msra.mxu0 %v2609
  %2624 = vmatpush.msra.mxu0 %v2607
  %2625 = vmatpush.msra.mxu0 %v2605
  %2626 = vmatpush.msra.mxu0 %v2603
  %2627 = vmatpush.msra.mxu0 %v2601
  %2628 = vmatpush.msra.mxu0 %v2599
  %2629 = vmatpush.msra.mxu0 %v2597
  %2630 = vmatpush.msra.mxu0 %v2595
  %2631 = vmatpush.msra.mxu0 %v2593
  %2632 = vmatpush.msra.mxu0 %v2591
  %2633 = vmatpush.msra.mxu0 %v2589
  %2634 = vmatpush.msra.mxu0 %v2587
  %2635 = vmatmul.f32.gmra.mxu0 %v2584
  %v2636 = vpop.f32.mrf.mxu0
  %v2637 = vadd.f32 0.0, %v2636
  %2638 = vmatmul.f32.gmra.mxu0 %v2585
  %v2639 = vpop.f32.mrf.mxu0
  %v2640 = vadd.f32 0.0, %v2639
  %2641 = vdwg.mxu0
  %2642 = vmatpush.msra.mxu0 %v2618
  %2643 = vmatpush.msra.mxu0 %v2616
  %2644 = vmatpush.msra.mxu0 %v2614
  %2645 = vmatpush.msra.mxu0 %v2612
  %2646 = vmatpush.msra.mxu0 %v2610
  %2647 = vmatpush.msra.mxu0 %v2608
  %2648 = vmatpush.msra.mxu0 %v2606
  %2649 = vmatpush.msra.mxu0 %v2604
  %2650 = vmatpush.msra.mxu0 %v2602
  %2651 = vmatpush.msra.mxu0 %v2600
  %2652 = vmatpush.msra.mxu0 %v2598
  %2653 = vmatpush.msra.mxu0 %v2596
  %2654 = vmatpush.msra.mxu0 %v2594
  %2655 = vmatpush.msra.mxu0 %v2592
  %2656 = vmatpush.msra.mxu0 %v2590
  %2657 = vmatpush.msra.mxu0 %v2588
  %2658 = vmatmul.f32.gmra.mxu0 %v2584
  %v2659 = vpop.f32.mrf.mxu0
  %v2660 = vadd.f32 0.0, %v2659
  %2661 = vmatmul.f32.gmra.mxu0 %v2585
  %v2662 = vpop.f32.mrf.mxu0
  %v2663 = vadd.f32 0.0, %v2662
  %2664 = vdwg.mxu0
  %v2665 = vadd.f32 %v2580, %v2637
  %v2666 = vadd.f32 %v2581, %v2660
  %v2667 = vadd.f32 %v2582, %v2640
  %v2668 = vadd.f32 %v2583, %v2663
  %v2669 = vld [vmem:[#allocation3 + $0x5] sm:$0xff]
  %v2670 = vld [vmem:[#allocation3 + $0xd] sm:$0x7f]
  %s2671 = scalar_lea.vmem %s7, 1280
  %v2672 = vld [vmem:[%s2671] sm:$0xff]
  %v2673 = vld [vmem:[%s2671 + $0x8] sm:$0xff]
  %v2674 = vld [vmem:[%s2671 + $0x10] sm:$0xff]
  %v2675 = vld [vmem:[%s2671 + $0x18] sm:$0xff]
  %v2676 = vld [vmem:[%s2671 + $0x20] sm:$0xff]
  %v2677 = vld [vmem:[%s2671 + $0x28] sm:$0xff]
  %v2678 = vld [vmem:[%s2671 + $0x30] sm:$0xff]
  %v2679 = vld [vmem:[%s2671 + $0x38] sm:$0xff]
  %v2680 = vld [vmem:[%s2671 + $0x40] sm:$0xff]
  %v2681 = vld [vmem:[%s2671 + $0x48] sm:$0xff]
  %v2682 = vld [vmem:[%s2671 + $0x50] sm:$0xff]
  %v2683 = vld [vmem:[%s2671 + $0x58] sm:$0xff]
  %v2684 = vld [vmem:[%s2671 + $0x60] sm:$0xff]
  %v2685 = vld [vmem:[%s2671 + $0x68] sm:$0xff]
  %v2686 = vld [vmem:[%s2671 + $0x70] sm:$0xff]
  %v2687 = vld [vmem:[%s2671 + $0x78] sm:$0xff]
  %v2688 = vld [vmem:[%s2671 + $0x80] sm:$0xff]
  %v2689 = vld [vmem:[%s2671 + $0x88] sm:$0xff]
  %v2690 = vld [vmem:[%s2671 + $0x90] sm:$0xff]
  %v2691 = vld [vmem:[%s2671 + $0x98] sm:$0xff]
  %v2692 = vld [vmem:[%s2671 + $0xa0] sm:$0xff]
  %v2693 = vld [vmem:[%s2671 + $0xa8] sm:$0xff]
  %v2694 = vld [vmem:[%s2671 + $0xb0] sm:$0xff]
  %v2695 = vld [vmem:[%s2671 + $0xb8] sm:$0xff]
  %v2696 = vld [vmem:[%s2671 + $0xc0] sm:$0xff]
  %v2697 = vld [vmem:[%s2671 + $0xc8] sm:$0xff]
  %v2698 = vld [vmem:[%s2671 + $0xd0] sm:$0xff]
  %v2699 = vld [vmem:[%s2671 + $0xd8] sm:$0xff]
  %v2700 = vld [vmem:[%s2671 + $0xe0] sm:$0xff]
  %v2701 = vld [vmem:[%s2671 + $0xe8] sm:$0xff]
  %v2702 = vld [vmem:[%s2671 + $0xf0] sm:$0xff]
  %v2703 = vld [vmem:[%s2671 + $0xf8] sm:$0xff]
  %2704 = vmatpush.msra.mxu0 %v2702
  %2705 = vmatpush.msra.mxu0 %v2700
  %2706 = vmatpush.msra.mxu0 %v2698
  %2707 = vmatpush.msra.mxu0 %v2696
  %2708 = vmatpush.msra.mxu0 %v2694
  %2709 = vmatpush.msra.mxu0 %v2692
  %2710 = vmatpush.msra.mxu0 %v2690
  %2711 = vmatpush.msra.mxu0 %v2688
  %2712 = vmatpush.msra.mxu0 %v2686
  %2713 = vmatpush.msra.mxu0 %v2684
  %2714 = vmatpush.msra.mxu0 %v2682
  %2715 = vmatpush.msra.mxu0 %v2680
  %2716 = vmatpush.msra.mxu0 %v2678
  %2717 = vmatpush.msra.mxu0 %v2676
  %2718 = vmatpush.msra.mxu0 %v2674
  %2719 = vmatpush.msra.mxu0 %v2672
  %2720 = vmatmul.f32.gmra.mxu0 %v2669
  %v2721 = vpop.f32.mrf.mxu0
  %v2722 = vadd.f32 0.0, %v2721
  %2723 = vmatmul.f32.gmra.mxu0 %v2670
  %v2724 = vpop.f32.mrf.mxu0
  %v2725 = vadd.f32 0.0, %v2724
  %2726 = vdwg.mxu0
  %2727 = vmatpush.msra.mxu0 %v2703
  %2728 = vmatpush.msra.mxu0 %v2701
  %2729 = vmatpush.msra.mxu0 %v2699
  %2730 = vmatpush.msra.mxu0 %v2697
  %2731 = vmatpush.msra.mxu0 %v2695
  %2732 = vmatpush.msra.mxu0 %v2693
  %2733 = vmatpush.msra.mxu0 %v2691
  %2734 = vmatpush.msra.mxu0 %v2689
  %2735 = vmatpush.msra.mxu0 %v2687
  %2736 = vmatpush.msra.mxu0 %v2685
  %2737 = vmatpush.msra.mxu0 %v2683
  %2738 = vmatpush.msra.mxu0 %v2681
  %2739 = vmatpush.msra.mxu0 %v2679
  %2740 = vmatpush.msra.mxu0 %v2677
  %2741 = vmatpush.msra.mxu0 %v2675
  %2742 = vmatpush.msra.mxu0 %v2673
  %2743 = vmatmul.f32.gmra.mxu0 %v2669
  %v2744 = vpop.f32.mrf.mxu0
  %v2745 = vadd.f32 0.0, %v2744
  %2746 = vmatmul.f32.gmra.mxu0 %v2670
  %v2747 = vpop.f32.mrf.mxu0
  %v2748 = vadd.f32 0.0, %v2747
  %2749 = vdwg.mxu0
  %v2750 = vadd.f32 %v2665, %v2722
  %v2751 = vadd.f32 %v2666, %v2745
  %v2752 = vadd.f32 %v2667, %v2725
  %v2753 = vadd.f32 %v2668, %v2748
  %vm2754 = vcmask 121856
  %v2755 = vsel %vm2754, %v1239, 0
  %v2758 = vsel %vm1649, %v2752, 0
  %v2761 = vsel %vm1649, %v2753, 0
  %2763 = vmatpush.msra.mxu0 0.0
  %2764 = vmatpush.msra.mxu0 0.0
  %2765 = vmatpush.msra.mxu0 0.0
  %2766 = vmatpush.msra.mxu0 0.0
  %2767 = vmatpush.msra.mxu0 0.0
  %2768 = vmatpush.msra.mxu0 0.0
  %2769 = vmatpush.msra.mxu0 0.0
  %2770 = vmatpush.msra.mxu0 0.0
  %2771 = vmatpush.msra.mxu0 0.0
  %2772 = vmatpush.msra.mxu0 0.0
  %2773 = vmatpush.msra.mxu0 0.0
  %2774 = vmatpush.msra.mxu0 0.0
  %2775 = vmatpush.msra.mxu0 0.0
  %2776 = vmatpush.msra.mxu0 0.0
  %2777 = vmatpush.msra.mxu0 %v2758
  %2778 = vmatpush.msra.mxu0 %v2750
  %2779 = vmatmul.f32.gmra.mxu0 %v2755
  %v2780 = vpop.f32.mrf.mxu0
  %v2781 = vadd.f32 0.0, %v2780
  %2782 = vdwg.mxu0
  %2783 = vmatpush.msra.mxu0 0.0
  %2784 = vmatpush.msra.mxu0 0.0
  %2785 = vmatpush.msra.mxu0 0.0
  %2786 = vmatpush.msra.mxu0 0.0
  %2787 = vmatpush.msra.mxu0 0.0
  %2788 = vmatpush.msra.mxu0 0.0
  %2789 = vmatpush.msra.mxu0 0.0
  %2790 = vmatpush.msra.mxu0 0.0
  %2791 = vmatpush.msra.mxu0 0.0
  %2792 = vmatpush.msra.mxu0 0.0
  %2793 = vmatpush.msra.mxu0 0.0
  %2794 = vmatpush.msra.mxu0 0.0
  %2795 = vmatpush.msra.mxu0 0.0
  %2796 = vmatpush.msra.mxu0 0.0
  %2797 = vmatpush.msra.mxu0 %v2761
  %2798 = vmatpush.msra.mxu0 %v2751
  %2799 = vmatmul.f32.gmra.mxu0 %v2755
  %v2800 = vpop.f32.mrf.mxu0
  %v2801 = vadd.f32 0.0, %v2800
  %2802 = vdwg.mxu0
  %2803 = vst [vmem:[#allocation4] sm:$0xff] %v2781
  %vm2804 = vcmask 523264
  %2805 = vst.msk [vmem:[#allocation4 + $0x8] sm:$0xff] %vm2804, %v2801
  %v2806 = vrot.slane %v2781, 4
  %v2807 = vadd.f32 %v2781, %v2806
  %v2808 = vrot.slane %v2807, 2
  %v2809 = vadd.f32 %v2807, %v2808
  %v2810 = vrot.slane %v2809, 1
  %v2811 = vadd.f32 %v2809, %v2810
  %v2812 = vsel %vm2804, %v2801, 0.0
  %v2813 = vrot.slane %v2812, 4
  %v2814 = vadd.f32 %v2812, %v2813
  %v2815 = vrot.slane %v2814, 2
  %v2816 = vadd.f32 %v2814, %v2815
  %v2817 = vrot.slane %v2816, 1
  %v2818 = vadd.f32 %v2816, %v2817
  %v2819 = vadd.f32 %v2811, 0.0
  %v2820 = vadd.f32 %v2818, 0.0
  %v2821 = vmul.f32 %v2781, %v2781
  %v2822 = vmul.f32 %v2801, %v2801
  %v2823 = vrot.slane %v2821, 4
  %v2824 = vadd.f32 %v2821, %v2823
  %v2825 = vrot.slane %v2824, 2
  %v2826 = vadd.f32 %v2824, %v2825
  %v2827 = vrot.slane %v2826, 1
  %v2828 = vadd.f32 %v2826, %v2827
  %v2829 = vsel %vm2804, %v2822, 0.0
  %v2830 = vrot.slane %v2829, 4
  %v2831 = vadd.f32 %v2829, %v2830
  %v2832 = vrot.slane %v2831, 2
  %v2833 = vadd.f32 %v2831, %v2832
  %v2834 = vrot.slane %v2833, 1
  %v2835 = vadd.f32 %v2833, %v2834
  %v2836 = vadd.f32 %v2828, 0.0
  %v2837 = vadd.f32 %v2835, 0.0
  %v2838 = vld [vmem:[#allocation3 + $0x14] sm:$0xff]
  %v2839 = vld [vmem:[#allocation3 + $0x1c] sm:$0x7f]
  %v2840 = vld [vmem:[%s7] sm:$0xff]
  %v2841 = vld [vmem:[%s7 + $0x8] sm:$0xff]
  %v2842 = vld [vmem:[%s7 + $0x10] sm:$0xff]
  %v2843 = vld [vmem:[%s7 + $0x18] sm:$0xff]
  %v2844 = vld [vmem:[%s7 + $0x20] sm:$0xff]
  %v2845 = vld [vmem:[%s7 + $0x28] sm:$0xff]
  %v2846 = vld [vmem:[%s7 + $0x30] sm:$0xff]
  %v2847 = vld [vmem:[%s7 + $0x38] sm:$0xff]
  %v2848 = vld [vmem:[%s7 + $0x40] sm:$0xff]
  %v2849 = vld [vmem:[%s7 + $0x48] sm:$0xff]
  %v2850 = vld [vmem:[%s7 + $0x50] sm:$0xff]
  %v2851 = vld [vmem:[%s7 + $0x58] sm:$0xff]
  %v2852 = vld [vmem:[%s7 + $0x60] sm:$0xff]
  %v2853 = vld [vmem:[%s7 + $0x68] sm:$0xff]
  %v2854 = vld [vmem:[%s7 + $0x70] sm:$0xff]
  %v2855 = vld [vmem:[%s7 + $0x78] sm:$0xff]
  %v2856 = vld [vmem:[%s7 + $0x80] sm:$0xff]
  %v2857 = vld [vmem:[%s7 + $0x88] sm:$0xff]
  %v2858 = vld [vmem:[%s7 + $0x90] sm:$0xff]
  %v2859 = vld [vmem:[%s7 + $0x98] sm:$0xff]
  %v2860 = vld [vmem:[%s7 + $0xa0] sm:$0xff]
  %v2861 = vld [vmem:[%s7 + $0xa8] sm:$0xff]
  %v2862 = vld [vmem:[%s7 + $0xb0] sm:$0xff]
  %v2863 = vld [vmem:[%s7 + $0xb8] sm:$0xff]
  %v2864 = vld [vmem:[%s7 + $0xc0] sm:$0xff]
  %v2865 = vld [vmem:[%s7 + $0xc8] sm:$0xff]
  %v2866 = vld [vmem:[%s7 + $0xd0] sm:$0xff]
  %v2867 = vld [vmem:[%s7 + $0xd8] sm:$0xff]
  %v2868 = vld [vmem:[%s7 + $0xe0] sm:$0xff]
  %v2869 = vld [vmem:[%s7 + $0xe8] sm:$0xff]
  %v2870 = vld [vmem:[%s7 + $0xf0] sm:$0xff]
  %v2871 = vld [vmem:[%s7 + $0xf8] sm:$0xff]
  %v2872 = vld [vmem:[#allocation3 + $0x15] sm:$0xff]
  %v2873 = vld [vmem:[#allocation3 + $0x1d] sm:$0x7f]
  %v2874 = vld [vmem:[%s2289] sm:$0xff]
  %v2875 = vld [vmem:[%s2289 + $0x8] sm:$0xff]
  %v2876 = vld [vmem:[%s2289 + $0x10] sm:$0xff]
  %v2877 = vld [vmem:[%s2289 + $0x18] sm:$0xff]
  %v2878 = vld [vmem:[%s2289 + $0x20] sm:$0xff]
  %v2879 = vld [vmem:[%s2289 + $0x28] sm:$0xff]
  %v2880 = vld [vmem:[%s2289 + $0x30] sm:$0xff]
  %v2881 = vld [vmem:[%s2289 + $0x38] sm:$0xff]
  %v2882 = vld [vmem:[%s2289 + $0x40] sm:$0xff]
  %v2883 = vld [vmem:[%s2289 + $0x48] sm:$0xff]
  %v2884 = vld [vmem:[%s2289 + $0x50] sm:$0xff]
  %v2885 = vld [vmem:[%s2289 + $0x58] sm:$0xff]
  %v2886 = vld [vmem:[%s2289 + $0x60] sm:$0xff]
  %v2887 = vld [vmem:[%s2289 + $0x68] sm:$0xff]
  %v2888 = vld [vmem:[%s2289 + $0x70] sm:$0xff]
  %v2889 = vld [vmem:[%s2289 + $0x78] sm:$0xff]
  %v2890 = vld [vmem:[%s2289 + $0x80] sm:$0xff]
  %v2891 = vld [vmem:[%s2289 + $0x88] sm:$0xff]
  %v2892 = vld [vmem:[%s2289 + $0x90] sm:$0xff]
  %v2893 = vld [vmem:[%s2289 + $0x98] sm:$0xff]
  %v2894 = vld [vmem:[%s2289 + $0xa0] sm:$0xff]
  %v2895 = vld [vmem:[%s2289 + $0xa8] sm:$0xff]
  %v2896 = vld [vmem:[%s2289 + $0xb0] sm:$0xff]
  %v2897 = vld [vmem:[%s2289 + $0xb8] sm:$0xff]
  %v2898 = vld [vmem:[%s2289 + $0xc0] sm:$0xff]
  %v2899 = vld [vmem:[%s2289 + $0xc8] sm:$0xff]
  %v2900 = vld [vmem:[%s2289 + $0xd0] sm:$0xff]
  %v2901 = vld [vmem:[%s2289 + $0xd8] sm:$0xff]
  %v2902 = vld [vmem:[%s2289 + $0xe0] sm:$0xff]
  %v2903 = vld [vmem:[%s2289 + $0xe8] sm:$0xff]
  %v2904 = vld [vmem:[%s2289 + $0xf0] sm:$0xff]
  %v2905 = vld [vmem:[%s2289 + $0xf8] sm:$0xff]
  %2906 = vmatpush.msra.mxu0 %v2904
  %2907 = vmatpush.msra.mxu0 %v2902
  %2908 = vmatpush.msra.mxu0 %v2900
  %2909 = vmatpush.msra.mxu0 %v2898
  %2910 = vmatpush.msra.mxu0 %v2896
  %2911 = vmatpush.msra.mxu0 %v2894
  %2912 = vmatpush.msra.mxu0 %v2892
  %2913 = vmatpush.msra.mxu0 %v2890
  %2914 = vmatpush.msra.mxu0 %v2888
  %2915 = vmatpush.msra.mxu0 %v2886
  %2916 = vmatpush.msra.mxu0 %v2884
  %2917 = vmatpush.msra.mxu0 %v2882
  %2918 = vmatpush.msra.mxu0 %v2880
  %2919 = vmatpush.msra.mxu0 %v2878
  %2920 = vmatpush.msra.mxu0 %v2876
  %2921 = vmatpush.msra.mxu0 %v2874
  %2922 = vmatmul.f32.gmra.mxu0 %v2872
  %v2923 = vpop.f32.mrf.mxu0
  %v2924 = vadd.f32 0.0, %v2923
  %2925 = vmatmul.f32.gmra.mxu0 %v2873
  %v2926 = vpop.f32.mrf.mxu0
  %v2927 = vadd.f32 0.0, %v2926
  %2928 = vdwg.mxu0
  %2929 = vmatpush.msra.mxu0 %v2905
  %2930 = vmatpush.msra.mxu0 %v2903
  %2931 = vmatpush.msra.mxu0 %v2901
  %2932 = vmatpush.msra.mxu0 %v2899
  %2933 = vmatpush.msra.mxu0 %v2897
  %2934 = vmatpush.msra.mxu0 %v2895
  %2935 = vmatpush.msra.mxu0 %v2893
  %2936 = vmatpush.msra.mxu0 %v2891
  %2937 = vmatpush.msra.mxu0 %v2889
  %2938 = vmatpush.msra.mxu0 %v2887
  %2939 = vmatpush.msra.mxu0 %v2885
  %2940 = vmatpush.msra.mxu0 %v2883
  %2941 = vmatpush.msra.mxu0 %v2881
  %2942 = vmatpush.msra.mxu0 %v2879
  %2943 = vmatpush.msra.mxu0 %v2877
  %2944 = vmatpush.msra.mxu0 %v2875
  %2945 = vmatmul.f32.gmra.mxu0 %v2872
  %v2946 = vpop.f32.mrf.mxu0
  %v2947 = vadd.f32 0.0, %v2946
  %2948 = vmatmul.f32.gmra.mxu0 %v2873
  %v2949 = vpop.f32.mrf.mxu0
  %v2950 = vadd.f32 0.0, %v2949
  %2951 = vdwg.mxu0
  %2952 = vmatpush.msra.mxu0 %v2870
  %2953 = vmatpush.msra.mxu0 %v2868
  %2954 = vmatpush.msra.mxu0 %v2866
  %2955 = vmatpush.msra.mxu0 %v2864
  %2956 = vmatpush.msra.mxu0 %v2862
  %2957 = vmatpush.msra.mxu0 %v2860
  %2958 = vmatpush.msra.mxu0 %v2858
  %2959 = vmatpush.msra.mxu0 %v2856
  %2960 = vmatpush.msra.mxu0 %v2854
  %2961 = vmatpush.msra.mxu0 %v2852
  %2962 = vmatpush.msra.mxu0 %v2850
  %2963 = vmatpush.msra.mxu0 %v2848
  %2964 = vmatpush.msra.mxu0 %v2846
  %2965 = vmatpush.msra.mxu0 %v2844
  %2966 = vmatpush.msra.mxu0 %v2842
  %2967 = vmatpush.msra.mxu0 %v2840
  %2968 = vmatmul.f32.gmra.mxu0 %v2838
  %v2969 = vpop.f32.mrf.mxu0
  %v2970 = vadd.f32 %v2924, %v2969
  %2971 = vmatmul.f32.gmra.mxu0 %v2839
  %v2972 = vpop.f32.mrf.mxu0
  %v2973 = vadd.f32 %v2927, %v2972
  %2974 = vdwg.mxu0
  %2975 = vmatpush.msra.mxu0 %v2871
  %2976 = vmatpush.msra.mxu0 %v2869
  %2977 = vmatpush.msra.mxu0 %v2867
  %2978 = vmatpush.msra.mxu0 %v2865
  %2979 = vmatpush.msra.mxu0 %v2863
  %2980 = vmatpush.msra.mxu0 %v2861
  %2981 = vmatpush.msra.mxu0 %v2859
  %2982 = vmatpush.msra.mxu0 %v2857
  %2983 = vmatpush.msra.mxu0 %v2855
  %2984 = vmatpush.msra.mxu0 %v2853
  %2985 = vmatpush.msra.mxu0 %v2851
  %2986 = vmatpush.msra.mxu0 %v2849
  %2987 = vmatpush.msra.mxu0 %v2847
  %2988 = vmatpush.msra.mxu0 %v2845
  %2989 = vmatpush.msra.mxu0 %v2843
  %2990 = vmatpush.msra.mxu0 %v2841
  %2991 = vmatmul.f32.gmra.mxu0 %v2838
  %v2992 = vpop.f32.mrf.mxu0
  %v2993 = vadd.f32 %v2947, %v2992
  %2994 = vmatmul.f32.gmra.mxu0 %v2839
  %v2995 = vpop.f32.mrf.mxu0
  %v2996 = vadd.f32 %v2950, %v2995
  %2997 = vdwg.mxu0
  %v2998 = vld [vmem:[#allocation3 + $0x16] sm:$0xff]
  %v2999 = vld [vmem:[#allocation3 + $0x1e] sm:$0x7f]
  %v3000 = vld [vmem:[%s2416] sm:$0xff]
  %v3001 = vld [vmem:[%s2416 + $0x8] sm:$0xff]
  %v3002 = vld [vmem:[%s2416 + $0x10] sm:$0xff]
  %v3003 = vld [vmem:[%s2416 + $0x18] sm:$0xff]
  %v3004 = vld [vmem:[%s2416 + $0x20] sm:$0xff]
  %v3005 = vld [vmem:[%s2416 + $0x28] sm:$0xff]
  %v3006 = vld [vmem:[%s2416 + $0x30] sm:$0xff]
  %v3007 = vld [vmem:[%s2416 + $0x38] sm:$0xff]
  %v3008 = vld [vmem:[%s2416 + $0x40] sm:$0xff]
  %v3009 = vld [vmem:[%s2416 + $0x48] sm:$0xff]
  %v3010 = vld [vmem:[%s2416 + $0x50] sm:$0xff]
  %v3011 = vld [vmem:[%s2416 + $0x58] sm:$0xff]
  %v3012 = vld [vmem:[%s2416 + $0x60] sm:$0xff]
  %v3013 = vld [vmem:[%s2416 + $0x68] sm:$0xff]
  %v3014 = vld [vmem:[%s2416 + $0x70] sm:$0xff]
  %v3015 = vld [vmem:[%s2416 + $0x78] sm:$0xff]
  %v3016 = vld [vmem:[%s2416 + $0x80] sm:$0xff]
  %v3017 = vld [vmem:[%s2416 + $0x88] sm:$0xff]
  %v3018 = vld [vmem:[%s2416 + $0x90] sm:$0xff]
  %v3019 = vld [vmem:[%s2416 + $0x98] sm:$0xff]
  %v3020 = vld [vmem:[%s2416 + $0xa0] sm:$0xff]
  %v3021 = vld [vmem:[%s2416 + $0xa8] sm:$0xff]
  %v3022 = vld [vmem:[%s2416 + $0xb0] sm:$0xff]
  %v3023 = vld [vmem:[%s2416 + $0xb8] sm:$0xff]
  %v3024 = vld [vmem:[%s2416 + $0xc0] sm:$0xff]
  %v3025 = vld [vmem:[%s2416 + $0xc8] sm:$0xff]
  %v3026 = vld [vmem:[%s2416 + $0xd0] sm:$0xff]
  %v3027 = vld [vmem:[%s2416 + $0xd8] sm:$0xff]
  %v3028 = vld [vmem:[%s2416 + $0xe0] sm:$0xff]
  %v3029 = vld [vmem:[%s2416 + $0xe8] sm:$0xff]
  %v3030 = vld [vmem:[%s2416 + $0xf0] sm:$0xff]
  %v3031 = vld [vmem:[%s2416 + $0xf8] sm:$0xff]
  %3032 = vmatpush.msra.mxu0 %v3030
  %3033 = vmatpush.msra.mxu0 %v3028
  %3034 = vmatpush.msra.mxu0 %v3026
  %3035 = vmatpush.msra.mxu0 %v3024
  %3036 = vmatpush.msra.mxu0 %v3022
  %3037 = vmatpush.msra.mxu0 %v3020
  %3038 = vmatpush.msra.mxu0 %v3018
  %3039 = vmatpush.msra.mxu0 %v3016
  %3040 = vmatpush.msra.mxu0 %v3014
  %3041 = vmatpush.msra.mxu0 %v3012
  %3042 = vmatpush.msra.mxu0 %v3010
  %3043 = vmatpush.msra.mxu0 %v3008
  %3044 = vmatpush.msra.mxu0 %v3006
  %3045 = vmatpush.msra.mxu0 %v3004
  %3046 = vmatpush.msra.mxu0 %v3002
  %3047 = vmatpush.msra.mxu0 %v3000
  %3048 = vmatmul.f32.gmra.mxu0 %v2998
  %v3049 = vpop.f32.mrf.mxu0
  %v3050 = vadd.f32 0.0, %v3049
  %3051 = vmatmul.f32.gmra.mxu0 %v2999
  %v3052 = vpop.f32.mrf.mxu0
  %v3053 = vadd.f32 0.0, %v3052
  %3054 = vdwg.mxu0
  %3055 = vmatpush.msra.mxu0 %v3031
  %3056 = vmatpush.msra.mxu0 %v3029
  %3057 = vmatpush.msra.mxu0 %v3027
  %3058 = vmatpush.msra.mxu0 %v3025
  %3059 = vmatpush.msra.mxu0 %v3023
  %3060 = vmatpush.msra.mxu0 %v3021
  %3061 = vmatpush.msra.mxu0 %v3019
  %3062 = vmatpush.msra.mxu0 %v3017
  %3063 = vmatpush.msra.mxu0 %v3015
  %3064 = vmatpush.msra.mxu0 %v3013
  %3065 = vmatpush.msra.mxu0 %v3011
  %3066 = vmatpush.msra.mxu0 %v3009
  %3067 = vmatpush.msra.mxu0 %v3007
  %3068 = vmatpush.msra.mxu0 %v3005
  %3069 = vmatpush.msra.mxu0 %v3003
  %3070 = vmatpush.msra.mxu0 %v3001
  %3071 = vmatmul.f32.gmra.mxu0 %v2998
  %v3072 = vpop.f32.mrf.mxu0
  %v3073 = vadd.f32 0.0, %v3072
  %3074 = vmatmul.f32.gmra.mxu0 %v2999
  %v3075 = vpop.f32.mrf.mxu0
  %v3076 = vadd.f32 0.0, %v3075
  %3077 = vdwg.mxu0
  %v3078 = vadd.f32 %v2970, %v3050
  %v3079 = vadd.f32 %v2993, %v3073
  %v3080 = vadd.f32 %v2973, %v3053
  %v3081 = vadd.f32 %v2996, %v3076
  %v3082 = vld [vmem:[#allocation3 + $0x17] sm:$0xff]
  %v3083 = vld [vmem:[#allocation3 + $0x1f] sm:$0x7f]
  %v3084 = vld [vmem:[%s2501] sm:$0xff]
  %v3085 = vld [vmem:[%s2501 + $0x8] sm:$0xff]
  %v3086 = vld [vmem:[%s2501 + $0x10] sm:$0xff]
  %v3087 = vld [vmem:[%s2501 + $0x18] sm:$0xff]
  %v3088 = vld [vmem:[%s2501 + $0x20] sm:$0xff]
  %v3089 = vld [vmem:[%s2501 + $0x28] sm:$0xff]
  %v3090 = vld [vmem:[%s2501 + $0x30] sm:$0xff]
  %v3091 = vld [vmem:[%s2501 + $0x38] sm:$0xff]
  %v3092 = vld [vmem:[%s2501 + $0x40] sm:$0xff]
  %v3093 = vld [vmem:[%s2501 + $0x48] sm:$0xff]
  %v3094 = vld [vmem:[%s2501 + $0x50] sm:$0xff]
  %v3095 = vld [vmem:[%s2501 + $0x58] sm:$0xff]
  %v3096 = vld [vmem:[%s2501 + $0x60] sm:$0xff]
  %v3097 = vld [vmem:[%s2501 + $0x68] sm:$0xff]
  %v3098 = vld [vmem:[%s2501 + $0x70] sm:$0xff]
  %v3099 = vld [vmem:[%s2501 + $0x78] sm:$0xff]
  %v3100 = vld [vmem:[%s2501 + $0x80] sm:$0xff]
  %v3101 = vld [vmem:[%s2501 + $0x88] sm:$0xff]
  %v3102 = vld [vmem:[%s2501 + $0x90] sm:$0xff]
  %v3103 = vld [vmem:[%s2501 + $0x98] sm:$0xff]
  %v3104 = vld [vmem:[%s2501 + $0xa0] sm:$0xff]
  %v3105 = vld [vmem:[%s2501 + $0xa8] sm:$0xff]
  %v3106 = vld [vmem:[%s2501 + $0xb0] sm:$0xff]
  %v3107 = vld [vmem:[%s2501 + $0xb8] sm:$0xff]
  %v3108 = vld [vmem:[%s2501 + $0xc0] sm:$0xff]
  %v3109 = vld [vmem:[%s2501 + $0xc8] sm:$0xff]
  %v3110 = vld [vmem:[%s2501 + $0xd0] sm:$0xff]
  %v3111 = vld [vmem:[%s2501 + $0xd8] sm:$0xff]
  %v3112 = vld [vmem:[%s2501 + $0xe0] sm:$0xff]
  %v3113 = vld [vmem:[%s2501 + $0xe8] sm:$0xff]
  %v3114 = vld [vmem:[%s2501 + $0xf0] sm:$0xff]
  %v3115 = vld [vmem:[%s2501 + $0xf8] sm:$0xff]
  %3116 = vmatpush.msra.mxu0 %v3114
  %3117 = vmatpush.msra.mxu0 %v3112
  %3118 = vmatpush.msra.mxu0 %v3110
  %3119 = vmatpush.msra.mxu0 %v3108
  %3120 = vmatpush.msra.mxu0 %v3106
  %3121 = vmatpush.msra.mxu0 %v3104
  %3122 = vmatpush.msra.mxu0 %v3102
  %3123 = vmatpush.msra.mxu0 %v3100
  %3124 = vmatpush.msra.mxu0 %v3098
  %3125 = vmatpush.msra.mxu0 %v3096
  %3126 = vmatpush.msra.mxu0 %v3094
  %3127 = vmatpush.msra.mxu0 %v3092
  %3128 = vmatpush.msra.mxu0 %v3090
  %3129 = vmatpush.msra.mxu0 %v3088
  %3130 = vmatpush.msra.mxu0 %v3086
  %3131 = vmatpush.msra.mxu0 %v3084
  %3132 = vmatmul.f32.gmra.mxu0 %v3082
  %v3133 = vpop.f32.mrf.mxu0
  %v3134 = vadd.f32 0.0, %v3133
  %3135 = vmatmul.f32.gmra.mxu0 %v3083
  %v3136 = vpop.f32.mrf.mxu0
  %v3137 = vadd.f32 0.0, %v3136
  %3138 = vdwg.mxu0
  %3139 = vmatpush.msra.mxu0 %v3115
  %3140 = vmatpush.msra.mxu0 %v3113
  %3141 = vmatpush.msra.mxu0 %v3111
  %3142 = vmatpush.msra.mxu0 %v3109
  %3143 = vmatpush.msra.mxu0 %v3107
  %3144 = vmatpush.msra.mxu0 %v3105
  %3145 = vmatpush.msra.mxu0 %v3103
  %3146 = vmatpush.msra.mxu0 %v3101
  %3147 = vmatpush.msra.mxu0 %v3099
  %3148 = vmatpush.msra.mxu0 %v3097
  %3149 = vmatpush.msra.mxu0 %v3095
  %3150 = vmatpush.msra.mxu0 %v3093
  %3151 = vmatpush.msra.mxu0 %v3091
  %3152 = vmatpush.msra.mxu0 %v3089
  %3153 = vmatpush.msra.mxu0 %v3087
  %3154 = vmatpush.msra.mxu0 %v3085
  %3155 = vmatmul.f32.gmra.mxu0 %v3082
  %v3156 = vpop.f32.mrf.mxu0
  %v3157 = vadd.f32 0.0, %v3156
  %3158 = vmatmul.f32.gmra.mxu0 %v3083
  %v3159 = vpop.f32.mrf.mxu0
  %v3160 = vadd.f32 0.0, %v3159
  %3161 = vdwg.mxu0
  %v3162 = vadd.f32 %v3078, %v3134
  %v3163 = vadd.f32 %v3079, %v3157
  %v3164 = vadd.f32 %v3080, %v3137
  %v3165 = vadd.f32 %v3081, %v3160
  %v3166 = vld [vmem:[#allocation3 + $0x18] sm:$0xff]
  %v3167 = vld [vmem:[#allocation3 + $0x20] sm:$0x7f]
  %v3168 = vld [vmem:[%s2586] sm:$0xff]
  %v3169 = vld [vmem:[%s2586 + $0x8] sm:$0xff]
  %v3170 = vld [vmem:[%s2586 + $0x10] sm:$0xff]
  %v3171 = vld [vmem:[%s2586 + $0x18] sm:$0xff]
  %v3172 = vld [vmem:[%s2586 + $0x20] sm:$0xff]
  %v3173 = vld [vmem:[%s2586 + $0x28] sm:$0xff]
  %v3174 = vld [vmem:[%s2586 + $0x30] sm:$0xff]
  %v3175 = vld [vmem:[%s2586 + $0x38] sm:$0xff]
  %v3176 = vld [vmem:[%s2586 + $0x40] sm:$0xff]
  %v3177 = vld [vmem:[%s2586 + $0x48] sm:$0xff]
  %v3178 = vld [vmem:[%s2586 + $0x50] sm:$0xff]
  %v3179 = vld [vmem:[%s2586 + $0x58] sm:$0xff]
  %v3180 = vld [vmem:[%s2586 + $0x60] sm:$0xff]
  %v3181 = vld [vmem:[%s2586 + $0x68] sm:$0xff]
  %v3182 = vld [vmem:[%s2586 + $0x70] sm:$0xff]
  %v3183 = vld [vmem:[%s2586 + $0x78] sm:$0xff]
  %v3184 = vld [vmem:[%s2586 + $0x80] sm:$0xff]
  %v3185 = vld [vmem:[%s2586 + $0x88] sm:$0xff]
  %v3186 = vld [vmem:[%s2586 + $0x90] sm:$0xff]
  %v3187 = vld [vmem:[%s2586 + $0x98] sm:$0xff]
  %v3188 = vld [vmem:[%s2586 + $0xa0] sm:$0xff]
  %v3189 = vld [vmem:[%s2586 + $0xa8] sm:$0xff]
  %v3190 = vld [vmem:[%s2586 + $0xb0] sm:$0xff]
  %v3191 = vld [vmem:[%s2586 + $0xb8] sm:$0xff]
  %v3192 = vld [vmem:[%s2586 + $0xc0] sm:$0xff]
  %v3193 = vld [vmem:[%s2586 + $0xc8] sm:$0xff]
  %v3194 = vld [vmem:[%s2586 + $0xd0] sm:$0xff]
  %v3195 = vld [vmem:[%s2586 + $0xd8] sm:$0xff]
  %v3196 = vld [vmem:[%s2586 + $0xe0] sm:$0xff]
  %v3197 = vld [vmem:[%s2586 + $0xe8] sm:$0xff]
  %v3198 = vld [vmem:[%s2586 + $0xf0] sm:$0xff]
  %v3199 = vld [vmem:[%s2586 + $0xf8] sm:$0xff]
  %3200 = vmatpush.msra.mxu0 %v3198
  %3201 = vmatpush.msra.mxu0 %v3196
  %3202 = vmatpush.msra.mxu0 %v3194
  %3203 = vmatpush.msra.mxu0 %v3192
  %3204 = vmatpush.msra.mxu0 %v3190
  %3205 = vmatpush.msra.mxu0 %v3188
  %3206 = vmatpush.msra.mxu0 %v3186
  %3207 = vmatpush.msra.mxu0 %v3184
  %3208 = vmatpush.msra.mxu0 %v3182
  %3209 = vmatpush.msra.mxu0 %v3180
  %3210 = vmatpush.msra.mxu0 %v3178
  %3211 = vmatpush.msra.mxu0 %v3176
  %3212 = vmatpush.msra.mxu0 %v3174
  %3213 = vmatpush.msra.mxu0 %v3172
  %3214 = vmatpush.msra.mxu0 %v3170
  %3215 = vmatpush.msra.mxu0 %v3168
  %3216 = vmatmul.f32.gmra.mxu0 %v3166
  %v3217 = vpop.f32.mrf.mxu0
  %v3218 = vadd.f32 0.0, %v3217
  %3219 = vmatmul.f32.gmra.mxu0 %v3167
  %v3220 = vpop.f32.mrf.mxu0
  %v3221 = vadd.f32 0.0, %v3220
  %3222 = vdwg.mxu0
  %3223 = vmatpush.msra.mxu0 %v3199
  %3224 = vmatpush.msra.mxu0 %v3197
  %3225 = vmatpush.msra.mxu0 %v3195
  %3226 = vmatpush.msra.mxu0 %v3193
  %3227 = vmatpush.msra.mxu0 %v3191
  %3228 = vmatpush.msra.mxu0 %v3189
  %3229 = vmatpush.msra.mxu0 %v3187
  %3230 = vmatpush.msra.mxu0 %v3185
  %3231 = vmatpush.msra.mxu0 %v3183
  %3232 = vmatpush.msra.mxu0 %v3181
  %3233 = vmatpush.msra.mxu0 %v3179
  %3234 = vmatpush.msra.mxu0 %v3177
  %3235 = vmatpush.msra.mxu0 %v3175
  %3236 = vmatpush.msra.mxu0 %v3173
  %3237 = vmatpush.msra.mxu0 %v3171
  %3238 = vmatpush.msra.mxu0 %v3169
  %3239 = vmatmul.f32.gmra.mxu0 %v3166
  %v3240 = vpop.f32.mrf.mxu0
  %v3241 = vadd.f32 0.0, %v3240
  %3242 = vmatmul.f32.gmra.mxu0 %v3167
  %v3243 = vpop.f32.mrf.mxu0
  %v3244 = vadd.f32 0.0, %v3243
  %3245 = vdwg.mxu0
  %v3246 = vadd.f32 %v3162, %v3218
  %v3247 = vadd.f32 %v3163, %v3241
  %v3248 = vadd.f32 %v3164, %v3221
  %v3249 = vadd.f32 %v3165, %v3244
  %v3250 = vld [vmem:[#allocation3 + $0x19] sm:$0xff]
  %v3251 = vld [vmem:[#allocation3 + $0x21] sm:$0x7f]
  %v3252 = vld [vmem:[%s2671] sm:$0xff]
  %v3253 = vld [vmem:[%s2671 + $0x8] sm:$0xff]
  %v3254 = vld [vmem:[%s2671 + $0x10] sm:$0xff]
  %v3255 = vld [vmem:[%s2671 + $0x18] sm:$0xff]
  %v3256 = vld [vmem:[%s2671 + $0x20] sm:$0xff]
  %v3257 = vld [vmem:[%s2671 + $0x28] sm:$0xff]
  %v3258 = vld [vmem:[%s2671 + $0x30] sm:$0xff]
  %v3259 = vld [vmem:[%s2671 + $0x38] sm:$0xff]
  %v3260 = vld [vmem:[%s2671 + $0x40] sm:$0xff]
  %v3261 = vld [vmem:[%s2671 + $0x48] sm:$0xff]
  %v3262 = vld [vmem:[%s2671 + $0x50] sm:$0xff]
  %v3263 = vld [vmem:[%s2671 + $0x58] sm:$0xff]
  %v3264 = vld [vmem:[%s2671 + $0x60] sm:$0xff]
  %v3265 = vld [vmem:[%s2671 + $0x68] sm:$0xff]
  %v3266 = vld [vmem:[%s2671 + $0x70] sm:$0xff]
  %v3267 = vld [vmem:[%s2671 + $0x78] sm:$0xff]
  %v3268 = vld [vmem:[%s2671 + $0x80] sm:$0xff]
  %v3269 = vld [vmem:[%s2671 + $0x88] sm:$0xff]
  %v3270 = vld [vmem:[%s2671 + $0x90] sm:$0xff]
  %v3271 = vld [vmem:[%s2671 + $0x98] sm:$0xff]
  %v3272 = vld [vmem:[%s2671 + $0xa0] sm:$0xff]
  %v3273 = vld [vmem:[%s2671 + $0xa8] sm:$0xff]
  %v3274 = vld [vmem:[%s2671 + $0xb0] sm:$0xff]
  %v3275 = vld [vmem:[%s2671 + $0xb8] sm:$0xff]
  %v3276 = vld [vmem:[%s2671 + $0xc0] sm:$0xff]
  %v3277 = vld [vmem:[%s2671 + $0xc8] sm:$0xff]
  %v3278 = vld [vmem:[%s2671 + $0xd0] sm:$0xff]
  %v3279 = vld [vmem:[%s2671 + $0xd8] sm:$0xff]
  %v3280 = vld [vmem:[%s2671 + $0xe0] sm:$0xff]
  %v3281 = vld [vmem:[%s2671 + $0xe8] sm:$0xff]
  %v3282 = vld [vmem:[%s2671 + $0xf0] sm:$0xff]
  %v3283 = vld [vmem:[%s2671 + $0xf8] sm:$0xff]
  %3284 = vmatpush.msra.mxu0 %v3282
  %3285 = vmatpush.msra.mxu0 %v3280
  %3286 = vmatpush.msra.mxu0 %v3278
  %3287 = vmatpush.msra.mxu0 %v3276
  %3288 = vmatpush.msra.mxu0 %v3274
  %3289 = vmatpush.msra.mxu0 %v3272
  %3290 = vmatpush.msra.mxu0 %v3270
  %3291 = vmatpush.msra.mxu0 %v3268
  %3292 = vmatpush.msra.mxu0 %v3266
  %3293 = vmatpush.msra.mxu0 %v3264
  %3294 = vmatpush.msra.mxu0 %v3262
  %3295 = vmatpush.msra.mxu0 %v3260
  %3296 = vmatpush.msra.mxu0 %v3258
  %3297 = vmatpush.msra.mxu0 %v3256
  %3298 = vmatpush.msra.mxu0 %v3254
  %3299 = vmatpush.msra.mxu0 %v3252
  %3300 = vmatmul.f32.gmra.mxu0 %v3250
  %v3301 = vpop.f32.mrf.mxu0
  %v3302 = vadd.f32 0.0, %v3301
  %3303 = vmatmul.f32.gmra.mxu0 %v3251
  %v3304 = vpop.f32.mrf.mxu0
  %v3305 = vadd.f32 0.0, %v3304
  %3306 = vdwg.mxu0
  %3307 = vmatpush.msra.mxu0 %v3283
  %3308 = vmatpush.msra.mxu0 %v3281
  %3309 = vmatpush.msra.mxu0 %v3279
  %3310 = vmatpush.msra.mxu0 %v3277
  %3311 = vmatpush.msra.mxu0 %v3275
  %3312 = vmatpush.msra.mxu0 %v3273
  %3313 = vmatpush.msra.mxu0 %v3271
  %3314 = vmatpush.msra.mxu0 %v3269
  %3315 = vmatpush.msra.mxu0 %v3267
  %3316 = vmatpush.msra.mxu0 %v3265
  %3317 = vmatpush.msra.mxu0 %v3263
  %3318 = vmatpush.msra.mxu0 %v3261
  %3319 = vmatpush.msra.mxu0 %v3259
  %3320 = vmatpush.msra.mxu0 %v3257
  %3321 = vmatpush.msra.mxu0 %v3255
  %3322 = vmatpush.msra.mxu0 %v3253
  %3323 = vmatmul.f32.gmra.mxu0 %v3250
  %v3324 = vpop.f32.mrf.mxu0
  %v3325 = vadd.f32 0.0, %v3324
  %3326 = vmatmul.f32.gmra.mxu0 %v3251
  %v3327 = vpop.f32.mrf.mxu0
  %v3328 = vadd.f32 0.0, %v3327
  %3329 = vdwg.mxu0
  %v3330 = vadd.f32 %v3246, %v3302
  %v3331 = vadd.f32 %v3247, %v3325
  %v3332 = vadd.f32 %v3248, %v3305
  %v3333 = vadd.f32 %v3249, %v3328
  %v3335 = vsel %vm1649, %v3332, 0
  %v3338 = vsel %vm1649, %v3333, 0
  %3340 = vmatpush.msra.mxu0 0.0
  %3341 = vmatpush.msra.mxu0 0.0
  %3342 = vmatpush.msra.mxu0 0.0
  %3343 = vmatpush.msra.mxu0 0.0
  %3344 = vmatpush.msra.mxu0 0.0
  %3345 = vmatpush.msra.mxu0 0.0
  %3346 = vmatpush.msra.mxu0 0.0
  %3347 = vmatpush.msra.mxu0 0.0
  %3348 = vmatpush.msra.mxu0 0.0
  %3349 = vmatpush.msra.mxu0 0.0
  %3350 = vmatpush.msra.mxu0 0.0
  %3351 = vmatpush.msra.mxu0 0.0
  %3352 = vmatpush.msra.mxu0 0.0
  %3353 = vmatpush.msra.mxu0 0.0
  %3354 = vmatpush.msra.mxu0 %v3335
  %3355 = vmatpush.msra.mxu0 %v3330
  %3356 = vmatmul.f32.gmra.mxu0 %v2755
  %v3357 = vpop.f32.mrf.mxu0
  %v3358 = vadd.f32 0.0, %v3357
  %3359 = vdwg.mxu0
  %3360 = vmatpush.msra.mxu0 0.0
  %3361 = vmatpush.msra.mxu0 0.0
  %3362 = vmatpush.msra.mxu0 0.0
  %3363 = vmatpush.msra.mxu0 0.0
  %3364 = vmatpush.msra.mxu0 0.0
  %3365 = vmatpush.msra.mxu0 0.0
  %3366 = vmatpush.msra.mxu0 0.0
  %3367 = vmatpush.msra.mxu0 0.0
  %3368 = vmatpush.msra.mxu0 0.0
  %3369 = vmatpush.msra.mxu0 0.0
  %3370 = vmatpush.msra.mxu0 0.0
  %3371 = vmatpush.msra.mxu0 0.0
  %3372 = vmatpush.msra.mxu0 0.0
  %3373 = vmatpush.msra.mxu0 0.0
  %3374 = vmatpush.msra.mxu0 %v3338
  %3375 = vmatpush.msra.mxu0 %v3331
  %3376 = vmatmul.f32.gmra.mxu0 %v2755
  %v3377 = vpop.f32.mrf.mxu0
  %v3378 = vadd.f32 0.0, %v3377
  %3379 = vdwg.mxu0
  %3380 = vst [vmem:[#allocation4 + $0x10] sm:$0xff] %v3358
  %3381 = vst.msk [vmem:[#allocation4 + $0x18] sm:$0xff] %vm2804, %v3378
  %v3382 = vrot.slane %v3358, 4
  %v3383 = vadd.f32 %v3358, %v3382
  %v3384 = vrot.slane %v3383, 2
  %v3385 = vadd.f32 %v3383, %v3384
  %v3386 = vrot.slane %v3385, 1
  %v3387 = vadd.f32 %v3385, %v3386
  %v3388 = vsel %vm2804, %v3378, 0.0
  %v3389 = vrot.slane %v3388, 4
  %v3390 = vadd.f32 %v3388, %v3389
  %v3391 = vrot.slane %v3390, 2
  %v3392 = vadd.f32 %v3390, %v3391
  %v3393 = vrot.slane %v3392, 1
  %v3394 = vadd.f32 %v3392, %v3393
  %v3395 = vadd.f32 %v2819, %v3387
  %v3396 = vadd.f32 %v2820, %v3394
  %v3397 = vmul.f32 %v3358, %v3358
  %v3398 = vmul.f32 %v3378, %v3378
  %v3399 = vrot.slane %v3397, 4
  %v3400 = vadd.f32 %v3397, %v3399
  %v3401 = vrot.slane %v3400, 2
  %v3402 = vadd.f32 %v3400, %v3401
  %v3403 = vrot.slane %v3402, 1
  %v3404 = vadd.f32 %v3402, %v3403
  %v3405 = vsel %vm2804, %v3398, 0.0
  %v3406 = vrot.slane %v3405, 4
  %v3407 = vadd.f32 %v3405, %v3406
  %v3408 = vrot.slane %v3407, 2
  %v3409 = vadd.f32 %v3407, %v3408
  %v3410 = vrot.slane %v3409, 1
  %v3411 = vadd.f32 %v3409, %v3410
  %v3412 = vadd.f32 %v2836, %v3404
  %v3413 = vadd.f32 %v2837, %v3411
  %v3414 = vld [vmem:[%s9] sm:$0xff]
  %v3415 = vld [vmem:[%s9 + $0x8] sm:$0xff]
  %v3416 = vld [vmem:[%s9 + $0x10] sm:$0xff]
  %v3417 = vld [vmem:[%s9 + $0x18] sm:$0xff]
  %v3418 = vld [vmem:[%s9 + $0x20] sm:$0xff]
  %v3419 = vld [vmem:[%s9 + $0x28] sm:$0xff]
  %v3420 = vld [vmem:[%s9 + $0x30] sm:$0xff]
  %v3421 = vld [vmem:[%s9 + $0x38] sm:$0xff]
  %v3422 = vld [vmem:[%s9 + $0x40] sm:$0xff]
  %v3423 = vld [vmem:[%s9 + $0x48] sm:$0xff]
  %v3424 = vld [vmem:[%s9 + $0x50] sm:$0xff]
  %v3425 = vld [vmem:[%s9 + $0x58] sm:$0xff]
  %v3426 = vld [vmem:[%s9 + $0x60] sm:$0xff]
  %v3427 = vld [vmem:[%s9 + $0x68] sm:$0xff]
  %v3428 = vld [vmem:[%s9 + $0x70] sm:$0xff]
  %v3429 = vld [vmem:[%s9 + $0x78] sm:$0xff]
  %v3430 = vld [vmem:[%s9 + $0x80] sm:$0xff]
  %v3431 = vld [vmem:[%s9 + $0x88] sm:$0xff]
  %v3432 = vld [vmem:[%s9 + $0x90] sm:$0xff]
  %v3433 = vld [vmem:[%s9 + $0x98] sm:$0xff]
  %v3434 = vld [vmem:[%s9 + $0xa0] sm:$0xff]
  %v3435 = vld [vmem:[%s9 + $0xa8] sm:$0xff]
  %v3436 = vld [vmem:[%s9 + $0xb0] sm:$0xff]
  %v3437 = vld [vmem:[%s9 + $0xb8] sm:$0xff]
  %v3438 = vld [vmem:[%s9 + $0xc0] sm:$0xff]
  %v3439 = vld [vmem:[%s9 + $0xc8] sm:$0xff]
  %v3440 = vld [vmem:[%s9 + $0xd0] sm:$0xff]
  %v3441 = vld [vmem:[%s9 + $0xd8] sm:$0xff]
  %v3442 = vld [vmem:[%s9 + $0xe0] sm:$0xff]
  %v3443 = vld [vmem:[%s9 + $0xe8] sm:$0xff]
  %v3444 = vld [vmem:[%s9 + $0xf0] sm:$0xff]
  %v3445 = vld [vmem:[%s9 + $0xf8] sm:$0xff]
  %v3446 = vld [vmem:[%s9 + $0x100] sm:$0xff]
  %v3447 = vld [vmem:[%s9 + $0x108] sm:$0xff]
  %v3448 = vld [vmem:[%s9 + $0x110] sm:$0xff]
  %v3449 = vld [vmem:[%s9 + $0x118] sm:$0xff]
  %v3450 = vld [vmem:[%s9 + $0x120] sm:$0xff]
  %v3451 = vld [vmem:[%s9 + $0x128] sm:$0xff]
  %v3452 = vld [vmem:[%s9 + $0x130] sm:$0xff]
  %v3453 = vld [vmem:[%s9 + $0x138] sm:$0xff]
  %v3454 = vld [vmem:[%s9 + $0x140] sm:$0xff]
  %v3455 = vld [vmem:[%s9 + $0x148] sm:$0xff]
  %v3456 = vld [vmem:[%s9 + $0x150] sm:$0xff]
  %v3457 = vld [vmem:[%s9 + $0x158] sm:$0xff]
  %v3458 = vld [vmem:[%s9 + $0x160] sm:$0xff]
  %v3459 = vld [vmem:[%s9 + $0x168] sm:$0xff]
  %v3460 = vld [vmem:[%s9 + $0x170] sm:$0xff]
  %v3461 = vld [vmem:[%s9 + $0x178] sm:$0xff]
  %v3463 = vsel %vm2804, %v3396, 0
  %3465 = vmatpush.msra.mxu0 %v3444
  %3466 = vmatpush.msra.mxu0 %v3442
  %3467 = vmatpush.msra.mxu0 %v3440
  %3468 = vmatpush.msra.mxu0 %v3438
  %3469 = vmatpush.msra.mxu0 %v3436
  %3470 = vmatpush.msra.mxu0 %v3434
  %3471 = vmatpush.msra.mxu0 %v3432
  %3472 = vmatpush.msra.mxu0 %v3430
  %3473 = vmatpush.msra.mxu0 %v3428
  %3474 = vmatpush.msra.mxu0 %v3426
  %3475 = vmatpush.msra.mxu0 %v3424
  %3476 = vmatpush.msra.mxu0 %v3422
  %3477 = vmatpush.msra.mxu0 %v3420
  %3478 = vmatpush.msra.mxu0 %v3418
  %3479 = vmatpush.msra.mxu0 %v3416
  %3480 = vmatpush.msra.mxu0 %v3414
  %3481 = vmatmul.f32.gmra.mxu0 %v3395
  %v3482 = vpop.f32.mrf.mxu0
  %v3483 = vadd.f32 0.0, %v3482
  %3484 = vdwg.mxu0
  %3485 = vmatpush.msra.mxu0 0.0
  %3486 = vmatpush.msra.mxu0 0.0
  %3487 = vmatpush.msra.mxu0 0.0
  %3488 = vmatpush.msra.mxu0 0.0
  %3489 = vmatpush.msra.mxu0 0.0
  %3490 = vmatpush.msra.mxu0 0.0
  %3491 = vmatpush.msra.mxu0 0.0
  %3492 = vmatpush.msra.mxu0 0.0
  %3493 = vmatpush.msra.mxu0 %v3460
  %3494 = vmatpush.msra.mxu0 %v3458
  %3495 = vmatpush.msra.mxu0 %v3456
  %3496 = vmatpush.msra.mxu0 %v3454
  %3497 = vmatpush.msra.mxu0 %v3452
  %3498 = vmatpush.msra.mxu0 %v3450
  %3499 = vmatpush.msra.mxu0 %v3448
  %3500 = vmatpush.msra.mxu0 %v3446
  %3501 = vmatmul.f32.gmra.mxu0 %v3463
  %v3502 = vpop.f32.mrf.mxu0
  %v3503 = vadd.f32 %v3483, %v3502
  %3504 = vdwg.mxu0
  %3505 = vmatpush.msra.mxu0 %v3445
  %3506 = vmatpush.msra.mxu0 %v3443
  %3507 = vmatpush.msra.mxu0 %v3441
  %3508 = vmatpush.msra.mxu0 %v3439
  %3509 = vmatpush.msra.mxu0 %v3437
  %3510 = vmatpush.msra.mxu0 %v3435
  %3511 = vmatpush.msra.mxu0 %v3433
  %3512 = vmatpush.msra.mxu0 %v3431
  %3513 = vmatpush.msra.mxu0 %v3429
  %3514 = vmatpush.msra.mxu0 %v3427
  %3515 = vmatpush.msra.mxu0 %v3425
  %3516 = vmatpush.msra.mxu0 %v3423
  %3517 = vmatpush.msra.mxu0 %v3421
  %3518 = vmatpush.msra.mxu0 %v3419
  %3519 = vmatpush.msra.mxu0 %v3417
  %3520 = vmatpush.msra.mxu0 %v3415
  %3521 = vmatmul.f32.gmra.mxu0 %v3395
  %v3522 = vpop.f32.mrf.mxu0
  %v3523 = vadd.f32 0.0, %v3522
  %3524 = vdwg.mxu0
  %3525 = vmatpush.msra.mxu0 0.0
  %3526 = vmatpush.msra.mxu0 0.0
  %3527 = vmatpush.msra.mxu0 0.0
  %3528 = vmatpush.msra.mxu0 0.0
  %3529 = vmatpush.msra.mxu0 0.0
  %3530 = vmatpush.msra.mxu0 0.0
  %3531 = vmatpush.msra.mxu0 0.0
  %3532 = vmatpush.msra.mxu0 0.0
  %3533 = vmatpush.msra.mxu0 %v3461
  %3534 = vmatpush.msra.mxu0 %v3459
  %3535 = vmatpush.msra.mxu0 %v3457
  %3536 = vmatpush.msra.mxu0 %v3455
  %3537 = vmatpush.msra.mxu0 %v3453
  %3538 = vmatpush.msra.mxu0 %v3451
  %3539 = vmatpush.msra.mxu0 %v3449
  %3540 = vmatpush.msra.mxu0 %v3447
  %3541 = vmatmul.f32.gmra.mxu0 %v3463
  %v3542 = vpop.f32.mrf.mxu0
  %v3543 = vadd.f32 %v3523, %v3542
  %3544 = vdwg.mxu0
  %v3546 = vsel %vm2804, %v3413, 0
  %3548 = vmatpush.msra.mxu0 %v3444
  %3549 = vmatpush.msra.mxu0 %v3442
  %3550 = vmatpush.msra.mxu0 %v3440
  %3551 = vmatpush.msra.mxu0 %v3438
  %3552 = vmatpush.msra.mxu0 %v3436
  %3553 = vmatpush.msra.mxu0 %v3434
  %3554 = vmatpush.msra.mxu0 %v3432
  %3555 = vmatpush.msra.mxu0 %v3430
  %3556 = vmatpush.msra.mxu0 %v3428
  %3557 = vmatpush.msra.mxu0 %v3426
  %3558 = vmatpush.msra.mxu0 %v3424
  %3559 = vmatpush.msra.mxu0 %v3422
  %3560 = vmatpush.msra.mxu0 %v3420
  %3561 = vmatpush.msra.mxu0 %v3418
  %3562 = vmatpush.msra.mxu0 %v3416
  %3563 = vmatpush.msra.mxu0 %v3414
  %3564 = vmatmul.f32.gmra.mxu0 %v3412
  %v3565 = vpop.f32.mrf.mxu0
  %v3566 = vadd.f32 0.0, %v3565
  %3567 = vdwg.mxu0
  %3568 = vmatpush.msra.mxu0 0.0
  %3569 = vmatpush.msra.mxu0 0.0
  %3570 = vmatpush.msra.mxu0 0.0
  %3571 = vmatpush.msra.mxu0 0.0
  %3572 = vmatpush.msra.mxu0 0.0
  %3573 = vmatpush.msra.mxu0 0.0
  %3574 = vmatpush.msra.mxu0 0.0
  %3575 = vmatpush.msra.mxu0 0.0
  %3576 = vmatpush.msra.mxu0 %v3460
  %3577 = vmatpush.msra.mxu0 %v3458
  %3578 = vmatpush.msra.mxu0 %v3456
  %3579 = vmatpush.msra.mxu0 %v3454
  %3580 = vmatpush.msra.mxu0 %v3452
  %3581 = vmatpush.msra.mxu0 %v3450
  %3582 = vmatpush.msra.mxu0 %v3448
  %3583 = vmatpush.msra.mxu0 %v3446
  %3584 = vmatmul.f32.gmra.mxu0 %v3546
  %v3585 = vpop.f32.mrf.mxu0
  %v3586 = vadd.f32 %v3566, %v3585
  %3587 = vdwg.mxu0
  %3588 = vmatpush.msra.mxu0 %v3445
  %3589 = vmatpush.msra.mxu0 %v3443
  %3590 = vmatpush.msra.mxu0 %v3441
  %3591 = vmatpush.msra.mxu0 %v3439
  %3592 = vmatpush.msra.mxu0 %v3437
  %3593 = vmatpush.msra.mxu0 %v3435
  %3594 = vmatpush.msra.mxu0 %v3433
  %3595 = vmatpush.msra.mxu0 %v3431
  %3596 = vmatpush.msra.mxu0 %v3429
  %3597 = vmatpush.msra.mxu0 %v3427
  %3598 = vmatpush.msra.mxu0 %v3425
  %3599 = vmatpush.msra.mxu0 %v3423
  %3600 = vmatpush.msra.mxu0 %v3421
  %3601 = vmatpush.msra.mxu0 %v3419
  %3602 = vmatpush.msra.mxu0 %v3417
  %3603 = vmatpush.msra.mxu0 %v3415
  %3604 = vmatmul.f32.gmra.mxu0 %v3412
  %v3605 = vpop.f32.mrf.mxu0
  %v3606 = vadd.f32 0.0, %v3605
  %3607 = vdwg.mxu0
  %3608 = vmatpush.msra.mxu0 0.0
  %3609 = vmatpush.msra.mxu0 0.0
  %3610 = vmatpush.msra.mxu0 0.0
  %3611 = vmatpush.msra.mxu0 0.0
  %3612 = vmatpush.msra.mxu0 0.0
  %3613 = vmatpush.msra.mxu0 0.0
  %3614 = vmatpush.msra.mxu0 0.0
  %3615 = vmatpush.msra.mxu0 0.0
  %3616 = vmatpush.msra.mxu0 %v3461
  %3617 = vmatpush.msra.mxu0 %v3459
  %3618 = vmatpush.msra.mxu0 %v3457
  %3619 = vmatpush.msra.mxu0 %v3455
  %3620 = vmatpush.msra.mxu0 %v3453
  %3621 = vmatpush.msra.mxu0 %v3451
  %3622 = vmatpush.msra.mxu0 %v3449
  %3623 = vmatpush.msra.mxu0 %v3447
  %3624 = vmatmul.f32.gmra.mxu0 %v3546
  %v3625 = vpop.f32.mrf.mxu0
  %v3626 = vadd.f32 %v3606, %v3625
  %3627 = vdwg.mxu0
  %v3628 = vmul.f32 %v3503, 0.020833334
  %v3629 = vmul.f32 %v3543, 0.020833334
  %v3630 = vmul.f32 %v3586, 0.020833334
  %v3631 = vmul.f32 %v3626, 0.020833334
  %v3632 = vmul.f32 %v3628, %v3628
  %v3633 = vmul.f32 %v3629, %v3629
  %v3634 = vsub.f32 %v3630, %v3632
  %v3635 = vsub.f32 %v3631, %v3633
  %v3636 = vld [vmem:[%s8] sm:$0xf]
  %v3637 = vadd.f32 %v3634, 1e-05
  %v3638 = vadd.f32 %v3635, 1e-05
  %v3639 = vrsqrt.pop %v3637
  %v3640 = vmul.f32 %v3639, %v3637
  %v3641 = vmul.f32 %v3640, %v3639
  %v3642 = vmul.f32 0.5, %v3641
  %v3643 = vsub.f32 1.5, %v3642
  %v3644 = vmul.f32 %v3639, %v3643
  %vm3645 = vweird.f32 %v3637
  %vm3646 = vweird.f32 %v3639
  %vm3647 = vmor %vm3645, %vm3646
  %v3648 = vsel %vm3647, %v3639, %v3644
  %v3649 = vrsqrt.pop %v3638
  %v3650 = vmul.f32 %v3649, %v3638
  %v3651 = vmul.f32 %v3650, %v3649
  %v3652 = vmul.f32 0.5, %v3651
  %v3653 = vsub.f32 1.5, %v3652
  %v3654 = vmul.f32 %v3649, %v3653
  %vm3655 = vweird.f32 %v3638
  %vm3656 = vweird.f32 %v3649
  %vm3657 = vmor %vm3655, %vm3656
  %v3658 = vsel %vm3657, %v3649, %v3654
  %v3661 = vrot.slane %v3658, 6
  %vm3662 = vcmask 1041408
  %v3663 = vsel %vm3662, %v3648, %v3661
  %v3665 = vmul.f32 %v3636, %v3663
  %v3667 = vperm.slane %v3665, 0
  %v3668 = vperm.slane %v3665, 2
  %v3671 = vmul.f32 %v3628, %v3667
  %v3672 = vmul.f32 %v3629, %v3668
  %v3675 = vrot.slane %v3672, 6
  %v3676 = vsel %vm3662, %v3671, %v3675
  %v3677 = vrot.slane %v3676, 7
  %v3679 = vsub.f32 %v3636, %v3677
  %v3680 = vld [vmem:[#allocation4] sm:$0xff]
  %v3681 = vld [vmem:[#allocation4 + $0x8] sm:$0xff]
  %v3682 = vld [vmem:[#allocation4 + $0x10] sm:$0xff]
  %v3683 = vld [vmem:[#allocation4 + $0x18] sm:$0xff]
  %v3684 = vperm.slane %v3667, 0
  %v3685 = vperm.slane %v3668, 0
  %v3686 = vmul.f32 %v3680, %v3684
  %v3687 = vmul.f32 %v3681, %v3685
  %v3688 = vmul.f32 %v3682, %v3684
  %v3689 = vmul.f32 %v3683, %v3685
  %v3691 = vperm.slane %v3679, 1
  %v3692 = vperm.slane %v3679, 3
  %v3695 = vperm.slane %v3691, 1
  %v3696 = vperm.slane %v3692, 1
  %v3697 = vadd.f32 %v3686, %v3695
  %v3698 = vadd.f32 %v3687, %v3696
  %v3699 = vadd.f32 %v3688, %v3695
  %v3700 = vadd.f32 %v3689, %v3696
  %3701 = vst [vmem:[#allocation4] sm:$0xff] %v3697
  %3702 = vst.msk [vmem:[#allocation4 + $0x8] sm:$0xff] %vm2804, %v3698
  %3703 = vst [vmem:[#allocation4 + $0x10] sm:$0xff] %v3699
  %3704 = vst.msk [vmem:[#allocation4 + $0x18] sm:$0xff] %vm2804, %v3700
  %v3705 = vld [vmem:[#allocation4] sm:$0x7]
  %v3706 = vld [vmem:[#allocation4 + $0x8] sm:$0x7]
  %v3707 = vld [vmem:[%s10] sm:$0xff]
  %v3708 = vld [vmem:[%s10 + $0x8] sm:$0xff]
  %v3709 = vld [vmem:[%s10 + $0x10] sm:$0xff]
  %v3710 = vld [vmem:[%s10 + $0x18] sm:$0xff]
  %v3711 = vld [vmem:[%s10 + $0x20] sm:$0xff]
  %v3712 = vld [vmem:[%s10 + $0x28] sm:$0xff]
  %v3713 = vld [vmem:[%s10 + $0x30] sm:$0xff]
  %v3714 = vld [vmem:[%s10 + $0x38] sm:$0xff]
  %v3715 = vld [vmem:[%s10 + $0x40] sm:$0xff]
  %v3716 = vld [vmem:[%s10 + $0x48] sm:$0xff]
  %v3717 = vld [vmem:[%s10 + $0x50] sm:$0xff]
  %v3718 = vld [vmem:[%s10 + $0x58] sm:$0xff]
  %v3719 = vld [vmem:[%s10 + $0x60] sm:$0xff]
  %v3720 = vld [vmem:[%s10 + $0x68] sm:$0xff]
  %v3721 = vld [vmem:[%s10 + $0x70] sm:$0xff]
  %v3722 = vld [vmem:[%s10 + $0x78] sm:$0xff]
  %v3723 = vld [vmem:[%s10 + $0x80] sm:$0xff]
  %v3724 = vld [vmem:[%s10 + $0x88] sm:$0xff]
  %v3725 = vld [vmem:[%s10 + $0x90] sm:$0xff]
  %v3726 = vld [vmem:[%s10 + $0x98] sm:$0xff]
  %v3727 = vld [vmem:[%s10 + $0xa0] sm:$0xff]
  %v3728 = vld [vmem:[%s10 + $0xa8] sm:$0xff]
  %v3729 = vld [vmem:[%s10 + $0xb0] sm:$0xff]
  %v3730 = vld [vmem:[%s10 + $0xb8] sm:$0xff]
  %v3731 = vld [vmem:[#allocation4] sm:$0xe]
  %v3732 = vld [vmem:[#allocation4 + $0x8] sm:$0xe]
  %s3733 = scalar_lea.vmem %s10, 192
  %v3734 = vld [vmem:[%s3733] sm:$0xff]
  %v3735 = vld [vmem:[%s3733 + $0x8] sm:$0xff]
  %v3736 = vld [vmem:[%s3733 + $0x10] sm:$0xff]
  %v3737 = vld [vmem:[%s3733 + $0x18] sm:$0xff]
  %v3738 = vld [vmem:[%s3733 + $0x20] sm:$0xff]
  %v3739 = vld [vmem:[%s3733 + $0x28] sm:$0xff]
  %v3740 = vld [vmem:[%s3733 + $0x30] sm:$0xff]
  %v3741 = vld [vmem:[%s3733 + $0x38] sm:$0xff]
  %v3742 = vld [vmem:[%s3733 + $0x40] sm:$0xff]
  %v3743 = vld [vmem:[%s3733 + $0x48] sm:$0xff]
  %v3744 = vld [vmem:[%s3733 + $0x50] sm:$0xff]
  %v3745 = vld [vmem:[%s3733 + $0x58] sm:$0xff]
  %v3746 = vld [vmem:[%s3733 + $0x60] sm:$0xff]
  %v3747 = vld [vmem:[%s3733 + $0x68] sm:$0xff]
  %v3748 = vld [vmem:[%s3733 + $0x70] sm:$0xff]
  %v3749 = vld [vmem:[%s3733 + $0x78] sm:$0xff]
  %v3750 = vld [vmem:[%s3733 + $0x80] sm:$0xff]
  %v3751 = vld [vmem:[%s3733 + $0x88] sm:$0xff]
  %v3752 = vld [vmem:[%s3733 + $0x90] sm:$0xff]
  %v3753 = vld [vmem:[%s3733 + $0x98] sm:$0xff]
  %v3754 = vld [vmem:[%s3733 + $0xa0] sm:$0xff]
  %v3755 = vld [vmem:[%s3733 + $0xa8] sm:$0xff]
  %v3756 = vld [vmem:[%s3733 + $0xb0] sm:$0xff]
  %v3757 = vld [vmem:[%s3733 + $0xb8] sm:$0xff]
  %v3760 = vrot.slane %v3731, 1
  %v3761 = vrot.slane %v3732, 1
  %v3763 = vsel %vm2804, %v3761, 0
  %3765 = vmatpush.msra.mxu0 %v3749
  %3766 = vmatpush.msra.mxu0 %v3748
  %3767 = vmatpush.msra.mxu0 %v3747
  %3768 = vmatpush.msra.mxu0 %v3746
  %3769 = vmatpush.msra.mxu0 %v3745
  %3770 = vmatpush.msra.mxu0 %v3744
  %3771 = vmatpush.msra.mxu0 %v3743
  %3772 = vmatpush.msra.mxu0 %v3742
  %3773 = vmatpush.msra.mxu0 %v3741
  %3774 = vmatpush.msra.mxu0 %v3740
  %3775 = vmatpush.msra.mxu0 %v3739
  %3776 = vmatpush.msra.mxu0 %v3738
  %3777 = vmatpush.msra.mxu0 %v3737
  %3778 = vmatpush.msra.mxu0 %v3736
  %3779 = vmatpush.msra.mxu0 %v3735
  %3780 = vmatpush.msra.mxu0 %v3734
  %3781 = vmatmul.f32.gmra.mxu0 %v3760
  %v3782 = vpop.f32.mrf.mxu0
  %v3783 = vadd.f32 0.0, %v3782
  %3784 = vdwg.mxu0
  %3785 = vmatpush.msra.mxu0 0.0
  %3786 = vmatpush.msra.mxu0 0.0
  %3787 = vmatpush.msra.mxu0 0.0
  %3788 = vmatpush.msra.mxu0 0.0
  %3789 = vmatpush.msra.mxu0 0.0
  %3790 = vmatpush.msra.mxu0 0.0
  %3791 = vmatpush.msra.mxu0 0.0
  %3792 = vmatpush.msra.mxu0 0.0
  %3793 = vmatpush.msra.mxu0 %v3757
  %3794 = vmatpush.msra.mxu0 %v3756
  %3795 = vmatpush.msra.mxu0 %v3755
  %3796 = vmatpush.msra.mxu0 %v3754
  %3797 = vmatpush.msra.mxu0 %v3753
  %3798 = vmatpush.msra.mxu0 %v3752
  %3799 = vmatpush.msra.mxu0 %v3751
  %3800 = vmatpush.msra.mxu0 %v3750
  %3801 = vmatmul.f32.gmra.mxu0 %v3763
  %v3802 = vpop.f32.mrf.mxu0
  %v3803 = vadd.f32 %v3783, %v3802
  %3804 = vdwg.mxu0
  %v3806 = vsel %vm2804, %v3706, 0
  %3808 = vmatpush.msra.mxu0 %v3722
  %3809 = vmatpush.msra.mxu0 %v3721
  %3810 = vmatpush.msra.mxu0 %v3720
  %3811 = vmatpush.msra.mxu0 %v3719
  %3812 = vmatpush.msra.mxu0 %v3718
  %3813 = vmatpush.msra.mxu0 %v3717
  %3814 = vmatpush.msra.mxu0 %v3716
  %3815 = vmatpush.msra.mxu0 %v3715
  %3816 = vmatpush.msra.mxu0 %v3714
  %3817 = vmatpush.msra.mxu0 %v3713
  %3818 = vmatpush.msra.mxu0 %v3712
  %3819 = vmatpush.msra.mxu0 %v3711
  %3820 = vmatpush.msra.mxu0 %v3710
  %3821 = vmatpush.msra.mxu0 %v3709
  %3822 = vmatpush.msra.mxu0 %v3708
  %3823 = vmatpush.msra.mxu0 %v3707
  %3824 = vmatmul.f32.gmra.mxu0 %v3705
  %v3825 = vpop.f32.mrf.mxu0
  %v3826 = vadd.f32 %v3803, %v3825
  %3827 = vdwg.mxu0
  %3828 = vmatpush.msra.mxu0 0.0
  %3829 = vmatpush.msra.mxu0 0.0
  %3830 = vmatpush.msra.mxu0 0.0
  %3831 = vmatpush.msra.mxu0 0.0
  %3832 = vmatpush.msra.mxu0 0.0
  %3833 = vmatpush.msra.mxu0 0.0
  %3834 = vmatpush.msra.mxu0 0.0
  %3835 = vmatpush.msra.mxu0 0.0
  %3836 = vmatpush.msra.mxu0 %v3730
  %3837 = vmatpush.msra.mxu0 %v3729
  %3838 = vmatpush.msra.mxu0 %v3728
  %3839 = vmatpush.msra.mxu0 %v3727
  %3840 = vmatpush.msra.mxu0 %v3726
  %3841 = vmatpush.msra.mxu0 %v3725
  %3842 = vmatpush.msra.mxu0 %v3724
  %3843 = vmatpush.msra.mxu0 %v3723
  %3844 = vmatmul.f32.gmra.mxu0 %v3806
  %v3845 = vpop.f32.mrf.mxu0
  %v3846 = vadd.f32 %v3826, %v3845
  %3847 = vdwg.mxu0
  %v3848 = vld [vmem:[#allocation4] sm:$0x1c]
  %v3849 = vld [vmem:[#allocation4 + $0x8] sm:$0x1c]
  %s3850 = scalar_lea.vmem %s10, 384
  %v3851 = vld [vmem:[%s3850] sm:$0xff]
  %v3852 = vld [vmem:[%s3850 + $0x8] sm:$0xff]
  %v3853 = vld [vmem:[%s3850 + $0x10] sm:$0xff]
  %v3854 = vld [vmem:[%s3850 + $0x18] sm:$0xff]
  %v3855 = vld [vmem:[%s3850 + $0x20] sm:$0xff]
  %v3856 = vld [vmem:[%s3850 + $0x28] sm:$0xff]
  %v3857 = vld [vmem:[%s3850 + $0x30] sm:$0xff]
  %v3858 = vld [vmem:[%s3850 + $0x38] sm:$0xff]
  %v3859 = vld [vmem:[%s3850 + $0x40] sm:$0xff]
  %v3860 = vld [vmem:[%s3850 + $0x48] sm:$0xff]
  %v3861 = vld [vmem:[%s3850 + $0x50] sm:$0xff]
  %v3862 = vld [vmem:[%s3850 + $0x58] sm:$0xff]
  %v3863 = vld [vmem:[%s3850 + $0x60] sm:$0xff]
  %v3864 = vld [vmem:[%s3850 + $0x68] sm:$0xff]
  %v3865 = vld [vmem:[%s3850 + $0x70] sm:$0xff]
  %v3866 = vld [vmem:[%s3850 + $0x78] sm:$0xff]
  %v3867 = vld [vmem:[%s3850 + $0x80] sm:$0xff]
  %v3868 = vld [vmem:[%s3850 + $0x88] sm:$0xff]
  %v3869 = vld [vmem:[%s3850 + $0x90] sm:$0xff]
  %v3870 = vld [vmem:[%s3850 + $0x98] sm:$0xff]
  %v3871 = vld [vmem:[%s3850 + $0xa0] sm:$0xff]
  %v3872 = vld [vmem:[%s3850 + $0xa8] sm:$0xff]
  %v3873 = vld [vmem:[%s3850 + $0xb0] sm:$0xff]
  %v3874 = vld [vmem:[%s3850 + $0xb8] sm:$0xff]
  %v3877 = vrot.slane %v3848, 2
  %v3878 = vrot.slane %v3849, 2
  %v3880 = vsel %vm2804, %v3878, 0
  %3882 = vmatpush.msra.mxu0 %v3866
  %3883 = vmatpush.msra.mxu0 %v3865
  %3884 = vmatpush.msra.mxu0 %v3864
  %3885 = vmatpush.msra.mxu0 %v3863
  %3886 = vmatpush.msra.mxu0 %v3862
  %3887 = vmatpush.msra.mxu0 %v3861
  %3888 = vmatpush.msra.mxu0 %v3860
  %3889 = vmatpush.msra.mxu0 %v3859
  %3890 = vmatpush.msra.mxu0 %v3858
  %3891 = vmatpush.msra.mxu0 %v3857
  %3892 = vmatpush.msra.mxu0 %v3856
  %3893 = vmatpush.msra.mxu0 %v3855
  %3894 = vmatpush.msra.mxu0 %v3854
  %3895 = vmatpush.msra.mxu0 %v3853
  %3896 = vmatpush.msra.mxu0 %v3852
  %3897 = vmatpush.msra.mxu0 %v3851
  %3898 = vmatmul.f32.gmra.mxu0 %v3877
  %v3899 = vpop.f32.mrf.mxu0
  %v3900 = vadd.f32 0.0, %v3899
  %3901 = vdwg.mxu0
  %3902 = vmatpush.msra.mxu0 0.0
  %3903 = vmatpush.msra.mxu0 0.0
  %3904 = vmatpush.msra.mxu0 0.0
  %3905 = vmatpush.msra.mxu0 0.0
  %3906 = vmatpush.msra.mxu0 0.0
  %3907 = vmatpush.msra.mxu0 0.0
  %3908 = vmatpush.msra.mxu0 0.0
  %3909 = vmatpush.msra.mxu0 0.0
  %3910 = vmatpush.msra.mxu0 %v3874
  %3911 = vmatpush.msra.mxu0 %v3873
  %3912 = vmatpush.msra.mxu0 %v3872
  %3913 = vmatpush.msra.mxu0 %v3871
  %3914 = vmatpush.msra.mxu0 %v3870
  %3915 = vmatpush.msra.mxu0 %v3869
  %3916 = vmatpush.msra.mxu0 %v3868
  %3917 = vmatpush.msra.mxu0 %v3867
  %3918 = vmatmul.f32.gmra.mxu0 %v3880
  %v3919 = vpop.f32.mrf.mxu0
  %v3920 = vadd.f32 %v3900, %v3919
  %3921 = vdwg.mxu0
  %v3922 = vadd.f32 %v3846, %v3920
  %v3923 = vld [vmem:[#allocation4] sm:$0x38]
  %v3924 = vld [vmem:[#allocation4 + $0x8] sm:$0x38]
  %s3925 = scalar_lea.vmem %s10, 576
  %v3926 = vld [vmem:[%s3925] sm:$0xff]
  %v3927 = vld [vmem:[%s3925 + $0x8] sm:$0xff]
  %v3928 = vld [vmem:[%s3925 + $0x10] sm:$0xff]
  %v3929 = vld [vmem:[%s3925 + $0x18] sm:$0xff]
  %v3930 = vld [vmem:[%s3925 + $0x20] sm:$0xff]
  %v3931 = vld [vmem:[%s3925 + $0x28] sm:$0xff]
  %v3932 = vld [vmem:[%s3925 + $0x30] sm:$0xff]
  %v3933 = vld [vmem:[%s3925 + $0x38] sm:$0xff]
  %v3934 = vld [vmem:[%s3925 + $0x40] sm:$0xff]
  %v3935 = vld [vmem:[%s3925 + $0x48] sm:$0xff]
  %v3936 = vld [vmem:[%s3925 + $0x50] sm:$0xff]
  %v3937 = vld [vmem:[%s3925 + $0x58] sm:$0xff]
  %v3938 = vld [vmem:[%s3925 + $0x60] sm:$0xff]
  %v3939 = vld [vmem:[%s3925 + $0x68] sm:$0xff]
  %v3940 = vld [vmem:[%s3925 + $0x70] sm:$0xff]
  %v3941 = vld [vmem:[%s3925 + $0x78] sm:$0xff]
  %v3942 = vld [vmem:[%s3925 + $0x80] sm:$0xff]
  %v3943 = vld [vmem:[%s3925 + $0x88] sm:$0xff]
  %v3944 = vld [vmem:[%s3925 + $0x90] sm:$0xff]
  %v3945 = vld [vmem:[%s3925 + $0x98] sm:$0xff]
  %v3946 = vld [vmem:[%s3925 + $0xa0] sm:$0xff]
  %v3947 = vld [vmem:[%s3925 + $0xa8] sm:$0xff]
  %v3948 = vld [vmem:[%s3925 + $0xb0] sm:$0xff]
  %v3949 = vld [vmem:[%s3925 + $0xb8] sm:$0xff]
  %v3952 = vrot.slane %v3923, 3
  %v3953 = vrot.slane %v3924, 3
  %v3955 = vsel %vm2804, %v3953, 0
  %3957 = vmatpush.msra.mxu0 %v3941
  %3958 = vmatpush.msra.mxu0 %v3940
  %3959 = vmatpush.msra.mxu0 %v3939
  %3960 = vmatpush.msra.mxu0 %v3938
  %3961 = vmatpush.msra.mxu0 %v3937
  %3962 = vmatpush.msra.mxu0 %v3936
  %3963 = vmatpush.msra.mxu0 %v3935
  %3964 = vmatpush.msra.mxu0 %v3934
  %3965 = vmatpush.msra.mxu0 %v3933
  %3966 = vmatpush.msra.mxu0 %v3932
  %3967 = vmatpush.msra.mxu0 %v3931
  %3968 = vmatpush.msra.mxu0 %v3930
  %3969 = vmatpush.msra.mxu0 %v3929
  %3970 = vmatpush.msra.mxu0 %v3928
  %3971 = vmatpush.msra.mxu0 %v3927
  %3972 = vmatpush.msra.mxu0 %v3926
  %3973 = vmatmul.f32.gmra.mxu0 %v3952
  %v3974 = vpop.f32.mrf.mxu0
  %v3975 = vadd.f32 0.0, %v3974
  %3976 = vdwg.mxu0
  %3977 = vmatpush.msra.mxu0 0.0
  %3978 = vmatpush.msra.mxu0 0.0
  %3979 = vmatpush.msra.mxu0 0.0
  %3980 = vmatpush.msra.mxu0 0.0
  %3981 = vmatpush.msra.mxu0 0.0
  %3982 = vmatpush.msra.mxu0 0.0
  %3983 = vmatpush.msra.mxu0 0.0
  %3984 = vmatpush.msra.mxu0 0.0
  %3985 = vmatpush.msra.mxu0 %v3949
  %3986 = vmatpush.msra.mxu0 %v3948
  %3987 = vmatpush.msra.mxu0 %v3947
  %3988 = vmatpush.msra.mxu0 %v3946
  %3989 = vmatpush.msra.mxu0 %v3945
  %3990 = vmatpush.msra.mxu0 %v3944
  %3991 = vmatpush.msra.mxu0 %v3943
  %3992 = vmatpush.msra.mxu0 %v3942
  %3993 = vmatmul.f32.gmra.mxu0 %v3955
  %v3994 = vpop.f32.mrf.mxu0
  %v3995 = vadd.f32 %v3975, %v3994
  %3996 = vdwg.mxu0
  %v3997 = vadd.f32 %v3922, %v3995
  %v3998 = vld [vmem:[#allocation4] sm:$0x70]
  %v3999 = vld [vmem:[#allocation4 + $0x8] sm:$0x70]
  %s4000 = scalar_lea.vmem %s10, 768
  %v4001 = vld [vmem:[%s4000] sm:$0xff]
  %v4002 = vld [vmem:[%s4000 + $0x8] sm:$0xff]
  %v4003 = vld [vmem:[%s4000 + $0x10] sm:$0xff]
  %v4004 = vld [vmem:[%s4000 + $0x18] sm:$0xff]
  %v4005 = vld [vmem:[%s4000 + $0x20] sm:$0xff]
  %v4006 = vld [vmem:[%s4000 + $0x28] sm:$0xff]
  %v4007 = vld [vmem:[%s4000 + $0x30] sm:$0xff]
  %v4008 = vld [vmem:[%s4000 + $0x38] sm:$0xff]
  %v4009 = vld [vmem:[%s4000 + $0x40] sm:$0xff]
  %v4010 = vld [vmem:[%s4000 + $0x48] sm:$0xff]
  %v4011 = vld [vmem:[%s4000 + $0x50] sm:$0xff]
  %v4012 = vld [vmem:[%s4000 + $0x58] sm:$0xff]
  %v4013 = vld [vmem:[%s4000 + $0x60] sm:$0xff]
  %v4014 = vld [vmem:[%s4000 + $0x68] sm:$0xff]
  %v4015 = vld [vmem:[%s4000 + $0x70] sm:$0xff]
  %v4016 = vld [vmem:[%s4000 + $0x78] sm:$0xff]
  %v4017 = vld [vmem:[%s4000 + $0x80] sm:$0xff]
  %v4018 = vld [vmem:[%s4000 + $0x88] sm:$0xff]
  %v4019 = vld [vmem:[%s4000 + $0x90] sm:$0xff]
  %v4020 = vld [vmem:[%s4000 + $0x98] sm:$0xff]
  %v4021 = vld [vmem:[%s4000 + $0xa0] sm:$0xff]
  %v4022 = vld [vmem:[%s4000 + $0xa8] sm:$0xff]
  %v4023 = vld [vmem:[%s4000 + $0xb0] sm:$0xff]
  %v4024 = vld [vmem:[%s4000 + $0xb8] sm:$0xff]
  %v4027 = vrot.slane %v3998, 4
  %v4028 = vrot.slane %v3999, 4
  %v4030 = vsel %vm2804, %v4028, 0
  %4032 = vmatpush.msra.mxu0 %v4016
  %4033 = vmatpush.msra.mxu0 %v4015
  %4034 = vmatpush.msra.mxu0 %v4014
  %4035 = vmatpush.msra.mxu0 %v4013
  %4036 = vmatpush.msra.mxu0 %v4012
  %4037 = vmatpush.msra.mxu0 %v4011
  %4038 = vmatpush.msra.mxu0 %v4010
  %4039 = vmatpush.msra.mxu0 %v4009
  %4040 = vmatpush.msra.mxu0 %v4008
  %4041 = vmatpush.msra.mxu0 %v4007
  %4042 = vmatpush.msra.mxu0 %v4006
  %4043 = vmatpush.msra.mxu0 %v4005
  %4044 = vmatpush.msra.mxu0 %v4004
  %4045 = vmatpush.msra.mxu0 %v4003
  %4046 = vmatpush.msra.mxu0 %v4002
  %4047 = vmatpush.msra.mxu0 %v4001
  %4048 = vmatmul.f32.gmra.mxu0 %v4027
  %v4049 = vpop.f32.mrf.mxu0
  %v4050 = vadd.f32 0.0, %v4049
  %4051 = vdwg.mxu0
  %4052 = vmatpush.msra.mxu0 0.0
  %4053 = vmatpush.msra.mxu0 0.0
  %4054 = vmatpush.msra.mxu0 0.0
  %4055 = vmatpush.msra.mxu0 0.0
  %4056 = vmatpush.msra.mxu0 0.0
  %4057 = vmatpush.msra.mxu0 0.0
  %4058 = vmatpush.msra.mxu0 0.0
  %4059 = vmatpush.msra.mxu0 0.0
  %4060 = vmatpush.msra.mxu0 %v4024
  %4061 = vmatpush.msra.mxu0 %v4023
  %4062 = vmatpush.msra.mxu0 %v4022
  %4063 = vmatpush.msra.mxu0 %v4021
  %4064 = vmatpush.msra.mxu0 %v4020
  %4065 = vmatpush.msra.mxu0 %v4019
  %4066 = vmatpush.msra.mxu0 %v4018
  %4067 = vmatpush.msra.mxu0 %v4017
  %4068 = vmatmul.f32.gmra.mxu0 %v4030
  %v4069 = vpop.f32.mrf.mxu0
  %v4070 = vadd.f32 %v4050, %v4069
  %4071 = vdwg.mxu0
  %v4072 = vadd.f32 %v3997, %v4070
  %v4073 = vld [vmem:[#allocation4] sm:$0xe0]
  %v4074 = vld [vmem:[#allocation4 + $0x8] sm:$0xe0]
  %s4075 = scalar_lea.vmem %s10, 960
  %v4076 = vld [vmem:[%s4075] sm:$0xff]
  %v4077 = vld [vmem:[%s4075 + $0x8] sm:$0xff]
  %v4078 = vld [vmem:[%s4075 + $0x10] sm:$0xff]
  %v4079 = vld [vmem:[%s4075 + $0x18] sm:$0xff]
  %v4080 = vld [vmem:[%s4075 + $0x20] sm:$0xff]
  %v4081 = vld [vmem:[%s4075 + $0x28] sm:$0xff]
  %v4082 = vld [vmem:[%s4075 + $0x30] sm:$0xff]
  %v4083 = vld [vmem:[%s4075 + $0x38] sm:$0xff]
  %v4084 = vld [vmem:[%s4075 + $0x40] sm:$0xff]
  %v4085 = vld [vmem:[%s4075 + $0x48] sm:$0xff]
  %v4086 = vld [vmem:[%s4075 + $0x50] sm:$0xff]
  %v4087 = vld [vmem:[%s4075 + $0x58] sm:$0xff]
  %v4088 = vld [vmem:[%s4075 + $0x60] sm:$0xff]
  %v4089 = vld [vmem:[%s4075 + $0x68] sm:$0xff]
  %v4090 = vld [vmem:[%s4075 + $0x70] sm:$0xff]
  %v4091 = vld [vmem:[%s4075 + $0x78] sm:$0xff]
  %v4092 = vld [vmem:[%s4075 + $0x80] sm:$0xff]
  %v4093 = vld [vmem:[%s4075 + $0x88] sm:$0xff]
  %v4094 = vld [vmem:[%s4075 + $0x90] sm:$0xff]
  %v4095 = vld [vmem:[%s4075 + $0x98] sm:$0xff]
  %v4096 = vld [vmem:[%s4075 + $0xa0] sm:$0xff]
  %v4097 = vld [vmem:[%s4075 + $0xa8] sm:$0xff]
  %v4098 = vld [vmem:[%s4075 + $0xb0] sm:$0xff]
  %v4099 = vld [vmem:[%s4075 + $0xb8] sm:$0xff]
  %v4102 = vrot.slane %v4073, 5
  %v4103 = vrot.slane %v4074, 5
  %v4105 = vsel %vm2804, %v4103, 0
  %4107 = vmatpush.msra.mxu0 %v4091
  %4108 = vmatpush.msra.mxu0 %v4090
  %4109 = vmatpush.msra.mxu0 %v4089
  %4110 = vmatpush.msra.mxu0 %v4088
  %4111 = vmatpush.msra.mxu0 %v4087
  %4112 = vmatpush.msra.mxu0 %v4086
  %4113 = vmatpush.msra.mxu0 %v4085
  %4114 = vmatpush.msra.mxu0 %v4084
  %4115 = vmatpush.msra.mxu0 %v4083
  %4116 = vmatpush.msra.mxu0 %v4082
  %4117 = vmatpush.msra.mxu0 %v4081
  %4118 = vmatpush.msra.mxu0 %v4080
  %4119 = vmatpush.msra.mxu0 %v4079
  %4120 = vmatpush.msra.mxu0 %v4078
  %4121 = vmatpush.msra.mxu0 %v4077
  %4122 = vmatpush.msra.mxu0 %v4076
  %4123 = vmatmul.f32.gmra.mxu0 %v4102
  %v4124 = vpop.f32.mrf.mxu0
  %v4125 = vadd.f32 0.0, %v4124
  %4126 = vdwg.mxu0
  %4127 = vmatpush.msra.mxu0 0.0
  %4128 = vmatpush.msra.mxu0 0.0
  %4129 = vmatpush.msra.mxu0 0.0
  %4130 = vmatpush.msra.mxu0 0.0
  %4131 = vmatpush.msra.mxu0 0.0
  %4132 = vmatpush.msra.mxu0 0.0
  %4133 = vmatpush.msra.mxu0 0.0
  %4134 = vmatpush.msra.mxu0 0.0
  %4135 = vmatpush.msra.mxu0 %v4099
  %4136 = vmatpush.msra.mxu0 %v4098
  %4137 = vmatpush.msra.mxu0 %v4097
  %4138 = vmatpush.msra.mxu0 %v4096
  %4139 = vmatpush.msra.mxu0 %v4095
  %4140 = vmatpush.msra.mxu0 %v4094
  %4141 = vmatpush.msra.mxu0 %v4093
  %4142 = vmatpush.msra.mxu0 %v4092
  %4143 = vmatmul.f32.gmra.mxu0 %v4105
  %v4144 = vpop.f32.mrf.mxu0
  %v4145 = vadd.f32 %v4125, %v4144
  %4146 = vdwg.mxu0
  %v4147 = vadd.f32 %v4072, %v4145
  %vm4148 = vcmask 23552
  %v4149 = vsel %vm4148, %v1239, 0
  %vm4151 = vcmask 1042432
  %v4153 = vsel %vm4151, %v4147, 0
  %4155 = vmatpush.msra.mxu0 0.0
  %4156 = vmatpush.msra.mxu0 0.0
  %4157 = vmatpush.msra.mxu0 0.0
  %4158 = vmatpush.msra.mxu0 0.0
  %4159 = vmatpush.msra.mxu0 0.0
  %4160 = vmatpush.msra.mxu0 0.0
  %4161 = vmatpush.msra.mxu0 0.0
  %4162 = vmatpush.msra.mxu0 0.0
  %4163 = vmatpush.msra.mxu0 0.0
  %4164 = vmatpush.msra.mxu0 0.0
  %4165 = vmatpush.msra.mxu0 0.0
  %4166 = vmatpush.msra.mxu0 0.0
  %4167 = vmatpush.msra.mxu0 0.0
  %4168 = vmatpush.msra.mxu0 0.0
  %4169 = vmatpush.msra.mxu0 0.0
  %4170 = vmatpush.msra.mxu0 %v4153
  %4171 = vmatmul.f32.gmra.mxu0 %v4149
  %v4172 = vpop.f32.mrf.mxu0
  %v4173 = vadd.f32 0.0, %v4172
  %4174 = vdwg.mxu0
  %4175 = vst [vmem:[#allocation5] sm:$0x3] %v4173
  %v4176 = vsel %vm3662, %v4173, 0.0
  %v4177 = vrot.slane %v4176, 4
  %v4178 = vadd.f32 %v4176, %v4177
  %v4179 = vrot.slane %v4178, 2
  %v4180 = vadd.f32 %v4178, %v4179
  %v4181 = vrot.slane %v4180, 1
  %v4182 = vadd.f32 %v4180, %v4181
  %v4183 = vadd.f32 %v4182, 0.0
  %v4184 = vmul.f32 %v4173, %v4173
  %v4185 = vsel %vm3662, %v4184, 0.0
  %v4186 = vrot.slane %v4185, 4
  %v4187 = vadd.f32 %v4185, %v4186
  %v4188 = vrot.slane %v4187, 2
  %v4189 = vadd.f32 %v4187, %v4188
  %v4190 = vrot.slane %v4189, 1
  %v4191 = vadd.f32 %v4189, %v4190
  %v4192 = vadd.f32 %v4191, 0.0
  %v4193 = vld [vmem:[#allocation4 + $0x10] sm:$0x7]
  %v4194 = vld [vmem:[#allocation4 + $0x18] sm:$0x7]
  %v4195 = vld [vmem:[%s10] sm:$0xff]
  %v4196 = vld [vmem:[%s10 + $0x8] sm:$0xff]
  %v4197 = vld [vmem:[%s10 + $0x10] sm:$0xff]
  %v4198 = vld [vmem:[%s10 + $0x18] sm:$0xff]
  %v4199 = vld [vmem:[%s10 + $0x20] sm:$0xff]
  %v4200 = vld [vmem:[%s10 + $0x28] sm:$0xff]
  %v4201 = vld [vmem:[%s10 + $0x30] sm:$0xff]
  %v4202 = vld [vmem:[%s10 + $0x38] sm:$0xff]
  %v4203 = vld [vmem:[%s10 + $0x40] sm:$0xff]
  %v4204 = vld [vmem:[%s10 + $0x48] sm:$0xff]
  %v4205 = vld [vmem:[%s10 + $0x50] sm:$0xff]
  %v4206 = vld [vmem:[%s10 + $0x58] sm:$0xff]
  %v4207 = vld [vmem:[%s10 + $0x60] sm:$0xff]
  %v4208 = vld [vmem:[%s10 + $0x68] sm:$0xff]
  %v4209 = vld [vmem:[%s10 + $0x70] sm:$0xff]
  %v4210 = vld [vmem:[%s10 + $0x78] sm:$0xff]
  %v4211 = vld [vmem:[%s10 + $0x80] sm:$0xff]
  %v4212 = vld [vmem:[%s10 + $0x88] sm:$0xff]
  %v4213 = vld [vmem:[%s10 + $0x90] sm:$0xff]
  %v4214 = vld [vmem:[%s10 + $0x98] sm:$0xff]
  %v4215 = vld [vmem:[%s10 + $0xa0] sm:$0xff]
  %v4216 = vld [vmem:[%s10 + $0xa8] sm:$0xff]
  %v4217 = vld [vmem:[%s10 + $0xb0] sm:$0xff]
  %v4218 = vld [vmem:[%s10 + $0xb8] sm:$0xff]
  %v4219 = vld [vmem:[#allocation4 + $0x10] sm:$0xe]
  %v4220 = vld [vmem:[#allocation4 + $0x18] sm:$0xe]
  %v4221 = vld [vmem:[%s3733] sm:$0xff]
  %v4222 = vld [vmem:[%s3733 + $0x8] sm:$0xff]
  %v4223 = vld [vmem:[%s3733 + $0x10] sm:$0xff]
  %v4224 = vld [vmem:[%s3733 + $0x18] sm:$0xff]
  %v4225 = vld [vmem:[%s3733 + $0x20] sm:$0xff]
  %v4226 = vld [vmem:[%s3733 + $0x28] sm:$0xff]
  %v4227 = vld [vmem:[%s3733 + $0x30] sm:$0xff]
  %v4228 = vld [vmem:[%s3733 + $0x38] sm:$0xff]
  %v4229 = vld [vmem:[%s3733 + $0x40] sm:$0xff]
  %v4230 = vld [vmem:[%s3733 + $0x48] sm:$0xff]
  %v4231 = vld [vmem:[%s3733 + $0x50] sm:$0xff]
  %v4232 = vld [vmem:[%s3733 + $0x58] sm:$0xff]
  %v4233 = vld [vmem:[%s3733 + $0x60] sm:$0xff]
  %v4234 = vld [vmem:[%s3733 + $0x68] sm:$0xff]
  %v4235 = vld [vmem:[%s3733 + $0x70] sm:$0xff]
  %v4236 = vld [vmem:[%s3733 + $0x78] sm:$0xff]
  %v4237 = vld [vmem:[%s3733 + $0x80] sm:$0xff]
  %v4238 = vld [vmem:[%s3733 + $0x88] sm:$0xff]
  %v4239 = vld [vmem:[%s3733 + $0x90] sm:$0xff]
  %v4240 = vld [vmem:[%s3733 + $0x98] sm:$0xff]
  %v4241 = vld [vmem:[%s3733 + $0xa0] sm:$0xff]
  %v4242 = vld [vmem:[%s3733 + $0xa8] sm:$0xff]
  %v4243 = vld [vmem:[%s3733 + $0xb0] sm:$0xff]
  %v4244 = vld [vmem:[%s3733 + $0xb8] sm:$0xff]
  %v4247 = vrot.slane %v4219, 1
  %v4248 = vrot.slane %v4220, 1
  %v4250 = vsel %vm2804, %v4248, 0
  %4252 = vmatpush.msra.mxu0 %v4236
  %4253 = vmatpush.msra.mxu0 %v4235
  %4254 = vmatpush.msra.mxu0 %v4234
  %4255 = vmatpush.msra.mxu0 %v4233
  %4256 = vmatpush.msra.mxu0 %v4232
  %4257 = vmatpush.msra.mxu0 %v4231
  %4258 = vmatpush.msra.mxu0 %v4230
  %4259 = vmatpush.msra.mxu0 %v4229
  %4260 = vmatpush.msra.mxu0 %v4228
  %4261 = vmatpush.msra.mxu0 %v4227
  %4262 = vmatpush.msra.mxu0 %v4226
  %4263 = vmatpush.msra.mxu0 %v4225
  %4264 = vmatpush.msra.mxu0 %v4224
  %4265 = vmatpush.msra.mxu0 %v4223
  %4266 = vmatpush.msra.mxu0 %v4222
  %4267 = vmatpush.msra.mxu0 %v4221
  %4268 = vmatmul.f32.gmra.mxu0 %v4247
  %v4269 = vpop.f32.mrf.mxu0
  %v4270 = vadd.f32 0.0, %v4269
  %4271 = vdwg.mxu0
  %4272 = vmatpush.msra.mxu0 0.0
  %4273 = vmatpush.msra.mxu0 0.0
  %4274 = vmatpush.msra.mxu0 0.0
  %4275 = vmatpush.msra.mxu0 0.0
  %4276 = vmatpush.msra.mxu0 0.0
  %4277 = vmatpush.msra.mxu0 0.0
  %4278 = vmatpush.msra.mxu0 0.0
  %4279 = vmatpush.msra.mxu0 0.0
  %4280 = vmatpush.msra.mxu0 %v4244
  %4281 = vmatpush.msra.mxu0 %v4243
  %4282 = vmatpush.msra.mxu0 %v4242
  %4283 = vmatpush.msra.mxu0 %v4241
  %4284 = vmatpush.msra.mxu0 %v4240
  %4285 = vmatpush.msra.mxu0 %v4239
  %4286 = vmatpush.msra.mxu0 %v4238
  %4287 = vmatpush.msra.mxu0 %v4237
  %4288 = vmatmul.f32.gmra.mxu0 %v4250
  %v4289 = vpop.f32.mrf.mxu0
  %v4290 = vadd.f32 %v4270, %v4289
  %4291 = vdwg.mxu0
  %v4293 = vsel %vm2804, %v4194, 0
  %4295 = vmatpush.msra.mxu0 %v4210
  %4296 = vmatpush.msra.mxu0 %v4209
  %4297 = vmatpush.msra.mxu0 %v4208
  %4298 = vmatpush.msra.mxu0 %v4207
  %4299 = vmatpush.msra.mxu0 %v4206
  %4300 = vmatpush.msra.mxu0 %v4205
  %4301 = vmatpush.msra.mxu0 %v4204
  %4302 = vmatpush.msra.mxu0 %v4203
  %4303 = vmatpush.msra.mxu0 %v4202
  %4304 = vmatpush.msra.mxu0 %v4201
  %4305 = vmatpush.msra.mxu0 %v4200
  %4306 = vmatpush.msra.mxu0 %v4199
  %4307 = vmatpush.msra.mxu0 %v4198
  %4308 = vmatpush.msra.mxu0 %v4197
  %4309 = vmatpush.msra.mxu0 %v4196
  %4310 = vmatpush.msra.mxu0 %v4195
  %4311 = vmatmul.f32.gmra.mxu0 %v4193
  %v4312 = vpop.f32.mrf.mxu0
  %v4313 = vadd.f32 %v4290, %v4312
  %4314 = vdwg.mxu0
  %4315 = vmatpush.msra.mxu0 0.0
  %4316 = vmatpush.msra.mxu0 0.0
  %4317 = vmatpush.msra.mxu0 0.0
  %4318 = vmatpush.msra.mxu0 0.0
  %4319 = vmatpush.msra.mxu0 0.0
  %4320 = vmatpush.msra.mxu0 0.0
  %4321 = vmatpush.msra.mxu0 0.0
  %4322 = vmatpush.msra.mxu0 0.0
  %4323 = vmatpush.msra.mxu0 %v4218
  %4324 = vmatpush.msra.mxu0 %v4217
  %4325 = vmatpush.msra.mxu0 %v4216
  %4326 = vmatpush.msra.mxu0 %v4215
  %4327 = vmatpush.msra.mxu0 %v4214
  %4328 = vmatpush.msra.mxu0 %v4213
  %4329 = vmatpush.msra.mxu0 %v4212
  %4330 = vmatpush.msra.mxu0 %v4211
  %4331 = vmatmul.f32.gmra.mxu0 %v4293
  %v4332 = vpop.f32.mrf.mxu0
  %v4333 = vadd.f32 %v4313, %v4332
  %4334 = vdwg.mxu0
  %v4335 = vld [vmem:[#allocation4 + $0x10] sm:$0x1c]
  %v4336 = vld [vmem:[#allocation4 + $0x18] sm:$0x1c]
  %v4337 = vld [vmem:[%s3850] sm:$0xff]
  %v4338 = vld [vmem:[%s3850 + $0x8] sm:$0xff]
  %v4339 = vld [vmem:[%s3850 + $0x10] sm:$0xff]
  %v4340 = vld [vmem:[%s3850 + $0x18] sm:$0xff]
  %v4341 = vld [vmem:[%s3850 + $0x20] sm:$0xff]
  %v4342 = vld [vmem:[%s3850 + $0x28] sm:$0xff]
  %v4343 = vld [vmem:[%s3850 + $0x30] sm:$0xff]
  %v4344 = vld [vmem:[%s3850 + $0x38] sm:$0xff]
  %v4345 = vld [vmem:[%s3850 + $0x40] sm:$0xff]
  %v4346 = vld [vmem:[%s3850 + $0x48] sm:$0xff]
  %v4347 = vld [vmem:[%s3850 + $0x50] sm:$0xff]
  %v4348 = vld [vmem:[%s3850 + $0x58] sm:$0xff]
  %v4349 = vld [vmem:[%s3850 + $0x60] sm:$0xff]
  %v4350 = vld [vmem:[%s3850 + $0x68] sm:$0xff]
  %v4351 = vld [vmem:[%s3850 + $0x70] sm:$0xff]
  %v4352 = vld [vmem:[%s3850 + $0x78] sm:$0xff]
  %v4353 = vld [vmem:[%s3850 + $0x80] sm:$0xff]
  %v4354 = vld [vmem:[%s3850 + $0x88] sm:$0xff]
  %v4355 = vld [vmem:[%s3850 + $0x90] sm:$0xff]
  %v4356 = vld [vmem:[%s3850 + $0x98] sm:$0xff]
  %v4357 = vld [vmem:[%s3850 + $0xa0] sm:$0xff]
  %v4358 = vld [vmem:[%s3850 + $0xa8] sm:$0xff]
  %v4359 = vld [vmem:[%s3850 + $0xb0] sm:$0xff]
  %v4360 = vld [vmem:[%s3850 + $0xb8] sm:$0xff]
  %v4363 = vrot.slane %v4335, 2
  %v4364 = vrot.slane %v4336, 2
  %v4366 = vsel %vm2804, %v4364, 0
  %4368 = vmatpush.msra.mxu0 %v4352
  %4369 = vmatpush.msra.mxu0 %v4351
  %4370 = vmatpush.msra.mxu0 %v4350
  %4371 = vmatpush.msra.mxu0 %v4349
  %4372 = vmatpush.msra.mxu0 %v4348
  %4373 = vmatpush.msra.mxu0 %v4347
  %4374 = vmatpush.msra.mxu0 %v4346
  %4375 = vmatpush.msra.mxu0 %v4345
  %4376 = vmatpush.msra.mxu0 %v4344
  %4377 = vmatpush.msra.mxu0 %v4343
  %4378 = vmatpush.msra.mxu0 %v4342
  %4379 = vmatpush.msra.mxu0 %v4341
  %4380 = vmatpush.msra.mxu0 %v4340
  %4381 = vmatpush.msra.mxu0 %v4339
  %4382 = vmatpush.msra.mxu0 %v4338
  %4383 = vmatpush.msra.mxu0 %v4337
  %4384 = vmatmul.f32.gmra.mxu0 %v4363
  %v4385 = vpop.f32.mrf.mxu0
  %v4386 = vadd.f32 0.0, %v4385
  %4387 = vdwg.mxu0
  %4388 = vmatpush.msra.mxu0 0.0
  %4389 = vmatpush.msra.mxu0 0.0
  %4390 = vmatpush.msra.mxu0 0.0
  %4391 = vmatpush.msra.mxu0 0.0
  %4392 = vmatpush.msra.mxu0 0.0
  %4393 = vmatpush.msra.mxu0 0.0
  %4394 = vmatpush.msra.mxu0 0.0
  %4395 = vmatpush.msra.mxu0 0.0
  %4396 = vmatpush.msra.mxu0 %v4360
  %4397 = vmatpush.msra.mxu0 %v4359
  %4398 = vmatpush.msra.mxu0 %v4358
  %4399 = vmatpush.msra.mxu0 %v4357
  %4400 = vmatpush.msra.mxu0 %v4356
  %4401 = vmatpush.msra.mxu0 %v4355
  %4402 = vmatpush.msra.mxu0 %v4354
  %4403 = vmatpush.msra.mxu0 %v4353
  %4404 = vmatmul.f32.gmra.mxu0 %v4366
  %v4405 = vpop.f32.mrf.mxu0
  %v4406 = vadd.f32 %v4386, %v4405
  %4407 = vdwg.mxu0
  %v4408 = vadd.f32 %v4333, %v4406
  %v4409 = vld [vmem:[#allocation4 + $0x10] sm:$0x38]
  %v4410 = vld [vmem:[#allocation4 + $0x18] sm:$0x38]
  %v4411 = vld [vmem:[%s3925] sm:$0xff]
  %v4412 = vld [vmem:[%s3925 + $0x8] sm:$0xff]
  %v4413 = vld [vmem:[%s3925 + $0x10] sm:$0xff]
  %v4414 = vld [vmem:[%s3925 + $0x18] sm:$0xff]
  %v4415 = vld [vmem:[%s3925 + $0x20] sm:$0xff]
  %v4416 = vld [vmem:[%s3925 + $0x28] sm:$0xff]
  %v4417 = vld [vmem:[%s3925 + $0x30] sm:$0xff]
  %v4418 = vld [vmem:[%s3925 + $0x38] sm:$0xff]
  %v4419 = vld [vmem:[%s3925 + $0x40] sm:$0xff]
  %v4420 = vld [vmem:[%s3925 + $0x48] sm:$0xff]
  %v4421 = vld [vmem:[%s3925 + $0x50] sm:$0xff]
  %v4422 = vld [vmem:[%s3925 + $0x58] sm:$0xff]
  %v4423 = vld [vmem:[%s3925 + $0x60] sm:$0xff]
  %v4424 = vld [vmem:[%s3925 + $0x68] sm:$0xff]
  %v4425 = vld [vmem:[%s3925 + $0x70] sm:$0xff]
  %v4426 = vld [vmem:[%s3925 + $0x78] sm:$0xff]
  %v4427 = vld [vmem:[%s3925 + $0x80] sm:$0xff]
  %v4428 = vld [vmem:[%s3925 + $0x88] sm:$0xff]
  %v4429 = vld [vmem:[%s3925 + $0x90] sm:$0xff]
  %v4430 = vld [vmem:[%s3925 + $0x98] sm:$0xff]
  %v4431 = vld [vmem:[%s3925 + $0xa0] sm:$0xff]
  %v4432 = vld [vmem:[%s3925 + $0xa8] sm:$0xff]
  %v4433 = vld [vmem:[%s3925 + $0xb0] sm:$0xff]
  %v4434 = vld [vmem:[%s3925 + $0xb8] sm:$0xff]
  %v4437 = vrot.slane %v4409, 3
  %v4438 = vrot.slane %v4410, 3
  %v4440 = vsel %vm2804, %v4438, 0
  %4442 = vmatpush.msra.mxu0 %v4426
  %4443 = vmatpush.msra.mxu0 %v4425
  %4444 = vmatpush.msra.mxu0 %v4424
  %4445 = vmatpush.msra.mxu0 %v4423
  %4446 = vmatpush.msra.mxu0 %v4422
  %4447 = vmatpush.msra.mxu0 %v4421
  %4448 = vmatpush.msra.mxu0 %v4420
  %4449 = vmatpush.msra.mxu0 %v4419
  %4450 = vmatpush.msra.mxu0 %v4418
  %4451 = vmatpush.msra.mxu0 %v4417
  %4452 = vmatpush.msra.mxu0 %v4416
  %4453 = vmatpush.msra.mxu0 %v4415
  %4454 = vmatpush.msra.mxu0 %v4414
  %4455 = vmatpush.msra.mxu0 %v4413
  %4456 = vmatpush.msra.mxu0 %v4412
  %4457 = vmatpush.msra.mxu0 %v4411
  %4458 = vmatmul.f32.gmra.mxu0 %v4437
  %v4459 = vpop.f32.mrf.mxu0
  %v4460 = vadd.f32 0.0, %v4459
  %4461 = vdwg.mxu0
  %4462 = vmatpush.msra.mxu0 0.0
  %4463 = vmatpush.msra.mxu0 0.0
  %4464 = vmatpush.msra.mxu0 0.0
  %4465 = vmatpush.msra.mxu0 0.0
  %4466 = vmatpush.msra.mxu0 0.0
  %4467 = vmatpush.msra.mxu0 0.0
  %4468 = vmatpush.msra.mxu0 0.0
  %4469 = vmatpush.msra.mxu0 0.0
  %4470 = vmatpush.msra.mxu0 %v4434
  %4471 = vmatpush.msra.mxu0 %v4433
  %4472 = vmatpush.msra.mxu0 %v4432
  %4473 = vmatpush.msra.mxu0 %v4431
  %4474 = vmatpush.msra.mxu0 %v4430
  %4475 = vmatpush.msra.mxu0 %v4429
  %4476 = vmatpush.msra.mxu0 %v4428
  %4477 = vmatpush.msra.mxu0 %v4427
  %4478 = vmatmul.f32.gmra.mxu0 %v4440
  %v4479 = vpop.f32.mrf.mxu0
  %v4480 = vadd.f32 %v4460, %v4479
  %4481 = vdwg.mxu0
  %v4482 = vadd.f32 %v4408, %v4480
  %v4483 = vld [vmem:[#allocation4 + $0x10] sm:$0x70]
  %v4484 = vld [vmem:[#allocation4 + $0x18] sm:$0x70]
  %v4485 = vld [vmem:[%s4000] sm:$0xff]
  %v4486 = vld [vmem:[%s4000 + $0x8] sm:$0xff]
  %v4487 = vld [vmem:[%s4000 + $0x10] sm:$0xff]
  %v4488 = vld [vmem:[%s4000 + $0x18] sm:$0xff]
  %v4489 = vld [vmem:[%s4000 + $0x20] sm:$0xff]
  %v4490 = vld [vmem:[%s4000 + $0x28] sm:$0xff]
  %v4491 = vld [vmem:[%s4000 + $0x30] sm:$0xff]
  %v4492 = vld [vmem:[%s4000 + $0x38] sm:$0xff]
  %v4493 = vld [vmem:[%s4000 + $0x40] sm:$0xff]
  %v4494 = vld [vmem:[%s4000 + $0x48] sm:$0xff]
  %v4495 = vld [vmem:[%s4000 + $0x50] sm:$0xff]
  %v4496 = vld [vmem:[%s4000 + $0x58] sm:$0xff]
  %v4497 = vld [vmem:[%s4000 + $0x60] sm:$0xff]
  %v4498 = vld [vmem:[%s4000 + $0x68] sm:$0xff]
  %v4499 = vld [vmem:[%s4000 + $0x70] sm:$0xff]
  %v4500 = vld [vmem:[%s4000 + $0x78] sm:$0xff]
  %v4501 = vld [vmem:[%s4000 + $0x80] sm:$0xff]
  %v4502 = vld [vmem:[%s4000 + $0x88] sm:$0xff]
  %v4503 = vld [vmem:[%s4000 + $0x90] sm:$0xff]
  %v4504 = vld [vmem:[%s4000 + $0x98] sm:$0xff]
  %v4505 = vld [vmem:[%s4000 + $0xa0] sm:$0xff]
  %v4506 = vld [vmem:[%s4000 + $0xa8] sm:$0xff]
  %v4507 = vld [vmem:[%s4000 + $0xb0] sm:$0xff]
  %v4508 = vld [vmem:[%s4000 + $0xb8] sm:$0xff]
  %v4511 = vrot.slane %v4483, 4
  %v4512 = vrot.slane %v4484, 4
  %v4514 = vsel %vm2804, %v4512, 0
  %4516 = vmatpush.msra.mxu0 %v4500
  %4517 = vmatpush.msra.mxu0 %v4499
  %4518 = vmatpush.msra.mxu0 %v4498
  %4519 = vmatpush.msra.mxu0 %v4497
  %4520 = vmatpush.msra.mxu0 %v4496
  %4521 = vmatpush.msra.mxu0 %v4495
  %4522 = vmatpush.msra.mxu0 %v4494
  %4523 = vmatpush.msra.mxu0 %v4493
  %4524 = vmatpush.msra.mxu0 %v4492
  %4525 = vmatpush.msra.mxu0 %v4491
  %4526 = vmatpush.msra.mxu0 %v4490
  %4527 = vmatpush.msra.mxu0 %v4489
  %4528 = vmatpush.msra.mxu0 %v4488
  %4529 = vmatpush.msra.mxu0 %v4487
  %4530 = vmatpush.msra.mxu0 %v4486
  %4531 = vmatpush.msra.mxu0 %v4485
  %4532 = vmatmul.f32.gmra.mxu0 %v4511
  %v4533 = vpop.f32.mrf.mxu0
  %v4534 = vadd.f32 0.0, %v4533
  %4535 = vdwg.mxu0
  %4536 = vmatpush.msra.mxu0 0.0
  %4537 = vmatpush.msra.mxu0 0.0
  %4538 = vmatpush.msra.mxu0 0.0
  %4539 = vmatpush.msra.mxu0 0.0
  %4540 = vmatpush.msra.mxu0 0.0
  %4541 = vmatpush.msra.mxu0 0.0
  %4542 = vmatpush.msra.mxu0 0.0
  %4543 = vmatpush.msra.mxu0 0.0
  %4544 = vmatpush.msra.mxu0 %v4508
  %4545 = vmatpush.msra.mxu0 %v4507
  %4546 = vmatpush.msra.mxu0 %v4506
  %4547 = vmatpush.msra.mxu0 %v4505
  %4548 = vmatpush.msra.mxu0 %v4504
  %4549 = vmatpush.msra.mxu0 %v4503
  %4550 = vmatpush.msra.mxu0 %v4502
  %4551 = vmatpush.msra.mxu0 %v4501
  %4552 = vmatmul.f32.gmra.mxu0 %v4514
  %v4553 = vpop.f32.mrf.mxu0
  %v4554 = vadd.f32 %v4534, %v4553
  %4555 = vdwg.mxu0
  %v4556 = vadd.f32 %v4482, %v4554
  %v4557 = vld [vmem:[#allocation4 + $0x10] sm:$0xe0]
  %v4558 = vld [vmem:[#allocation4 + $0x18] sm:$0xe0]
  %v4559 = vld [vmem:[%s4075] sm:$0xff]
  %v4560 = vld [vmem:[%s4075 + $0x8] sm:$0xff]
  %v4561 = vld [vmem:[%s4075 + $0x10] sm:$0xff]
  %v4562 = vld [vmem:[%s4075 + $0x18] sm:$0xff]
  %v4563 = vld [vmem:[%s4075 + $0x20] sm:$0xff]
  %v4564 = vld [vmem:[%s4075 + $0x28] sm:$0xff]
  %v4565 = vld [vmem:[%s4075 + $0x30] sm:$0xff]
  %v4566 = vld [vmem:[%s4075 + $0x38] sm:$0xff]
  %v4567 = vld [vmem:[%s4075 + $0x40] sm:$0xff]
  %v4568 = vld [vmem:[%s4075 + $0x48] sm:$0xff]
  %v4569 = vld [vmem:[%s4075 + $0x50] sm:$0xff]
  %v4570 = vld [vmem:[%s4075 + $0x58] sm:$0xff]
  %v4571 = vld [vmem:[%s4075 + $0x60] sm:$0xff]
  %v4572 = vld [vmem:[%s4075 + $0x68] sm:$0xff]
  %v4573 = vld [vmem:[%s4075 + $0x70] sm:$0xff]
  %v4574 = vld [vmem:[%s4075 + $0x78] sm:$0xff]
  %v4575 = vld [vmem:[%s4075 + $0x80] sm:$0xff]
  %v4576 = vld [vmem:[%s4075 + $0x88] sm:$0xff]
  %v4577 = vld [vmem:[%s4075 + $0x90] sm:$0xff]
  %v4578 = vld [vmem:[%s4075 + $0x98] sm:$0xff]
  %v4579 = vld [vmem:[%s4075 + $0xa0] sm:$0xff]
  %v4580 = vld [vmem:[%s4075 + $0xa8] sm:$0xff]
  %v4581 = vld [vmem:[%s4075 + $0xb0] sm:$0xff]
  %v4582 = vld [vmem:[%s4075 + $0xb8] sm:$0xff]
  %v4585 = vrot.slane %v4557, 5
  %v4586 = vrot.slane %v4558, 5
  %v4588 = vsel %vm2804, %v4586, 0
  %4590 = vmatpush.msra.mxu0 %v4574
  %4591 = vmatpush.msra.mxu0 %v4573
  %4592 = vmatpush.msra.mxu0 %v4572
  %4593 = vmatpush.msra.mxu0 %v4571
  %4594 = vmatpush.msra.mxu0 %v4570
  %4595 = vmatpush.msra.mxu0 %v4569
  %4596 = vmatpush.msra.mxu0 %v4568
  %4597 = vmatpush.msra.mxu0 %v4567
  %4598 = vmatpush.msra.mxu0 %v4566
  %4599 = vmatpush.msra.mxu0 %v4565
  %4600 = vmatpush.msra.mxu0 %v4564
  %4601 = vmatpush.msra.mxu0 %v4563
  %4602 = vmatpush.msra.mxu0 %v4562
  %4603 = vmatpush.msra.mxu0 %v4561
  %4604 = vmatpush.msra.mxu0 %v4560
  %4605 = vmatpush.msra.mxu0 %v4559
  %4606 = vmatmul.f32.gmra.mxu0 %v4585
  %v4607 = vpop.f32.mrf.mxu0
  %v4608 = vadd.f32 0.0, %v4607
  %4609 = vdwg.mxu0
  %4610 = vmatpush.msra.mxu0 0.0
  %4611 = vmatpush.msra.mxu0 0.0
  %4612 = vmatpush.msra.mxu0 0.0
  %4613 = vmatpush.msra.mxu0 0.0
  %4614 = vmatpush.msra.mxu0 0.0
  %4615 = vmatpush.msra.mxu0 0.0
  %4616 = vmatpush.msra.mxu0 0.0
  %4617 = vmatpush.msra.mxu0 0.0
  %4618 = vmatpush.msra.mxu0 %v4582
  %4619 = vmatpush.msra.mxu0 %v4581
  %4620 = vmatpush.msra.mxu0 %v4580
  %4621 = vmatpush.msra.mxu0 %v4579
  %4622 = vmatpush.msra.mxu0 %v4578
  %4623 = vmatpush.msra.mxu0 %v4577
  %4624 = vmatpush.msra.mxu0 %v4576
  %4625 = vmatpush.msra.mxu0 %v4575
  %4626 = vmatmul.f32.gmra.mxu0 %v4588
  %v4627 = vpop.f32.mrf.mxu0
  %v4628 = vadd.f32 %v4608, %v4627
  %4629 = vdwg.mxu0
  %v4630 = vadd.f32 %v4556, %v4628
  %v4632 = vsel %vm4151, %v4630, 0
  %4634 = vmatpush.msra.mxu0 0.0
  %4635 = vmatpush.msra.mxu0 0.0
  %4636 = vmatpush.msra.mxu0 0.0
  %4637 = vmatpush.msra.mxu0 0.0
  %4638 = vmatpush.msra.mxu0 0.0
  %4639 = vmatpush.msra.mxu0 0.0
  %4640 = vmatpush.msra.mxu0 0.0
  %4641 = vmatpush.msra.mxu0 0.0
  %4642 = vmatpush.msra.mxu0 0.0
  %4643 = vmatpush.msra.mxu0 0.0
  %4644 = vmatpush.msra.mxu0 0.0
  %4645 = vmatpush.msra.mxu0 0.0
  %4646 = vmatpush.msra.mxu0 0.0
  %4647 = vmatpush.msra.mxu0 0.0
  %4648 = vmatpush.msra.mxu0 0.0
  %4649 = vmatpush.msra.mxu0 %v4632
  %4650 = vmatmul.f32.gmra.mxu0 %v4149
  %v4651 = vpop.f32.mrf.mxu0
  %v4652 = vadd.f32 0.0, %v4651
  %4653 = vdwg.mxu0
  %4654 = vst [vmem:[#allocation5 + $0x2] sm:$0x3] %v4652
  %v4655 = vsel %vm3662, %v4652, 0.0
  %v4656 = vrot.slane %v4655, 4
  %v4657 = vadd.f32 %v4655, %v4656
  %v4658 = vrot.slane %v4657, 2
  %v4659 = vadd.f32 %v4657, %v4658
  %v4660 = vrot.slane %v4659, 1
  %v4661 = vadd.f32 %v4659, %v4660
  %v4662 = vadd.f32 %v4183, %v4661
  %v4663 = vmul.f32 %v4652, %v4652
  %v4664 = vsel %vm3662, %v4663, 0.0
  %v4665 = vrot.slane %v4664, 4
  %v4666 = vadd.f32 %v4664, %v4665
  %v4667 = vrot.slane %v4666, 2
  %v4668 = vadd.f32 %v4666, %v4667
  %v4669 = vrot.slane %v4668, 1
  %v4670 = vadd.f32 %v4668, %v4669
  %v4671 = vadd.f32 %v4192, %v4670
  %v4672 = vld [vmem:[%s12] sm:$0xff]
  %v4673 = vld [vmem:[%s12 + $0x8] sm:$0xff]
  %v4674 = vld [vmem:[%s12 + $0x10] sm:$0xff]
  %v4675 = vld [vmem:[%s12 + $0x18] sm:$0xff]
  %v4676 = vld [vmem:[%s12 + $0x20] sm:$0xff]
  %v4677 = vld [vmem:[%s12 + $0x28] sm:$0xff]
  %v4678 = vld [vmem:[%s12 + $0x30] sm:$0xff]
  %v4679 = vld [vmem:[%s12 + $0x38] sm:$0xff]
  %v4680 = vld [vmem:[%s12 + $0x40] sm:$0xff]
  %v4681 = vld [vmem:[%s12 + $0x48] sm:$0xff]
  %v4682 = vld [vmem:[%s12 + $0x50] sm:$0xff]
  %v4683 = vld [vmem:[%s12 + $0x58] sm:$0xff]
  %v4684 = vld [vmem:[%s12 + $0x60] sm:$0xff]
  %v4685 = vld [vmem:[%s12 + $0x68] sm:$0xff]
  %v4686 = vld [vmem:[%s12 + $0x70] sm:$0xff]
  %v4687 = vld [vmem:[%s12 + $0x78] sm:$0xff]
  %4688 = vmatpush.msra.mxu0 %v4687
  %4689 = vmatpush.msra.mxu0 %v4686
  %4690 = vmatpush.msra.mxu0 %v4685
  %4691 = vmatpush.msra.mxu0 %v4684
  %4692 = vmatpush.msra.mxu0 %v4683
  %4693 = vmatpush.msra.mxu0 %v4682
  %4694 = vmatpush.msra.mxu0 %v4681
  %4695 = vmatpush.msra.mxu0 %v4680
  %4696 = vmatpush.msra.mxu0 %v4679
  %4697 = vmatpush.msra.mxu0 %v4678
  %4698 = vmatpush.msra.mxu0 %v4677
  %4699 = vmatpush.msra.mxu0 %v4676
  %4700 = vmatpush.msra.mxu0 %v4675
  %4701 = vmatpush.msra.mxu0 %v4674
  %4702 = vmatpush.msra.mxu0 %v4673
  %4703 = vmatpush.msra.mxu0 %v4672
  %4704 = vmatmul.f32.gmra.mxu0 %v4662
  %v4705 = vpop.f32.mrf.mxu0
  %v4706 = vadd.f32 0.0, %v4705
  %4707 = vdwg.mxu0
  %4708 = vmatpush.msra.mxu0 %v4687
  %4709 = vmatpush.msra.mxu0 %v4686
  %4710 = vmatpush.msra.mxu0 %v4685
  %4711 = vmatpush.msra.mxu0 %v4684
  %4712 = vmatpush.msra.mxu0 %v4683
  %4713 = vmatpush.msra.mxu0 %v4682
  %4714 = vmatpush.msra.mxu0 %v4681
  %4715 = vmatpush.msra.mxu0 %v4680
  %4716 = vmatpush.msra.mxu0 %v4679
  %4717 = vmatpush.msra.mxu0 %v4678
  %4718 = vmatpush.msra.mxu0 %v4677
  %4719 = vmatpush.msra.mxu0 %v4676
  %4720 = vmatpush.msra.mxu0 %v4675
  %4721 = vmatpush.msra.mxu0 %v4674
  %4722 = vmatpush.msra.mxu0 %v4673
  %4723 = vmatpush.msra.mxu0 %v4672
  %4724 = vmatmul.f32.gmra.mxu0 %v4671
  %v4725 = vpop.f32.mrf.mxu0
  %v4726 = vadd.f32 0.0, %v4725
  %4727 = vdwg.mxu0
  %v4728 = vmul.f32 %v4706, 0.125
  %v4729 = vmul.f32 %v4726, 0.125
  %v4730 = vmul.f32 %v4728, %v4728
  %v4731 = vsub.f32 %v4729, %v4730
  %v4732 = vld [vmem:[%s11] sm:$0x3]
  %v4733 = vadd.f32 %v4731, 1e-05
  %v4734 = vrsqrt.pop %v4733
  %v4735 = vmul.f32 %v4734, %v4733
  %v4736 = vmul.f32 %v4735, %v4734
  %v4737 = vmul.f32 0.5, %v4736
  %v4738 = vsub.f32 1.5, %v4737
  %v4739 = vmul.f32 %v4734, %v4738
  %vm4740 = vweird.f32 %v4733
  %vm4741 = vweird.f32 %v4734
  %vm4742 = vmor %vm4740, %vm4741
  %v4743 = vsel %vm4742, %v4734, %v4739
  %v4744 = vmul.f32 %v4732, %v4743
  %v4745 = vmul.f32 %v4728, %v4744
  %v4747 = vrot.slane %v4745, 7
  %v4749 = vsub.f32 %v4732, %v4747
  %v4750 = vld [vmem:[#allocation5] sm:$0xf]
  %v4751 = vperm.slane %v4744, 0
  %v4752 = vmul.f32 %v4750, %v4751
  %v4753 = vperm.slane %v4749, 1
  %v4754 = vadd.f32 %v4752, %v4753
  %4755 = vst [vmem:[#allocation5] sm:$0xf] %v4754
  %v4756 = vld [vmem:[%s13] sm:$0x3]
  %v4757 = vld [vmem:[#allocation6] sm:$0x1]
  %v4758 = vld [vmem:[#allocation5] sm:$0x3]
  %v4759 = vmul.f32 %v4758, %v4756
  %v4760 = vsel %vm3662, %v4759, 0.0
  %4761 = vadd.xlane.f32.xlu0 %v4760
  %v4762 = vpop.xlane.xlu0 %4761
  %v4763 = vsel %vm3662, %v4762, 0.0
  %v4764 = vrot.slane %v4763, 4
  %v4765 = vadd.f32 %v4763, %v4764
  %v4766 = vrot.slane %v4765, 2
  %v4767 = vadd.f32 %v4765, %v4766
  %v4768 = vrot.slane %v4767, 1
  %v4769 = vadd.f32 %v4767, %v4768
  %v4770 = vadd.f32 %v4769, %v4757
  %v4771 = vsub.f32 0.0, %v4770
  %v4772 = vmul.f32 %v4771, 1.442695
  %v4773 = vpow.pop %v4772
  %v4774 = vadd.f32 %v4773, 1.0
  %v4775 = vrcp.pop %v4774
  %v4776 = vmul.f32 %v4774, %v4775
  %v4777 = vsub.f32 1.0, %v4776
  %v4778 = vmul.f32 %v4775, %v4777
  %v4779 = vadd.f32 %v4775, %v4778
  %vm4780 = vweird.f32 %v4774
  %vm4781 = vweird.f32 %v4775
  %vm4782 = vmor %vm4780, %vm4781
  %v4783 = vsel %vm4782, %v4775, %v4779
  %v4784 = vand.u32 2147483647, %v4774
  %vm4785 = vcmp.eq.f32.partialorder %v4784, 8.507059e+37
  %v4786 = vand.u32 %v4774, 2147483648
  %v4787 = vor.u32 1.1754944e-38, %v4786
  %v4788 = vsel %vm4785, %v4787, %v4783
  %v4789 = vmul.f32 1.0, %v4788
  %vm4790 = vcmask 0
  %4791 = vst.msk [vmem:[%s15] sm:$0x1] %vm4790, %v4789
  %v4792 = vld [vmem:[#allocation5 + $0x2] sm:$0x3]
  %v4793 = vmul.f32 %v4792, %v4756
  %v4794 = vsel %vm3662, %v4793, 0.0
  %4795 = vadd.xlane.f32.xlu0 %v4794
  %v4796 = vpop.xlane.xlu0 %4795
  %v4797 = vsel %vm3662, %v4796, 0.0
  %v4798 = vrot.slane %v4797, 4
  %v4799 = vadd.f32 %v4797, %v4798
  %v4800 = vrot.slane %v4799, 2
  %v4801 = vadd.f32 %v4799, %v4800
  %v4802 = vrot.slane %v4801, 1
  %v4803 = vadd.f32 %v4801, %v4802
  %v4804 = vadd.f32 %v4803, %v4757
  %v4805 = vsub.f32 0.0, %v4804
  %v4806 = vmul.f32 %v4805, 1.442695
  %v4807 = vpow.pop %v4806
  %v4808 = vadd.f32 %v4807, 1.0
  %v4809 = vrcp.pop %v4808
  %v4810 = vmul.f32 %v4808, %v4809
  %v4811 = vsub.f32 1.0, %v4810
  %v4812 = vmul.f32 %v4809, %v4811
  %v4813 = vadd.f32 %v4809, %v4812
  %vm4814 = vweird.f32 %v4808
  %vm4815 = vweird.f32 %v4809
  %vm4816 = vmor %vm4814, %vm4815
  %v4817 = vsel %vm4816, %v4809, %v4813
  %v4818 = vand.u32 2147483647, %v4808
  %vm4819 = vcmp.eq.f32.partialorder %v4818, 8.507059e+37
  %v4820 = vand.u32 %v4808, 2147483648
  %v4821 = vor.u32 1.1754944e-38, %v4820
  %v4822 = vsel %vm4819, %v4821, %v4817
  %v4823 = vmul.f32 1.0, %v4822
  %4824 = vst.msk [vmem:[%s15 + $0x1] sm:$0x1] %vm4790, %v4823
  // Predicated region
  $region62: #{tpu_custom_call.1} parent=0 // pred_check
    _
  $region63: #{tpu_custom_call.1} parent=0 // pred_check_branch
    %4826 = sbr.rel (0) target = $region65
  $region64: #{tpu_custom_call.1} parent=0 // pred_region
    _
  $region65: #{tpu_custom_call.1} parent=0 // pred_fallthru
    _
  // Predicated region
  $region66: #{tpu_custom_call.1} parent=0 // pred_check
    _
  $region67: #{tpu_custom_call.1} parent=0 // pred_check_branch
    %4828 = sbr.rel (0) target = $region69
  $region68: #{tpu_custom_call.1} parent=0 // pred_region
    _
  $region69: #{tpu_custom_call.1} parent=0 // pred_fallthru
    _

</llo_original>
